<compile_context>
chip_gen: v7x
topology: tpu7x:2x2x1
jax: 0.10.0
libtpu: 0.0.40
codegen_flags: <defaults>
</compile_context>

<pallas_src>
import functools

import jax
import jax.numpy as jnp
from jax.experimental import pallas as pl
from jax.experimental.pallas import tpu as pltpu

EPS = 1e-3   # BatchNorm2d(eps=0.001)
PAD = 3      # (7 - 1) // 2


def _bn_relu_2d(x, gamma, beta):
    """Training-mode BatchNorm + ReLU on a (rows, C) f32 slab (two-pass stats)."""
    mean = jnp.mean(x, axis=0, keepdims=True)             # (1, C)
    xc = x - mean
    var = jnp.mean(xc * xc, axis=0, keepdims=True)        # biased variance
    scale = gamma * jax.lax.rsqrt(var + EPS)               # rsqrt -> EUP
    return jnp.maximum(xc * scale + beta, 0.0)


def fused_kernel(x_ref, g1_ref, b1_ref, w1_ref, g2_ref, b2_ref, w2_hbm_ref,
                 o_ref, padh_ref, padw_ref, w2_vmem, w2_sem,
                 *, H, W, C, KH, KW, HALO_H, HALO_W):
    R = H * W

    # ---- Prefetch conv2 weights (bf16) behind BN1 + conv1 -------------------
    w2_copy = pltpu.make_async_copy(w2_hbm_ref, w2_vmem, w2_sem)
    w2_copy.start()

    # ---- BN1 + ReLU (f32) ----------------------------------------------------
    y = _bn_relu_2d(x_ref[...], g1_ref[...], b1_ref[...])

    # ---- Conv2d (7,1), pad (3,0): 7 accumulated shifted-slice dots -----------
    # padh holds y at an 8-row-aligned offset HALO_H with zero halos around it
    # (flat row index = HALO_H + h*W + w).  Only the halos are zeroed.
    padh_ref[0:HALO_H, :] = jnp.zeros((HALO_H, C), jnp.float32)
    padh_ref[HALO_H + R:HALO_H + R + HALO_H, :] = jnp.zeros((HALO_H, C),
                                                            jnp.float32)
    padh_ref[HALO_H:HALO_H + R, :] = y

    shift_h = HALO_H - PAD * W
    c1 = None
    for dh in range(KH):
        tap = padh_ref[shift_h + dh * W:shift_h + dh * W + R, :]
        d = jnp.dot(tap.astype(jnp.bfloat16), w1_ref[dh * C:(dh + 1) * C, :],
                    preferred_element_type=jnp.float32)
        c1 = d if c1 is None else c1 + d                   # (R, C) f32

    # ---- BN2 + ReLU (f32) ----------------------------------------------------
    y2 = _bn_relu_2d(c1, g2_ref[...], b2_ref[...])

    # ---- Conv2d (1,7), pad (0,3): flat slab padded along the (H*W) axis ------
    padw_ref[0:HALO_W, :] = jnp.zeros((HALO_W, C), jnp.float32)
    padw_ref[HALO_W + R:HALO_W + R + HALO_W, :] = jnp.zeros((HALO_W, C),
                                                            jnp.float32)
    padw_ref[HALO_W:HALO_W + R, :] = y2

    # Per-output W index (row % W), computed ONCE (exact float mod, R <= 144).
    row = jax.lax.broadcasted_iota(jnp.int32, (R, C), 0).astype(jnp.float32)
    wcol = row - W * jnp.floor((row + 0.5) * (1.0 / W))

    w2_copy.wait()   # conv2 weights must be resident from here on

    shift_w = HALO_W - PAD
    acc = None
    for dw in range(KW):
        tap = padw_ref[shift_w + dw:shift_w + dw + R, :]
        # Nested masks: center tap is unmasked; others need one compare each.
        if dw < PAD:                       # need  w + dw - PAD >= 0
            tap = jnp.where(wcol >= float(PAD - dw), tap, 0.0)
        elif dw > PAD:                     # need  w + dw - PAD <= W-1
            tap = jnp.where(wcol <= float(W - 1 + PAD - dw), tap, 0.0)
        d = jnp.dot(tap.astype(jnp.bfloat16), w2_vmem[dw * C:(dw + 1) * C, :],
                    preferred_element_type=jnp.float32)
        acc = d if acc is None else acc + d

    o_ref[...] = acc.astype(o_ref.dtype)


def forward_pallas(x_nchw, g1, b1, w1, g2, b2, w2):
    """x: NCHW f32; w1: (Cout, Cin, 7, 1); w2: (Cout, Cin, 1, 7) (PyTorch OIHW)."""
    N, C, H, W = x_nchw.shape
    assert N == 1, "module operates on batch size 1 (x126 is [1,128,12,12])"
    # TODO(synk): N > 1 would need batch-wide BN stats across a batched grid.
    # TODO(synk): running_mean/var buffer updates (momentum=0.1) are not
    #             materialized; they do not affect the training-mode output.
    KH, KW = w1.shape[2], w2.shape[3]
    R = H * W
    HALO_H = pl.cdiv(PAD * W, 8) * 8    # 40: 8-row aligned payload offset
    HALO_W = pl.cdiv(PAD, 8) * 8        # 8

    # NCHW -> lane-dense (H*W, C) slab; weights OIHW -> (tap*Cin, Cout) in bf16.
    x2d = jnp.transpose(x_nchw, (0, 2, 3, 1)).reshape(R, C)
    w1_2d = jnp.transpose(w1[:, :, :, 0], (2, 1, 0)).reshape(KH * C, C)
    w1_2d = w1_2d.astype(jnp.bfloat16)
    w2_2d = jnp.transpose(w2[:, :, 0, :], (2, 1, 0)).reshape(KW * C, C)
    w2_2d = w2_2d.astype(jnp.bfloat16)
    g1_2d = g1.reshape(1, C).astype(jnp.float32)
    b1_2d = b1.reshape(1, C).astype(jnp.float32)
    g2_2d = g2.reshape(1, C).astype(jnp.float32)
    b2_2d = b2.reshape(1, C).astype(jnp.float32)

    def full_spec(shape):
        n = len(shape)
        return pl.BlockSpec(shape, lambda i, _n=n: (0,) * _n)

    kernel = functools.partial(fused_kernel, H=H, W=W, C=C, KH=KH, KW=KW,
                               HALO_H=HALO_H, HALO_W=HALO_W)

    out2d = pl.pallas_call(
        kernel,
        out_shape=jax.ShapeDtypeStruct((R, C), jnp.float32),
        grid=(1,),
        in_specs=[full_spec((R, C)),
                  full_spec((1, C)), full_spec((1, C)),
                  full_spec((KH * C, C)),
                  full_spec((1, C)), full_spec((1, C)),
                  pl.BlockSpec(memory_space=pl.ANY)],      # w2: manual DMA
        out_specs=full_spec((R, C)),
        scratch_shapes=[
            pltpu.VMEM((2 * HALO_H + R, C), jnp.float32),  # H-padded slab
            pltpu.VMEM((2 * HALO_W + R, C), jnp.float32),  # W-padded flat slab
            pltpu.VMEM((KW * C, C), jnp.bfloat16),         # prefetched w2
            pltpu.SemaphoreType.DMA,                       # w2 DMA semaphore
        ],
        compiler_params=pltpu.CompilerParams(
            dimension_semantics=("arbitrary",)),
    )(x2d, g1_2d, b1_2d, w1_2d, g2_2d, b2_2d, w2_2d)

    # (H*W, C) -> NCHW to match the PyTorch module's output layout
    return jnp.transpose(out2d.reshape(1, H, W, C), (0, 3, 1, 2))


def forward_reference(x_nchw, g1, b1, w1, g2, b2, w2):
    """Pure-JAX f32 reference (training-mode BN, zero-padded convs)."""
    def bn_relu(x, g, b):
        mean = x.mean(axis=(0, 1, 2), keepdims=True)
        var = ((x - mean) ** 2).mean(axis=(0, 1, 2), keepdims=True)
        y = (x - mean) * jax.lax.rsqrt(var + EPS)
        y = y * g.reshape(1, 1, 1, -1) + b.reshape(1, 1, 1, -1)
        return jnp.maximum(y, 0.0)

    x = jnp.transpose(x_nchw, (0, 2, 3, 1))
    y = bn_relu(x, g1, b1)
    k1 = jnp.transpose(w1, (2, 3, 1, 0))         # OIHW -> HWIO (7,1,Cin,Cout)
    c1 = jax.lax.conv_general_dilated(
        y, k1, (1, 1), ((PAD, PAD), (0, 0)),
        dimension_numbers=('NHWC', 'HWIO', 'NHWC'))
    y2 = bn_relu(c1, g2, b2)
    k2 = jnp.transpose(w2, (2, 3, 1, 0))         # (1,7,Cin,Cout)
    c2 = jax.lax.conv_general_dilated(
        y2, k2, (1, 1), ((0, 0), (PAD, PAD)),
        dimension_numbers=('NHWC', 'HWIO', 'NHWC'))
    return jnp.transpose(c2, (0, 3, 1, 2))       # back to NCHW


if __name__ == "__main__":
    # Shapes match the module: x126 = randn([1, 128, 12, 12]).
    N, C, H, W = 1, 128, 12, 12
    KH = KW = 7

    key = jax.random.PRNGKey(0)
    kx, kg1, kb1, kw1, kg2, kb2, kw2 = jax.random.split(key, 7)

    x = jax.random.normal(kx, (N, C, H, W), jnp.float32)
    g1 = 1.0 + 0.1 * jax.random.normal(kg1, (C,), jnp.float32)
    b1 = 0.1 * jax.random.normal(kb1, (C,), jnp.float32)
    w1 = 0.05 * jax.random.normal(kw1, (C, C, KH, 1), jnp.float32)  # conv (7,1) OIHW
    g2 = 1.0 + 0.1 * jax.random.normal(kg2, (C,), jnp.float32)
    b2 = 0.1 * jax.random.normal(kb2, (C,), jnp.float32)
    w2 = 0.05 * jax.random.normal(kw2, (C, C, 1, KW), jnp.float32)  # conv (1,7) OIHW

    out = jax.block_until_ready(forward_pallas(x, g1, b1, w1, g2, b2, w2))
    ref = jax.block_until_ready(forward_reference(x, g1, b1, w1, g2, b2, w2))

    assert out.shape == (N, C, H, W)
    max_err = float(jnp.max(jnp.abs(out - ref)))
    # bf16 MXU matmuls (f32 accumulation) through two chained 896-term convs.
    assert jnp.allclose(out, ref, rtol=5e-2, atol=5e-2), max_err
    print("KERNEL_OK")
</pallas_src>

<mosaic_0001>
module attributes {stable_mosaic.version = 11 : i64} {
  func.func @fused_kernel(%arg0: i32, %arg1: memref<144x128xf32, #tpu.memory_space<vmem>>, %arg2: memref<1x128xf32, #tpu.memory_space<vmem>>, %arg3: memref<1x128xf32, #tpu.memory_space<vmem>>, %arg4: memref<896x128xbf16, #tpu.memory_space<vmem>>, %arg5: memref<1x128xf32, #tpu.memory_space<vmem>>, %arg6: memref<1x128xf32, #tpu.memory_space<vmem>>, %arg7: memref<896x128xbf16, #tpu.memory_space<any>>, %arg8: memref<144x128xf32, #tpu.memory_space<vmem>>, %arg9: memref<224x128xf32, #tpu.memory_space<vmem>>, %arg10: memref<160x128xf32, #tpu.memory_space<vmem>>, %arg11: memref<896x128xbf16, #tpu.memory_space<vmem>>, %arg12: memref<!tpu.dma_semaphore, #tpu.memory_space<semaphore_mem>>) attributes {dimension_semantics = [#tpu.dimension_semantics<arbitrary>], iteration_bounds = array<i64: 1>, scalar_prefetch = 0 : i64, scratch_operands = 4 : i64, tpu.core_type = #tpu.core_type<tc>, window_params = [{pipeline_mode = #tpu.pipeline_mode<synchronous>, transform_indices = @transform_0, window_bounds = array<i64: 144, 128>}, {pipeline_mode = #tpu.pipeline_mode<synchronous>, transform_indices = @transform_1, window_bounds = array<i64: 1, 128>}, {pipeline_mode = #tpu.pipeline_mode<synchronous>, transform_indices = @transform_2, window_bounds = array<i64: 1, 128>}, {pipeline_mode = #tpu.pipeline_mode<synchronous>, transform_indices = @transform_3, window_bounds = array<i64: 896, 128>}, {pipeline_mode = #tpu.pipeline_mode<synchronous>, transform_indices = @transform_4, window_bounds = array<i64: 1, 128>}, {pipeline_mode = #tpu.pipeline_mode<synchronous>, transform_indices = @transform_5, window_bounds = array<i64: 1, 128>}, {}, {pipeline_mode = #tpu.pipeline_mode<synchronous>, transform_indices = @transform_7, window_bounds = array<i64: 144, 128>}]} {
    tpu.enqueue_dma source(%arg7 : memref<896x128xbf16, #tpu.memory_space<any>>) target(%arg11 : memref<896x128xbf16, #tpu.memory_space<vmem>>) target_semaphore(%arg12 : memref<!tpu.dma_semaphore, #tpu.memory_space<semaphore_mem>>)
    %c0 = arith.constant 0 : index
    %c0_0 = arith.constant 0 : index
    %0 = vector.load %arg1[%c0, %c0_0] : memref<144x128xf32, #tpu.memory_space<vmem>>, vector<144x128xf32>
    %c0_1 = arith.constant 0 : index
    %c0_2 = arith.constant 0 : index
    %1 = vector.load %arg2[%c0_1, %c0_2] : memref<1x128xf32, #tpu.memory_space<vmem>>, vector<1x128xf32>
    %c0_3 = arith.constant 0 : index
    %c0_4 = arith.constant 0 : index
    %2 = vector.load %arg3[%c0_3, %c0_4] : memref<1x128xf32, #tpu.memory_space<vmem>>, vector<1x128xf32>
    %cst = arith.constant dense<0.000000e+00> : vector<128xf32>
    %3 = vector.multi_reduction <add>, %0, %cst [0] : vector<144x128xf32> to vector<128xf32>
    %4 = vector.shape_cast %3 : vector<128xf32> to vector<1x128xf32>
    %cst_5 = arith.constant 1.440000e+02 : f32
    %5 = vector.broadcast %cst_5 : f32 to vector<1x128xf32>
    %6 = arith.divf %4, %5 : vector<1x128xf32>
    %7 = vector.broadcast %6 : vector<1x128xf32> to vector<144x128xf32>
    %8 = arith.subf %0, %7 : vector<144x128xf32>
    %9 = arith.mulf %8, %8 : vector<144x128xf32>
    %cst_6 = arith.constant dense<0.000000e+00> : vector<128xf32>
    %10 = vector.multi_reduction <add>, %9, %cst_6 [0] : vector<144x128xf32> to vector<128xf32>
    %11 = vector.shape_cast %10 : vector<128xf32> to vector<1x128xf32>
    %cst_7 = arith.constant 1.440000e+02 : f32
    %12 = vector.broadcast %cst_7 : f32 to vector<1x128xf32>
    %13 = arith.divf %11, %12 : vector<1x128xf32>
    %cst_8 = arith.constant 1.000000e-03 : f32
    %14 = vector.broadcast %cst_8 : f32 to vector<1x128xf32>
    %15 = arith.addf %13, %14 : vector<1x128xf32>
    %16 = math.rsqrt %15 : vector<1x128xf32>
    %17 = arith.mulf %1, %16 : vector<1x128xf32>
    %18 = vector.broadcast %17 : vector<1x128xf32> to vector<144x128xf32>
    %19 = arith.mulf %8, %18 : vector<144x128xf32>
    %20 = vector.broadcast %2 : vector<1x128xf32> to vector<144x128xf32>
    %21 = arith.addf %19, %20 : vector<144x128xf32>
    %cst_9 = arith.constant 0.000000e+00 : f32
    %22 = vector.broadcast %cst_9 : f32 to vector<144x128xf32>
    %23 = arith.maximumf %21, %22 : vector<144x128xf32>
    %cst_10 = arith.constant 0.000000e+00 : f32
    %24 = vector.broadcast %cst_10 : f32 to vector<40x128xf32>
    %c0_11 = arith.constant 0 : index
    %c0_12 = arith.constant 0 : index
    %25 = vector.load %arg9[%c0_11, %c0_12] : memref<224x128xf32, #tpu.memory_space<vmem>>, vector<40x128xf32>
    tpu.vector_store %arg9[%c0_11, %c0_12], %24 {strides = array<i32>} : memref<224x128xf32, #tpu.memory_space<vmem>>, vector<40x128xf32>,
    %cst_13 = arith.constant 0.000000e+00 : f32
    %26 = vector.broadcast %cst_13 : f32 to vector<40x128xf32>
    %c184 = arith.constant 184 : index
    %c0_14 = arith.constant 0 : index
    %27 = vector.load %arg9[%c184, %c0_14] : memref<224x128xf32, #tpu.memory_space<vmem>>, vector<40x128xf32>
    tpu.vector_store %arg9[%c184, %c0_14], %26 {strides = array<i32>} : memref<224x128xf32, #tpu.memory_space<vmem>>, vector<40x128xf32>,
    %c40 = arith.constant 40 : index
    %c0_15 = arith.constant 0 : index
    %28 = vector.load %arg9[%c40, %c0_15] : memref<224x128xf32, #tpu.memory_space<vmem>>, vector<144x128xf32>
    tpu.vector_store %arg9[%c40, %c0_15], %23 {strides = array<i32>} : memref<224x128xf32, #tpu.memory_space<vmem>>, vector<144x128xf32>,
    %c4 = arith.constant 4 : index
    %c0_16 = arith.constant 0 : index
    %29 = vector.load %arg9[%c4, %c0_16] : memref<224x128xf32, #tpu.memory_space<vmem>>, vector<144x128xf32>
    %30 = arith.truncf %29 : vector<144x128xf32> to vector<144x128xbf16>
    %c0_17 = arith.constant 0 : index
    %c0_18 = arith.constant 0 : index
    %31 = vector.load %arg4[%c0_17, %c0_18] : memref<896x128xbf16, #tpu.memory_space<vmem>>, vector<128x128xbf16>
    %cst_19 = arith.constant dense<0.000000e+00> : vector<144x128xf32>
    %32 = tpu.matmul %30, %31, %cst_19 {dimension_numbers = #tpu.dot_dimension_numbers<[1], [0], [0], [1], [0, 0, 1, 1], [], []>} : vector<144x128xbf16>, vector<128x128xbf16>, vector<144x128xf32> -> vector<144x128xf32>
    %c16 = arith.constant 16 : index
    %c0_20 = arith.constant 0 : index
    %33 = vector.load %arg9[%c16, %c0_20] : memref<224x128xf32, #tpu.memory_space<vmem>>, vector<144x128xf32>
    %34 = arith.truncf %33 : vector<144x128xf32> to vector<144x128xbf16>
    %c128 = arith.constant 128 : index
    %c0_21 = arith.constant 0 : index
    %35 = vector.load %arg4[%c128, %c0_21] : memref<896x128xbf16, #tpu.memory_space<vmem>>, vector<128x128xbf16>
    %cst_22 = arith.constant dense<0.000000e+00> : vector<144x128xf32>
    %36 = tpu.matmul %34, %35, %cst_22 {dimension_numbers = #tpu.dot_dimension_numbers<[1], [0], [0], [1], [0, 0, 1, 1], [], []>} : vector<144x128xbf16>, vector<128x128xbf16>, vector<144x128xf32> -> vector<144x128xf32>
    %37 = arith.addf %32, %36 : vector<144x128xf32>
    %c28 = arith.constant 28 : index
    %c0_23 = arith.constant 0 : index
    %38 = vector.load %arg9[%c28, %c0_23] : memref<224x128xf32, #tpu.memory_space<vmem>>, vector<144x128xf32>
    %39 = arith.truncf %38 : vector<144x128xf32> to vector<144x128xbf16>
    %c256 = arith.constant 256 : index
    %c0_24 = arith.constant 0 : index
    %40 = vector.load %arg4[%c256, %c0_24] : memref<896x128xbf16, #tpu.memory_space<vmem>>, vector<128x128xbf16>
    %cst_25 = arith.constant dense<0.000000e+00> : vector<144x128xf32>
    %41 = tpu.matmul %39, %40, %cst_25 {dimension_numbers = #tpu.dot_dimension_numbers<[1], [0], [0], [1], [0, 0, 1, 1], [], []>} : vector<144x128xbf16>, vector<128x128xbf16>, vector<144x128xf32> -> vector<144x128xf32>
    %42 = arith.addf %37, %41 : vector<144x128xf32>
    %c40_26 = arith.constant 40 : index
    %c0_27 = arith.constant 0 : index
    %43 = vector.load %arg9[%c40_26, %c0_27] : memref<224x128xf32, #tpu.memory_space<vmem>>, vector<144x128xf32>
    %44 = arith.truncf %43 : vector<144x128xf32> to vector<144x128xbf16>
    %c384 = arith.constant 384 : index
    %c0_28 = arith.constant 0 : index
    %45 = vector.load %arg4[%c384, %c0_28] : memref<896x128xbf16, #tpu.memory_space<vmem>>, vector<128x128xbf16>
    %cst_29 = arith.constant dense<0.000000e+00> : vector<144x128xf32>
    %46 = tpu.matmul %44, %45, %cst_29 {dimension_numbers = #tpu.dot_dimension_numbers<[1], [0], [0], [1], [0, 0, 1, 1], [], []>} : vector<144x128xbf16>, vector<128x128xbf16>, vector<144x128xf32> -> vector<144x128xf32>
    %47 = arith.addf %42, %46 : vector<144x128xf32>
    %c52 = arith.constant 52 : index
    %c0_30 = arith.constant 0 : index
    %48 = vector.load %arg9[%c52, %c0_30] : memref<224x128xf32, #tpu.memory_space<vmem>>, vector<144x128xf32>
    %49 = arith.truncf %48 : vector<144x128xf32> to vector<144x128xbf16>
    %c512 = arith.constant 512 : index
    %c0_31 = arith.constant 0 : index
    %50 = vector.load %arg4[%c512, %c0_31] : memref<896x128xbf16, #tpu.memory_space<vmem>>, vector<128x128xbf16>
    %cst_32 = arith.constant dense<0.000000e+00> : vector<144x128xf32>
    %51 = tpu.matmul %49, %50, %cst_32 {dimension_numbers = #tpu.dot_dimension_numbers<[1], [0], [0], [1], [0, 0, 1, 1], [], []>} : vector<144x128xbf16>, vector<128x128xbf16>, vector<144x128xf32> -> vector<144x128xf32>
    %52 = arith.addf %47, %51 : vector<144x128xf32>
    %c64 = arith.constant 64 : index
    %c0_33 = arith.constant 0 : index
    %53 = vector.load %arg9[%c64, %c0_33] : memref<224x128xf32, #tpu.memory_space<vmem>>, vector<144x128xf32>
    %54 = arith.truncf %53 : vector<144x128xf32> to vector<144x128xbf16>
    %c640 = arith.constant 640 : index
    %c0_34 = arith.constant 0 : index
    %55 = vector.load %arg4[%c640, %c0_34] : memref<896x128xbf16, #tpu.memory_space<vmem>>, vector<128x128xbf16>
    %cst_35 = arith.constant dense<0.000000e+00> : vector<144x128xf32>
    %56 = tpu.matmul %54, %55, %cst_35 {dimension_numbers = #tpu.dot_dimension_numbers<[1], [0], [0], [1], [0, 0, 1, 1], [], []>} : vector<144x128xbf16>, vector<128x128xbf16>, vector<144x128xf32> -> vector<144x128xf32>
    %57 = arith.addf %52, %56 : vector<144x128xf32>
    %c76 = arith.constant 76 : index
    %c0_36 = arith.constant 0 : index
    %58 = vector.load %arg9[%c76, %c0_36] : memref<224x128xf32, #tpu.memory_space<vmem>>, vector<144x128xf32>
    %59 = arith.truncf %58 : vector<144x128xf32> to vector<144x128xbf16>
    %c768 = arith.constant 768 : index
    %c0_37 = arith.constant 0 : index
    %60 = vector.load %arg4[%c768, %c0_37] : memref<896x128xbf16, #tpu.memory_space<vmem>>, vector<128x128xbf16>
    %cst_38 = arith.constant dense<0.000000e+00> : vector<144x128xf32>
    %61 = tpu.matmul %59, %60, %cst_38 {dimension_numbers = #tpu.dot_dimension_numbers<[1], [0], [0], [1], [0, 0, 1, 1], [], []>} : vector<144x128xbf16>, vector<128x128xbf16>, vector<144x128xf32> -> vector<144x128xf32>
    %62 = arith.addf %57, %61 : vector<144x128xf32>
    %c0_39 = arith.constant 0 : index
    %c0_40 = arith.constant 0 : index
    %63 = vector.load %arg5[%c0_39, %c0_40] : memref<1x128xf32, #tpu.memory_space<vmem>>, vector<1x128xf32>
    %c0_41 = arith.constant 0 : index
    %c0_42 = arith.constant 0 : index
    %64 = vector.load %arg6[%c0_41, %c0_42] : memref<1x128xf32, #tpu.memory_space<vmem>>, vector<1x128xf32>
    %cst_43 = arith.constant dense<0.000000e+00> : vector<128xf32>
    %65 = vector.multi_reduction <add>, %62, %cst_43 [0] : vector<144x128xf32> to vector<128xf32>
    %66 = vector.shape_cast %65 : vector<128xf32> to vector<1x128xf32>
    %cst_44 = arith.constant 1.440000e+02 : f32
    %67 = vector.broadcast %cst_44 : f32 to vector<1x128xf32>
    %68 = arith.divf %66, %67 : vector<1x128xf32>
    %69 = vector.broadcast %68 : vector<1x128xf32> to vector<144x128xf32>
    %70 = arith.subf %62, %69 : vector<144x128xf32>
    %71 = arith.mulf %70, %70 : vector<144x128xf32>
    %cst_45 = arith.constant dense<0.000000e+00> : vector<128xf32>
    %72 = vector.multi_reduction <add>, %71, %cst_45 [0] : vector<144x128xf32> to vector<128xf32>
    %73 = vector.shape_cast %72 : vector<128xf32> to vector<1x128xf32>
    %cst_46 = arith.constant 1.440000e+02 : f32
    %74 = vector.broadcast %cst_46 : f32 to vector<1x128xf32>
    %75 = arith.divf %73, %74 : vector<1x128xf32>
    %cst_47 = arith.constant 1.000000e-03 : f32
    %76 = vector.broadcast %cst_47 : f32 to vector<1x128xf32>
    %77 = arith.addf %75, %76 : vector<1x128xf32>
    %78 = math.rsqrt %77 : vector<1x128xf32>
    %79 = arith.mulf %63, %78 : vector<1x128xf32>
    %80 = vector.broadcast %79 : vector<1x128xf32> to vector<144x128xf32>
    %81 = arith.mulf %70, %80 : vector<144x128xf32>
    %82 = vector.broadcast %64 : vector<1x128xf32> to vector<144x128xf32>
    %83 = arith.addf %81, %82 : vector<144x128xf32>
    %cst_48 = arith.constant 0.000000e+00 : f32
    %84 = vector.broadcast %cst_48 : f32 to vector<144x128xf32>
    %85 = arith.maximumf %83, %84 : vector<144x128xf32>
    %cst_49 = arith.constant 0.000000e+00 : f32
    %86 = vector.broadcast %cst_49 : f32 to vector<8x128xf32>
    %c0_50 = arith.constant 0 : index
    %c0_51 = arith.constant 0 : index
    %87 = vector.load %arg10[%c0_50, %c0_51] : memref<160x128xf32, #tpu.memory_space<vmem>>, vector<8x128xf32>
    tpu.vector_store %arg10[%c0_50, %c0_51], %86 {strides = array<i32>} : memref<160x128xf32, #tpu.memory_space<vmem>>, vector<8x128xf32>,
    %cst_52 = arith.constant 0.000000e+00 : f32
    %88 = vector.broadcast %cst_52 : f32 to vector<8x128xf32>
    %c152 = arith.constant 152 : index
    %c0_53 = arith.constant 0 : index
    %89 = vector.load %arg10[%c152, %c0_53] : memref<160x128xf32, #tpu.memory_space<vmem>>, vector<8x128xf32>
    tpu.vector_store %arg10[%c152, %c0_53], %88 {strides = array<i32>} : memref<160x128xf32, #tpu.memory_space<vmem>>, vector<8x128xf32>,
    %c8 = arith.constant 8 : index
    %c0_54 = arith.constant 0 : index
    %90 = vector.load %arg10[%c8, %c0_54] : memref<160x128xf32, #tpu.memory_space<vmem>>, vector<144x128xf32>
    tpu.vector_store %arg10[%c8, %c0_54], %85 {strides = array<i32>} : memref<160x128xf32, #tpu.memory_space<vmem>>, vector<144x128xf32>,
    %91 = tpu.iota {dimensions = array<i32: 0>} : vector<144x128xi32>
    %92 = arith.sitofp %91 : vector<144x128xi32> to vector<144x128xf32>
    %cst_55 = arith.constant 5.000000e-01 : f32
    %93 = vector.broadcast %cst_55 : f32 to vector<144x128xf32>
    %94 = arith.addf %92, %93 : vector<144x128xf32>
    %cst_56 = arith.constant 0.0833333358 : f32
    %95 = vector.broadcast %cst_56 : f32 to vector<144x128xf32>
    %96 = arith.mulf %94, %95 : vector<144x128xf32>
    %97 = math.floor %96 : vector<144x128xf32>
    %cst_57 = arith.constant 1.200000e+01 : f32
    %98 = vector.broadcast %cst_57 : f32 to vector<144x128xf32>
    %99 = arith.mulf %98, %97 : vector<144x128xf32>
    %100 = arith.subf %92, %99 : vector<144x128xf32>
    tpu.wait_dma2 semaphore(%arg12 : memref<!tpu.dma_semaphore, #tpu.memory_space<semaphore_mem>>) src(%arg7 : memref<896x128xbf16, #tpu.memory_space<any>>) dst(%arg11 : memref<896x128xbf16, #tpu.memory_space<vmem>>)
    %c5 = arith.constant 5 : index
    %c0_58 = arith.constant 0 : index
    %101 = vector.load %arg10[%c5, %c0_58] : memref<160x128xf32, #tpu.memory_space<vmem>>, vector<144x128xf32>
    %cst_59 = arith.constant 3.000000e+00 : f32
    %102 = vector.broadcast %cst_59 : f32 to vector<144x128xf32>
    %103 = arith.cmpf oge, %100, %102 : vector<144x128xf32>
    %cst_60 = arith.constant 0.000000e+00 : f32
    %104 = vector.broadcast %cst_60 : f32 to vector<144x128xf32>
    %105 = arith.select %103, %101, %104 : vector<144x128xi1>, vector<144x128xf32>
    %106 = arith.truncf %105 : vector<144x128xf32> to vector<144x128xbf16>
    %c0_61 = arith.constant 0 : index
    %c0_62 = arith.constant 0 : index
    %107 = vector.load %arg11[%c0_61, %c0_62] : memref<896x128xbf16, #tpu.memory_space<vmem>>, vector<128x128xbf16>
    %cst_63 = arith.constant dense<0.000000e+00> : vector<144x128xf32>
    %108 = tpu.matmul %106, %107, %cst_63 {dimension_numbers = #tpu.dot_dimension_numbers<[1], [0], [0], [1], [0, 0, 1, 1], [], []>} : vector<144x128xbf16>, vector<128x128xbf16>, vector<144x128xf32> -> vector<144x128xf32>
    %c6 = arith.constant 6 : index
    %c0_64 = arith.constant 0 : index
    %109 = vector.load %arg10[%c6, %c0_64] : memref<160x128xf32, #tpu.memory_space<vmem>>, vector<144x128xf32>
    %cst_65 = arith.constant 2.000000e+00 : f32
    %110 = vector.broadcast %cst_65 : f32 to vector<144x128xf32>
    %111 = arith.cmpf oge, %100, %110 : vector<144x128xf32>
    %cst_66 = arith.constant 0.000000e+00 : f32
    %112 = vector.broadcast %cst_66 : f32 to vector<144x128xf32>
    %113 = arith.select %111, %109, %112 : vector<144x128xi1>, vector<144x128xf32>
    %114 = arith.truncf %113 : vector<144x128xf32> to vector<144x128xbf16>
    %c128_67 = arith.constant 128 : index
    %c0_68 = arith.constant 0 : index
    %115 = vector.load %arg11[%c128_67, %c0_68] : memref<896x128xbf16, #tpu.memory_space<vmem>>, vector<128x128xbf16>
    %cst_69 = arith.constant dense<0.000000e+00> : vector<144x128xf32>
    %116 = tpu.matmul %114, %115, %cst_69 {dimension_numbers = #tpu.dot_dimension_numbers<[1], [0], [0], [1], [0, 0, 1, 1], [], []>} : vector<144x128xbf16>, vector<128x128xbf16>, vector<144x128xf32> -> vector<144x128xf32>
    %117 = arith.addf %108, %116 : vector<144x128xf32>
    %c7 = arith.constant 7 : index
    %c0_70 = arith.constant 0 : index
    %118 = vector.load %arg10[%c7, %c0_70] : memref<160x128xf32, #tpu.memory_space<vmem>>, vector<144x128xf32>
    %cst_71 = arith.constant 1.000000e+00 : f32
    %119 = vector.broadcast %cst_71 : f32 to vector<144x128xf32>
    %120 = arith.cmpf oge, %100, %119 : vector<144x128xf32>
    %cst_72 = arith.constant 0.000000e+00 : f32
    %121 = vector.broadcast %cst_72 : f32 to vector<144x128xf32>
    %122 = arith.select %120, %118, %121 : vector<144x128xi1>, vector<144x128xf32>
    %123 = arith.truncf %122 : vector<144x128xf32> to vector<144x128xbf16>
    %c256_73 = arith.constant 256 : index
    %c0_74 = arith.constant 0 : index
    %124 = vector.load %arg11[%c256_73, %c0_74] : memref<896x128xbf16, #tpu.memory_space<vmem>>, vector<128x128xbf16>
    %cst_75 = arith.constant dense<0.000000e+00> : vector<144x128xf32>
    %125 = tpu.matmul %123, %124, %cst_75 {dimension_numbers = #tpu.dot_dimension_numbers<[1], [0], [0], [1], [0, 0, 1, 1], [], []>} : vector<144x128xbf16>, vector<128x128xbf16>, vector<144x128xf32> -> vector<144x128xf32>
    %126 = arith.addf %117, %125 : vector<144x128xf32>
    %c8_76 = arith.constant 8 : index
    %c0_77 = arith.constant 0 : index
    %127 = vector.load %arg10[%c8_76, %c0_77] : memref<160x128xf32, #tpu.memory_space<vmem>>, vector<144x128xf32>
    %128 = arith.truncf %127 : vector<144x128xf32> to vector<144x128xbf16>
    %c384_78 = arith.constant 384 : index
    %c0_79 = arith.constant 0 : index
    %129 = vector.load %arg11[%c384_78, %c0_79] : memref<896x128xbf16, #tpu.memory_space<vmem>>, vector<128x128xbf16>
    %cst_80 = arith.constant dense<0.000000e+00> : vector<144x128xf32>
    %130 = tpu.matmul %128, %129, %cst_80 {dimension_numbers = #tpu.dot_dimension_numbers<[1], [0], [0], [1], [0, 0, 1, 1], [], []>} : vector<144x128xbf16>, vector<128x128xbf16>, vector<144x128xf32> -> vector<144x128xf32>
    %131 = arith.addf %126, %130 : vector<144x128xf32>
    %c9 = arith.constant 9 : index
    %c0_81 = arith.constant 0 : index
    %132 = vector.load %arg10[%c9, %c0_81] : memref<160x128xf32, #tpu.memory_space<vmem>>, vector<144x128xf32>
    %cst_82 = arith.constant 1.000000e+01 : f32
    %133 = vector.broadcast %cst_82 : f32 to vector<144x128xf32>
    %134 = arith.cmpf ole, %100, %133 : vector<144x128xf32>
    %cst_83 = arith.constant 0.000000e+00 : f32
    %135 = vector.broadcast %cst_83 : f32 to vector<144x128xf32>
    %136 = arith.select %134, %132, %135 : vector<144x128xi1>, vector<144x128xf32>
    %137 = arith.truncf %136 : vector<144x128xf32> to vector<144x128xbf16>
    %c512_84 = arith.constant 512 : index
    %c0_85 = arith.constant 0 : index
    %138 = vector.load %arg11[%c512_84, %c0_85] : memref<896x128xbf16, #tpu.memory_space<vmem>>, vector<128x128xbf16>
    %cst_86 = arith.constant dense<0.000000e+00> : vector<144x128xf32>
    %139 = tpu.matmul %137, %138, %cst_86 {dimension_numbers = #tpu.dot_dimension_numbers<[1], [0], [0], [1], [0, 0, 1, 1], [], []>} : vector<144x128xbf16>, vector<128x128xbf16>, vector<144x128xf32> -> vector<144x128xf32>
    %140 = arith.addf %131, %139 : vector<144x128xf32>
    %c10 = arith.constant 10 : index
    %c0_87 = arith.constant 0 : index
    %141 = vector.load %arg10[%c10, %c0_87] : memref<160x128xf32, #tpu.memory_space<vmem>>, vector<144x128xf32>
    %cst_88 = arith.constant 9.000000e+00 : f32
    %142 = vector.broadcast %cst_88 : f32 to vector<144x128xf32>
    %143 = arith.cmpf ole, %100, %142 : vector<144x128xf32>
    %cst_89 = arith.constant 0.000000e+00 : f32
    %144 = vector.broadcast %cst_89 : f32 to vector<144x128xf32>
    %145 = arith.select %143, %141, %144 : vector<144x128xi1>, vector<144x128xf32>
    %146 = arith.truncf %145 : vector<144x128xf32> to vector<144x128xbf16>
    %c640_90 = arith.constant 640 : index
    %c0_91 = arith.constant 0 : index
    %147 = vector.load %arg11[%c640_90, %c0_91] : memref<896x128xbf16, #tpu.memory_space<vmem>>, vector<128x128xbf16>
    %cst_92 = arith.constant dense<0.000000e+00> : vector<144x128xf32>
    %148 = tpu.matmul %146, %147, %cst_92 {dimension_numbers = #tpu.dot_dimension_numbers<[1], [0], [0], [1], [0, 0, 1, 1], [], []>} : vector<144x128xbf16>, vector<128x128xbf16>, vector<144x128xf32> -> vector<144x128xf32>
    %149 = arith.addf %140, %148 : vector<144x128xf32>
    %c11 = arith.constant 11 : index
    %c0_93 = arith.constant 0 : index
    %150 = vector.load %arg10[%c11, %c0_93] : memref<160x128xf32, #tpu.memory_space<vmem>>, vector<144x128xf32>
    %cst_94 = arith.constant 8.000000e+00 : f32
    %151 = vector.broadcast %cst_94 : f32 to vector<144x128xf32>
    %152 = arith.cmpf ole, %100, %151 : vector<144x128xf32>
    %cst_95 = arith.constant 0.000000e+00 : f32
    %153 = vector.broadcast %cst_95 : f32 to vector<144x128xf32>
    %154 = arith.select %152, %150, %153 : vector<144x128xi1>, vector<144x128xf32>
    %155 = arith.truncf %154 : vector<144x128xf32> to vector<144x128xbf16>
    %c768_96 = arith.constant 768 : index
    %c0_97 = arith.constant 0 : index
    %156 = vector.load %arg11[%c768_96, %c0_97] : memref<896x128xbf16, #tpu.memory_space<vmem>>, vector<128x128xbf16>
    %cst_98 = arith.constant dense<0.000000e+00> : vector<144x128xf32>
    %157 = tpu.matmul %155, %156, %cst_98 {dimension_numbers = #tpu.dot_dimension_numbers<[1], [0], [0], [1], [0, 0, 1, 1], [], []>} : vector<144x128xbf16>, vector<128x128xbf16>, vector<144x128xf32> -> vector<144x128xf32>
    %158 = arith.addf %149, %157 : vector<144x128xf32>
    %c0_99 = arith.constant 0 : index
    %c0_100 = arith.constant 0 : index
    %159 = vector.load %arg8[%c0_99, %c0_100] : memref<144x128xf32, #tpu.memory_space<vmem>>, vector<144x128xf32>
    tpu.vector_store %arg8[%c0_99, %c0_100], %158 {strides = array<i32>} : memref<144x128xf32, #tpu.memory_space<vmem>>, vector<144x128xf32>,
    return
  }
  func.func @transform_0(%arg0: i32) -> (i32, i32) {
    %c0_i32 = arith.constant 0 : i32
    %c0_i32_0 = arith.constant 0 : i32
    %c0_i32_1 = arith.constant 0 : i32
    return %c0_i32, %c0_i32_0 : i32, i32
  }
  func.func @transform_1(%arg0: i32) -> (i32, i32) {
    %c0_i32 = arith.constant 0 : i32
    %c0_i32_0 = arith.constant 0 : i32
    %c0_i32_1 = arith.constant 0 : i32
    return %c0_i32, %c0_i32_0 : i32, i32
  }
  func.func @transform_2(%arg0: i32) -> (i32, i32) {
    %c0_i32 = arith.constant 0 : i32
    %c0_i32_0 = arith.constant 0 : i32
    %c0_i32_1 = arith.constant 0 : i32
    return %c0_i32, %c0_i32_0 : i32, i32
  }
  func.func @transform_3(%arg0: i32) -> (i32, i32) {
    %c0_i32 = arith.constant 0 : i32
    %c0_i32_0 = arith.constant 0 : i32
    %c0_i32_1 = arith.constant 0 : i32
    return %c0_i32, %c0_i32_0 : i32, i32
  }
  func.func @transform_4(%arg0: i32) -> (i32, i32) {
    %c0_i32 = arith.constant 0 : i32
    %c0_i32_0 = arith.constant 0 : i32
    %c0_i32_1 = arith.constant 0 : i32
    return %c0_i32, %c0_i32_0 : i32, i32
  }
  func.func @transform_5(%arg0: i32) -> (i32, i32) {
    %c0_i32 = arith.constant 0 : i32
    %c0_i32_0 = arith.constant 0 : i32
    %c0_i32_1 = arith.constant 0 : i32
    return %c0_i32, %c0_i32_0 : i32, i32
  }
  func.func @transform_7(%arg0: i32) -> (i32, i32) {
    %c0_i32 = arith.constant 0 : i32
    %c0_i32_0 = arith.constant 0 : i32
    %c0_i32_1 = arith.constant 0 : i32
    return %c0_i32, %c0_i32_0 : i32, i32
  }
}

</mosaic_0001>

<llo_original>
// kernel: tpu_custom_call.1
$region0: #{tpu_custom_call.1}
  #allocation0 [shape = 'u32[]', space=smem, size = 0x4, offset = 0x4, fixed_abs, tag = 'smem constant byte address 0x4 - core index']
  #allocation1 [shape = 'u32[144,128]{1,0:T(1,128)}', space=vmem, size = 0x12000, scoped, tag = 'internal scratch']
  #allocation2 [shape = 'f32[224,128]{1,0:T(8,128)}', space=vmem, size = 0x1c000, scoped, tag = 'scratch operand']
  #allocation3 [shape = 'f32[160,128]{1,0:T(8,128)}', space=vmem, size = 0x14000, scoped, tag = 'scratch operand']
  #allocation4 [shape = 'bf16[896,128]{1,0:T(16,128)(2,1)}', space=vmem, size = 0x38000, scoped, tag = 'scratch operand']
  #allocation5 [shape = 's32[1]{0}', space=sflag, size = 0x4, scoped, tag = 'scratch operand']
  #allocation12 [shape = 's32[]', space=sflag, size = 0x4, offset = 0, fixed_abs, tag = 'sflag constant byte address 0x0 - dummy sync flag']
  #allocation13 [shape = 's32[]', space=sflag, size = 0x4, offset = 0, fixed_abs, tag = 'sflag constant byte address 0x0 - dummy sync flag']
  #allocation14 [shape = 'u32[]', space=smem, size = 0x4, offset = 0x44, fixed_abs, tag = 'smem constant byte address 0x44 - assertion arg 0']
  #allocation15 [shape = 'u32[]', space=smem, size = 0x4, offset = 0x48, fixed_abs, tag = 'smem constant byte address 0x48 - assertion arg 1']
  %s0 = inlined_call_operand.hbm [shape: f32[144,128], index: 0, kind: input, shape index: {}]
  %s1 = inlined_call_operand.vmem [shape: f32[1,128], index: 1, kind: input, shape index: {}]
  %s2 = inlined_call_operand.vmem [shape: f32[1,128], index: 2, kind: input, shape index: {}]
  %s3 = inlined_call_operand.hbm [shape: bf16[896,128], index: 3, kind: input, shape index: {}]
  %s4 = inlined_call_operand.vmem [shape: f32[1,128], index: 4, kind: input, shape index: {}]
  %s5 = inlined_call_operand.vmem [shape: f32[1,128], index: 5, kind: input, shape index: {}]
  %s6 = inlined_call_operand.hbm [shape: bf16[896,128], index: 6, kind: input, shape index: {}]
  %s7 = inlined_call_operand.hbm [shape: f32[144,128], index: 7, kind: output, shape index: {}]
  %s8 = sld [smem:[#allocation0]]
  $region46: #{tpu_custom_call.1} parent=0
    _
  %s10 = ssub.s32 1, %s8
  %s11 = scalar_select 0, %s10, %s8
  $region1: #{tpu_custom_call.1} parent=0
    #allocation6 [shape = 'u8[73728]{0}', space=vmem, size = 0x12000, scoped, tag = 'input window, operand 0, single buffered']
    #allocation7 [shape = 's32[1]{0}', space=sflag, size = 0x4, scoped, tag = 'scoped memory for tpu_custom_call.1']
    #allocation8 [shape = 's32[1]{0}', space=sflag, size = 0x4, scoped, tag = 'scoped memory for tpu_custom_call.1']
    #allocation9 [shape = 'u8[229376]{0}', space=vmem, size = 0x38000, scoped, tag = 'input window, operand 3, single buffered']
    #allocation10 [shape = 's32[1]{0}', space=sflag, size = 0x4, scoped, tag = 'scoped memory for tpu_custom_call.1']
    #allocation11 [shape = 'u8[73728]{0}', space=vmem, size = 0x12000, scoped, tag = 'output window, operand 0, single buffered']
    %12 = vsyncpa [#allocation7], 0
    %13 = vsyncpa [#allocation10], 0
    %14 = vsyncpa [#allocation8], 0
    // Predicated region
    $region2: #{tpu_custom_call.1} parent=1 // pred_check
      _
    $region3: #{tpu_custom_call.1} parent=1 // pred_check_branch
      %16 = sbr.rel (0) target = $region5
    $region4: #{tpu_custom_call.1} parent=1 // pred_region
      %s18 = ssub.s32 2304, 2304
      %19 = vsyncadd [#allocation7], %s18
      %s20 = sshll.u32 [#allocation6], 4
      %s21 = int_to_ptr.vmem [resolvable:$true] %s20
      %26 = dma.hbm_to_vmem [thread:$0]  %s0, 2304, %s21, [#allocation7], 128, 128, 8
    $region5: #{tpu_custom_call.1} parent=1 // pred_fallthru
      _
    // Predicated region
    $region6: #{tpu_custom_call.1} parent=1 // pred_check
      _
    $region7: #{tpu_custom_call.1} parent=1 // pred_check_branch
      %28 = sbr.rel (0) target = $region9
    $region8: #{tpu_custom_call.1} parent=1 // pred_region
      _
    $region9: #{tpu_custom_call.1} parent=1 // pred_fallthru
      _
    // Predicated region
    $region10: #{tpu_custom_call.1} parent=1 // pred_check
      _
    $region11: #{tpu_custom_call.1} parent=1 // pred_check_branch
      %30 = sbr.rel (0) target = $region13
    $region12: #{tpu_custom_call.1} parent=1 // pred_region
      _
    $region13: #{tpu_custom_call.1} parent=1 // pred_fallthru
      _
    // Predicated region
    $region14: #{tpu_custom_call.1} parent=1 // pred_check
      _
    $region15: #{tpu_custom_call.1} parent=1 // pred_check_branch
      %32 = sbr.rel (0) target = $region17
    $region16: #{tpu_custom_call.1} parent=1 // pred_region
      %s34 = ssub.s32 7168, 7168
      %35 = vsyncadd [#allocation10], %s34
      %s36 = sshll.u32 [#allocation9], 4
      %s37 = int_to_ptr.vmem [resolvable:$true] %s36
      %42 = dma.hbm_to_vmem [thread:$0]  %s3, 7168, %s37, [#allocation10], 64, 64, 4
    $region17: #{tpu_custom_call.1} parent=1 // pred_fallthru
      _
    // Predicated region
    $region18: #{tpu_custom_call.1} parent=1 // pred_check
      _
    $region19: #{tpu_custom_call.1} parent=1 // pred_check_branch
      %44 = sbr.rel (0) target = $region21
    $region20: #{tpu_custom_call.1} parent=1 // pred_region
      _
    $region21: #{tpu_custom_call.1} parent=1 // pred_fallthru
      _
    // Predicated region
    $region22: #{tpu_custom_call.1} parent=1 // pred_check
      _
    $region23: #{tpu_custom_call.1} parent=1 // pred_check_branch
      %46 = sbr.rel (0) target = $region25
    $region24: #{tpu_custom_call.1} parent=1 // pred_region
      _
    $region25: #{tpu_custom_call.1} parent=1 // pred_fallthru
      _
    // Predicated region
    $region26: #{tpu_custom_call.1} parent=1 // pred_check
      _
    $region27: #{tpu_custom_call.1} parent=1 // pred_check_branch
      %48 = sbr.rel (0) target = $region29
    $region28: #{tpu_custom_call.1} parent=1 // pred_region
      %49 = dma.done [#allocation7], 2304
    $region29: #{tpu_custom_call.1} parent=1 // pred_fallthru
      _
    // Predicated region
    $region30: #{tpu_custom_call.1} parent=1 // pred_check
      _
    $region31: #{tpu_custom_call.1} parent=1 // pred_check_branch
      %51 = sbr.rel (0) target = $region33
    $region32: #{tpu_custom_call.1} parent=1 // pred_region
      %52 = dma.done [#allocation10], 7168
    $region33: #{tpu_custom_call.1} parent=1 // pred_fallthru
      _
    // Predicated region
    $region34: #{tpu_custom_call.1} parent=1 // pred_check
      _
    $region35: #{tpu_custom_call.1} parent=1 // pred_check_branch
      %55 = sbr.rel target = $region37
    $region36: #{tpu_custom_call.1} parent=1 // pred_region
      %56 = sst [smem:[#allocation14]] [#allocation13]
      %57 = sst [smem:[#allocation15]] [#allocation12]
    $region37: #{tpu_custom_call.1} parent=1 // pred_fallthru
      _
    %59 = shalt.err (0)
    %s61 = sshll.u32 [#allocation4], 4
    %s62 = int_to_ptr.vmem [resolvable:$true] %s61
    %64 = dma.hbm_to_vmem [thread:$0]  %s6, 7168, %s62, [#allocation5]
    %v65 = vld [vmem:[#allocation6] sm:$0xff]
    %v66 = vld [vmem:[#allocation6 + $0x8] sm:$0xff]
    %v67 = vld [vmem:[#allocation6 + $0x10] sm:$0xff]
    %v68 = vld [vmem:[#allocation6 + $0x18] sm:$0xff]
    %v69 = vld [vmem:[#allocation6 + $0x20] sm:$0xff]
    %v70 = vld [vmem:[#allocation6 + $0x28] sm:$0xff]
    %v71 = vld [vmem:[#allocation6 + $0x30] sm:$0xff]
    %v72 = vld [vmem:[#allocation6 + $0x38] sm:$0xff]
    %v73 = vld [vmem:[#allocation6 + $0x40] sm:$0xff]
    %v74 = vld [vmem:[#allocation6 + $0x48] sm:$0xff]
    %v75 = vld [vmem:[#allocation6 + $0x50] sm:$0xff]
    %v76 = vld [vmem:[#allocation6 + $0x58] sm:$0xff]
    %v77 = vld [vmem:[#allocation6 + $0x60] sm:$0xff]
    %v78 = vld [vmem:[#allocation6 + $0x68] sm:$0xff]
    %v79 = vld [vmem:[#allocation6 + $0x70] sm:$0xff]
    %v80 = vld [vmem:[#allocation6 + $0x78] sm:$0xff]
    %v81 = vld [vmem:[#allocation6 + $0x80] sm:$0xff]
    %v82 = vld [vmem:[#allocation6 + $0x88] sm:$0xff]
    %v83 = vld [vmem:[%s1] sm:$0x1]
    %v84 = vld [vmem:[%s2] sm:$0x1]
    %v85 = vadd.f32 %v65, %v66
    %v86 = vadd.f32 %v85, %v67
    %v87 = vadd.f32 %v86, %v68
    %v88 = vadd.f32 %v87, %v69
    %v89 = vadd.f32 %v88, %v70
    %v90 = vadd.f32 %v89, %v71
    %v91 = vadd.f32 %v90, %v72
    %v92 = vadd.f32 %v91, %v73
    %v93 = vadd.f32 %v92, %v74
    %v94 = vadd.f32 %v93, %v75
    %v95 = vadd.f32 %v94, %v76
    %v96 = vadd.f32 %v95, %v77
    %v97 = vadd.f32 %v96, %v78
    %v98 = vadd.f32 %v97, %v79
    %v99 = vadd.f32 %v98, %v80
    %v100 = vadd.f32 %v99, %v81
    %v101 = vadd.f32 %v100, %v82
    %v102 = vrot.slane %v101, 4
    %v103 = vadd.f32 %v101, %v102
    %v104 = vrot.slane %v103, 2
    %v105 = vadd.f32 %v103, %v104
    %v106 = vrot.slane %v105, 1
    %v107 = vadd.f32 %v105, %v106
    %v108 = vrcp.pop 144.0
    %v109 = vmul.f32 %v107, %v108
    %v110 = vsub.f32 %v65, %v109
    %v111 = vsub.f32 %v66, %v109
    %v112 = vsub.f32 %v67, %v109
    %v113 = vsub.f32 %v68, %v109
    %v114 = vsub.f32 %v69, %v109
    %v115 = vsub.f32 %v70, %v109
    %v116 = vsub.f32 %v71, %v109
    %v117 = vsub.f32 %v72, %v109
    %v118 = vsub.f32 %v73, %v109
    %v119 = vsub.f32 %v74, %v109
    %v120 = vsub.f32 %v75, %v109
    %v121 = vsub.f32 %v76, %v109
    %v122 = vsub.f32 %v77, %v109
    %v123 = vsub.f32 %v78, %v109
    %v124 = vsub.f32 %v79, %v109
    %v125 = vsub.f32 %v80, %v109
    %v126 = vsub.f32 %v81, %v109
    %v127 = vsub.f32 %v82, %v109
    %v128 = vmul.f32 %v110, %v110
    %v129 = vmul.f32 %v111, %v111
    %v130 = vmul.f32 %v112, %v112
    %v131 = vmul.f32 %v113, %v113
    %v132 = vmul.f32 %v114, %v114
    %v133 = vmul.f32 %v115, %v115
    %v134 = vmul.f32 %v116, %v116
    %v135 = vmul.f32 %v117, %v117
    %v136 = vmul.f32 %v118, %v118
    %v137 = vmul.f32 %v119, %v119
    %v138 = vmul.f32 %v120, %v120
    %v139 = vmul.f32 %v121, %v121
    %v140 = vmul.f32 %v122, %v122
    %v141 = vmul.f32 %v123, %v123
    %v142 = vmul.f32 %v124, %v124
    %v143 = vmul.f32 %v125, %v125
    %v144 = vmul.f32 %v126, %v126
    %v145 = vmul.f32 %v127, %v127
    %v146 = vadd.f32 %v128, %v129
    %v147 = vadd.f32 %v146, %v130
    %v148 = vadd.f32 %v147, %v131
    %v149 = vadd.f32 %v148, %v132
    %v150 = vadd.f32 %v149, %v133
    %v151 = vadd.f32 %v150, %v134
    %v152 = vadd.f32 %v151, %v135
    %v153 = vadd.f32 %v152, %v136
    %v154 = vadd.f32 %v153, %v137
    %v155 = vadd.f32 %v154, %v138
    %v156 = vadd.f32 %v155, %v139
    %v157 = vadd.f32 %v156, %v140
    %v158 = vadd.f32 %v157, %v141
    %v159 = vadd.f32 %v158, %v142
    %v160 = vadd.f32 %v159, %v143
    %v161 = vadd.f32 %v160, %v144
    %v162 = vadd.f32 %v161, %v145
    %v163 = vrot.slane %v162, 4
    %v164 = vadd.f32 %v162, %v163
    %v165 = vrot.slane %v164, 2
    %v166 = vadd.f32 %v164, %v165
    %v167 = vrot.slane %v166, 1
    %v168 = vadd.f32 %v166, %v167
    %v169 = vmul.f32 %v168, %v108
    %v170 = vadd.f32 %v169, 0.001
    %v171 = vrsqrt.pop %v170
    %v172 = vmul.f32 %v83, %v171
    %v174 = vlaneseq
    %v175 = vshrl.u32 %v174, 7
    %v176 = vsub.s32 0, %v175
    %v177 = vrot.slane %v172, %v176
    %v179 = vmul.f32 %v110, %v177
    %v180 = vmul.f32 %v111, %v177
    %v181 = vmul.f32 %v112, %v177
    %v182 = vmul.f32 %v113, %v177
    %v183 = vmul.f32 %v114, %v177
    %v184 = vmul.f32 %v115, %v177
    %v185 = vmul.f32 %v116, %v177
    %v186 = vmul.f32 %v117, %v177
    %v187 = vmul.f32 %v118, %v177
    %v188 = vmul.f32 %v119, %v177
    %v189 = vmul.f32 %v120, %v177
    %v190 = vmul.f32 %v121, %v177
    %v191 = vmul.f32 %v122, %v177
    %v192 = vmul.f32 %v123, %v177
    %v193 = vmul.f32 %v124, %v177
    %v194 = vmul.f32 %v125, %v177
    %v195 = vmul.f32 %v126, %v177
    %v196 = vmul.f32 %v127, %v177
    %v198 = vlaneseq
    %v199 = vshrl.u32 %v198, 7
    %v200 = vsub.s32 0, %v199
    %v201 = vrot.slane %v84, %v200
    %v203 = vadd.f32 %v179, %v201
    %v204 = vadd.f32 %v180, %v201
    %v205 = vadd.f32 %v181, %v201
    %v206 = vadd.f32 %v182, %v201
    %v207 = vadd.f32 %v183, %v201
    %v208 = vadd.f32 %v184, %v201
    %v209 = vadd.f32 %v185, %v201
    %v210 = vadd.f32 %v186, %v201
    %v211 = vadd.f32 %v187, %v201
    %v212 = vadd.f32 %v188, %v201
    %v213 = vadd.f32 %v189, %v201
    %v214 = vadd.f32 %v190, %v201
    %v215 = vadd.f32 %v191, %v201
    %v216 = vadd.f32 %v192, %v201
    %v217 = vadd.f32 %v193, %v201
    %v218 = vadd.f32 %v194, %v201
    %v219 = vadd.f32 %v195, %v201
    %v220 = vadd.f32 %v196, %v201
    %v221 = vmax.f32 %v203, 0.0
    %v222 = vmax.f32 %v204, 0.0
    %v223 = vmax.f32 %v205, 0.0
    %v224 = vmax.f32 %v206, 0.0
    %v225 = vmax.f32 %v207, 0.0
    %v226 = vmax.f32 %v208, 0.0
    %v227 = vmax.f32 %v209, 0.0
    %v228 = vmax.f32 %v210, 0.0
    %v229 = vmax.f32 %v211, 0.0
    %v230 = vmax.f32 %v212, 0.0
    %v231 = vmax.f32 %v213, 0.0
    %v232 = vmax.f32 %v214, 0.0
    %v233 = vmax.f32 %v215, 0.0
    %v234 = vmax.f32 %v216, 0.0
    %v235 = vmax.f32 %v217, 0.0
    %v236 = vmax.f32 %v218, 0.0
    %v237 = vmax.f32 %v219, 0.0
    %v238 = vmax.f32 %v220, 0.0
    %239 = vst [vmem:[#allocation2] sm:$0xff] 0.0
    %240 = vst [vmem:[#allocation2 + $0x8] sm:$0xff] 0.0
    %241 = vst [vmem:[#allocation2 + $0x10] sm:$0xff] 0.0
    %242 = vst [vmem:[#allocation2 + $0x18] sm:$0xff] 0.0
    %243 = vst [vmem:[#allocation2 + $0x20] sm:$0xff] 0.0
    %244 = vst [vmem:[#allocation2 + $0xb8] sm:$0xff] 0.0
    %245 = vst [vmem:[#allocation2 + $0xc0] sm:$0xff] 0.0
    %246 = vst [vmem:[#allocation2 + $0xc8] sm:$0xff] 0.0
    %247 = vst [vmem:[#allocation2 + $0xd0] sm:$0xff] 0.0
    %248 = vst [vmem:[#allocation2 + $0xd8] sm:$0xff] 0.0
    %249 = vst [vmem:[#allocation2 + $0x28] sm:$0xff] %v221
    %250 = vst [vmem:[#allocation2 + $0x30] sm:$0xff] %v222
    %251 = vst [vmem:[#allocation2 + $0x38] sm:$0xff] %v223
    %252 = vst [vmem:[#allocation2 + $0x40] sm:$0xff] %v224
    %253 = vst [vmem:[#allocation2 + $0x48] sm:$0xff] %v225
    %254 = vst [vmem:[#allocation2 + $0x50] sm:$0xff] %v226
    %255 = vst [vmem:[#allocation2 + $0x58] sm:$0xff] %v227
    %256 = vst [vmem:[#allocation2 + $0x60] sm:$0xff] %v228
    %257 = vst [vmem:[#allocation2 + $0x68] sm:$0xff] %v229
    %258 = vst [vmem:[#allocation2 + $0x70] sm:$0xff] %v230
    %259 = vst [vmem:[#allocation2 + $0x78] sm:$0xff] %v231
    %260 = vst [vmem:[#allocation2 + $0x80] sm:$0xff] %v232
    %261 = vst [vmem:[#allocation2 + $0x88] sm:$0xff] %v233
    %262 = vst [vmem:[#allocation2 + $0x90] sm:$0xff] %v234
    %263 = vst [vmem:[#allocation2 + $0x98] sm:$0xff] %v235
    %264 = vst [vmem:[#allocation2 + $0xa0] sm:$0xff] %v236
    %265 = vst [vmem:[#allocation2 + $0xa8] sm:$0xff] %v237
    %266 = vst [vmem:[#allocation2 + $0xb0] sm:$0xff] %v238
    %v267 = vld [vmem:[#allocation2 + $0x4] sm:$0xff]
    %v268 = vld [vmem:[#allocation2 + $0xc] sm:$0xff]
    %v269 = vld [vmem:[#allocation2 + $0x14] sm:$0xff]
    %v270 = vld [vmem:[#allocation2 + $0x1c] sm:$0xff]
    %v271 = vld [vmem:[#allocation2 + $0x24] sm:$0xff]
    %v272 = vld [vmem:[#allocation2 + $0x2c] sm:$0xff]
    %v273 = vld [vmem:[#allocation2 + $0x34] sm:$0xff]
    %v274 = vld [vmem:[#allocation2 + $0x3c] sm:$0xff]
    %v275 = vld [vmem:[#allocation2 + $0x44] sm:$0xff]
    %v276 = vld [vmem:[#allocation2 + $0x4c] sm:$0xff]
    %v277 = vld [vmem:[#allocation2 + $0x54] sm:$0xff]
    %v278 = vld [vmem:[#allocation2 + $0x5c] sm:$0xff]
    %v279 = vld [vmem:[#allocation2 + $0x64] sm:$0xff]
    %v280 = vld [vmem:[#allocation2 + $0x6c] sm:$0xff]
    %v281 = vld [vmem:[#allocation2 + $0x74] sm:$0xff]
    %v282 = vld [vmem:[#allocation2 + $0x7c] sm:$0xff]
    %v283 = vld [vmem:[#allocation2 + $0x84] sm:$0xff]
    %v284 = vld [vmem:[#allocation2 + $0x8c] sm:$0xff]
    %v285 = vpack.c.bf16 %v268, %v267
    %v286 = vpack.c.bf16 %v270, %v269
    %v287 = vpack.c.bf16 %v272, %v271
    %v288 = vpack.c.bf16 %v274, %v273
    %v289 = vpack.c.bf16 %v276, %v275
    %v290 = vpack.c.bf16 %v278, %v277
    %v291 = vpack.c.bf16 %v280, %v279
    %v292 = vpack.c.bf16 %v282, %v281
    %v293 = vpack.c.bf16 %v284, %v283
    %v294 = vld [vmem:[#allocation9] sm:$0xf]
    %v295 = vld [vmem:[#allocation9 + $0x4] sm:$0xf]
    %v296 = vld [vmem:[#allocation9 + $0x8] sm:$0xf]
    %v297 = vld [vmem:[#allocation9 + $0xc] sm:$0xf]
    %v298 = vld [vmem:[#allocation9 + $0x10] sm:$0xf]
    %v299 = vld [vmem:[#allocation9 + $0x14] sm:$0xf]
    %v300 = vld [vmem:[#allocation9 + $0x18] sm:$0xf]
    %v301 = vld [vmem:[#allocation9 + $0x1c] sm:$0xf]
    %v302 = vld [vmem:[#allocation9 + $0x20] sm:$0xf]
    %v303 = vld [vmem:[#allocation9 + $0x24] sm:$0xf]
    %v304 = vld [vmem:[#allocation9 + $0x28] sm:$0xf]
    %v305 = vld [vmem:[#allocation9 + $0x2c] sm:$0xf]
    %v306 = vld [vmem:[#allocation9 + $0x30] sm:$0xf]
    %v307 = vld [vmem:[#allocation9 + $0x34] sm:$0xf]
    %v308 = vld [vmem:[#allocation9 + $0x38] sm:$0xf]
    %v309 = vld [vmem:[#allocation9 + $0x3c] sm:$0xf]
    %v310 = vld [vmem:[#allocation2 + $0x10] sm:$0xff]
    %v311 = vld [vmem:[#allocation2 + $0x18] sm:$0xff]
    %v312 = vld [vmem:[#allocation2 + $0x20] sm:$0xff]
    %v313 = vld [vmem:[#allocation2 + $0x28] sm:$0xff]
    %v314 = vld [vmem:[#allocation2 + $0x30] sm:$0xff]
    %v315 = vld [vmem:[#allocation2 + $0x38] sm:$0xff]
    %v316 = vld [vmem:[#allocation2 + $0x40] sm:$0xff]
    %v317 = vld [vmem:[#allocation2 + $0x48] sm:$0xff]
    %v318 = vld [vmem:[#allocation2 + $0x50] sm:$0xff]
    %v319 = vld [vmem:[#allocation2 + $0x58] sm:$0xff]
    %v320 = vld [vmem:[#allocation2 + $0x60] sm:$0xff]
    %v321 = vld [vmem:[#allocation2 + $0x68] sm:$0xff]
    %v322 = vld [vmem:[#allocation2 + $0x70] sm:$0xff]
    %v323 = vld [vmem:[#allocation2 + $0x78] sm:$0xff]
    %v324 = vld [vmem:[#allocation2 + $0x80] sm:$0xff]
    %v325 = vld [vmem:[#allocation2 + $0x88] sm:$0xff]
    %v326 = vld [vmem:[#allocation2 + $0x90] sm:$0xff]
    %v327 = vld [vmem:[#allocation2 + $0x98] sm:$0xff]
    %v328 = vpack.c.bf16 %v311, %v310
    %v329 = vpack.c.bf16 %v313, %v312
    %v330 = vpack.c.bf16 %v315, %v314
    %v331 = vpack.c.bf16 %v317, %v316
    %v332 = vpack.c.bf16 %v319, %v318
    %v333 = vpack.c.bf16 %v321, %v320
    %v334 = vpack.c.bf16 %v323, %v322
    %v335 = vpack.c.bf16 %v325, %v324
    %v336 = vpack.c.bf16 %v327, %v326
    %v337 = vld [vmem:[#allocation9 + $0x40] sm:$0xf]
    %v338 = vld [vmem:[#allocation9 + $0x44] sm:$0xf]
    %v339 = vld [vmem:[#allocation9 + $0x48] sm:$0xf]
    %v340 = vld [vmem:[#allocation9 + $0x4c] sm:$0xf]
    %v341 = vld [vmem:[#allocation9 + $0x50] sm:$0xf]
    %v342 = vld [vmem:[#allocation9 + $0x54] sm:$0xf]
    %v343 = vld [vmem:[#allocation9 + $0x58] sm:$0xf]
    %v344 = vld [vmem:[#allocation9 + $0x5c] sm:$0xf]
    %v345 = vld [vmem:[#allocation9 + $0x60] sm:$0xf]
    %v346 = vld [vmem:[#allocation9 + $0x64] sm:$0xf]
    %v347 = vld [vmem:[#allocation9 + $0x68] sm:$0xf]
    %v348 = vld [vmem:[#allocation9 + $0x6c] sm:$0xf]
    %v349 = vld [vmem:[#allocation9 + $0x70] sm:$0xf]
    %v350 = vld [vmem:[#allocation9 + $0x74] sm:$0xf]
    %v351 = vld [vmem:[#allocation9 + $0x78] sm:$0xf]
    %v352 = vld [vmem:[#allocation9 + $0x7c] sm:$0xf]
    %v369 = vunpack.c.l.b16 %v337
    %v370 = vunpack.c.l.b16 %v338
    %v371 = vunpack.c.l.b16 %v339
    %v372 = vunpack.c.l.b16 %v340
    %v373 = vunpack.c.l.b16 %v341
    %v374 = vunpack.c.l.b16 %v342
    %v375 = vunpack.c.l.b16 %v343
    %v376 = vunpack.c.l.b16 %v344
    %v377 = vunpack.c.l.b16 %v345
    %v378 = vunpack.c.l.b16 %v346
    %v379 = vunpack.c.l.b16 %v347
    %v380 = vunpack.c.l.b16 %v348
    %v381 = vunpack.c.l.b16 %v349
    %v382 = vunpack.c.l.b16 %v350
    %v383 = vunpack.c.l.b16 %v351
    %v384 = vunpack.c.l.b16 %v352
    %v385 = vpack.c.b16 %v370, %v369
    %v386 = vpack.c.b16 %v372, %v371
    %v387 = vpack.c.b16 %v374, %v373
    %v388 = vpack.c.b16 %v376, %v375
    %v389 = vpack.c.b16 %v378, %v377
    %v390 = vpack.c.b16 %v380, %v379
    %v391 = vpack.c.b16 %v382, %v381
    %v392 = vpack.c.b16 %v384, %v383
    %401 = vmatprep.subr.bf16.mxu0 0
    %402 = vmatpush1.bf16.msra.mxu0 %v385
    %403 = vmatprep.subr.bf16.mxu0 0
    %404 = vmatpush1.bf16.msra.mxu0 %v386
    %405 = vmatprep.subr.bf16.mxu0 0
    %406 = vmatpush1.bf16.msra.mxu0 %v387
    %407 = vmatprep.subr.bf16.mxu0 0
    %408 = vmatpush1.bf16.msra.mxu0 %v388
    %409 = vmatprep.subr.bf16.mxu0 0
    %410 = vmatpush1.bf16.msra.mxu0 %v389
    %411 = vmatprep.subr.bf16.mxu0 0
    %412 = vmatpush1.bf16.msra.mxu0 %v390
    %413 = vmatprep.subr.bf16.mxu0 0
    %414 = vmatpush1.bf16.msra.mxu0 %v391
    %415 = vmatprep.subr.bf16.mxu0 0
    %416 = vmatpush1.bf16.msra.mxu0 %v392
    %417 = vmatprep.subr.bf16.mxu0 0
    %418 = vmatpush1.bf16.msra.mxu0 0
    %419 = vmatprep.subr.bf16.mxu0 0
    %420 = vmatpush1.bf16.msra.mxu0 0
    %421 = vmatprep.subr.bf16.mxu0 0
    %422 = vmatpush1.bf16.msra.mxu0 0
    %423 = vmatprep.subr.bf16.mxu0 0
    %424 = vmatpush1.bf16.msra.mxu0 0
    %425 = vmatprep.subr.bf16.mxu0 0
    %426 = vmatpush1.bf16.msra.mxu0 0
    %427 = vmatprep.subr.bf16.mxu0 0
    %428 = vmatpush1.bf16.msra.mxu0 0
    %429 = vmatprep.subr.bf16.mxu0 0
    %430 = vmatpush1.bf16.msra.mxu0 0
    %431 = vmatprep.subr.bf16.mxu0 0
    %432 = vmatpush1.bf16.msra.mxu0 0
    %433 = vmatprep.mubr.bf16.mxu0 0
    %434 = vmatmul.mubr.bf16.gmra.mrb[0].mxu0 %v328
    %v435 = vpop.f32.mrb[0].mxu0
    %v436 = vadd.f32 0.0, %v435
    %v437 = vpop.f32.mrb[0].mxu0
    %v438 = vpop.f32.mrb[0].mxu0
    %v439 = vadd.f32 0.0, %v438
    %v440 = vpop.f32.mrb[0].mxu0
    %441 = vmatprep.mubr.bf16.mxu0 0
    %442 = vmatmul.mubr.bf16.gmra.mrb[0].mxu0 %v329
    %v443 = vpop.f32.mrb[0].mxu0
    %v444 = vadd.f32 0.0, %v443
    %v445 = vpop.f32.mrb[0].mxu0
    %v446 = vpop.f32.mrb[0].mxu0
    %v447 = vadd.f32 0.0, %v446
    %v448 = vpop.f32.mrb[0].mxu0
    %449 = vmatprep.mubr.bf16.mxu0 0
    %450 = vmatmul.mubr.bf16.gmra.mrb[0].mxu0 %v330
    %v451 = vpop.f32.mrb[0].mxu0
    %v452 = vadd.f32 0.0, %v451
    %v453 = vpop.f32.mrb[0].mxu0
    %v454 = vpop.f32.mrb[0].mxu0
    %v455 = vadd.f32 0.0, %v454
    %v456 = vpop.f32.mrb[0].mxu0
    %457 = vmatprep.mubr.bf16.mxu0 0
    %458 = vmatmul.mubr.bf16.gmra.mrb[0].mxu0 %v331
    %v459 = vpop.f32.mrb[0].mxu0
    %v460 = vadd.f32 0.0, %v459
    %v461 = vpop.f32.mrb[0].mxu0
    %v462 = vpop.f32.mrb[0].mxu0
    %v463 = vadd.f32 0.0, %v462
    %v464 = vpop.f32.mrb[0].mxu0
    %465 = vmatprep.mubr.bf16.mxu0 0
    %466 = vmatmul.mubr.bf16.gmra.mrb[0].mxu0 %v332
    %v467 = vpop.f32.mrb[0].mxu0
    %v468 = vadd.f32 0.0, %v467
    %v469 = vpop.f32.mrb[0].mxu0
    %v470 = vpop.f32.mrb[0].mxu0
    %v471 = vadd.f32 0.0, %v470
    %v472 = vpop.f32.mrb[0].mxu0
    %473 = vmatprep.mubr.bf16.mxu0 0
    %474 = vmatmul.mubr.bf16.gmra.mrb[0].mxu0 %v333
    %v475 = vpop.f32.mrb[0].mxu0
    %v476 = vadd.f32 0.0, %v475
    %v477 = vpop.f32.mrb[0].mxu0
    %v478 = vpop.f32.mrb[0].mxu0
    %v479 = vadd.f32 0.0, %v478
    %v480 = vpop.f32.mrb[0].mxu0
    %481 = vmatprep.mubr.bf16.mxu0 0
    %482 = vmatmul.mubr.bf16.gmra.mrb[0].mxu0 %v334
    %v483 = vpop.f32.mrb[0].mxu0
    %v484 = vadd.f32 0.0, %v483
    %v485 = vpop.f32.mrb[0].mxu0
    %v486 = vpop.f32.mrb[0].mxu0
    %v487 = vadd.f32 0.0, %v486
    %v488 = vpop.f32.mrb[0].mxu0
    %489 = vmatprep.mubr.bf16.mxu0 0
    %490 = vmatmul.mubr.bf16.gmra.mrb[0].mxu0 %v335
    %v491 = vpop.f32.mrb[0].mxu0
    %v492 = vadd.f32 0.0, %v491
    %v493 = vpop.f32.mrb[0].mxu0
    %v494 = vpop.f32.mrb[0].mxu0
    %v495 = vadd.f32 0.0, %v494
    %v496 = vpop.f32.mrb[0].mxu0
    %497 = vmatprep.mubr.bf16.mxu0 0
    %498 = vmatmul.mubr.bf16.gmra.mrb[0].mxu0 %v336
    %v499 = vpop.f32.mrb[0].mxu0
    %v500 = vadd.f32 0.0, %v499
    %v501 = vpop.f32.mrb[0].mxu0
    %v502 = vpop.f32.mrb[0].mxu0
    %v503 = vadd.f32 0.0, %v502
    %v504 = vpop.f32.mrb[0].mxu0
    %505 = vdwg.mxu0
    %v522 = vunpack.c.l.b16 %v294
    %v523 = vunpack.c.l.b16 %v295
    %v524 = vunpack.c.l.b16 %v296
    %v525 = vunpack.c.l.b16 %v297
    %v526 = vunpack.c.l.b16 %v298
    %v527 = vunpack.c.l.b16 %v299
    %v528 = vunpack.c.l.b16 %v300
    %v529 = vunpack.c.l.b16 %v301
    %v530 = vunpack.c.l.b16 %v302
    %v531 = vunpack.c.l.b16 %v303
    %v532 = vunpack.c.l.b16 %v304
    %v533 = vunpack.c.l.b16 %v305
    %v534 = vunpack.c.l.b16 %v306
    %v535 = vunpack.c.l.b16 %v307
    %v536 = vunpack.c.l.b16 %v308
    %v537 = vunpack.c.l.b16 %v309
    %v538 = vpack.c.b16 %v523, %v522
    %v539 = vpack.c.b16 %v525, %v524
    %v540 = vpack.c.b16 %v527, %v526
    %v541 = vpack.c.b16 %v529, %v528
    %v542 = vpack.c.b16 %v531, %v530
    %v543 = vpack.c.b16 %v533, %v532
    %v544 = vpack.c.b16 %v535, %v534
    %v545 = vpack.c.b16 %v537, %v536
    %554 = vmatprep.subr.bf16.mxu0 0
    %555 = vmatpush1.bf16.msra.mxu0 %v538
    %556 = vmatprep.subr.bf16.mxu0 0
    %557 = vmatpush1.bf16.msra.mxu0 %v539
    %558 = vmatprep.subr.bf16.mxu0 0
    %559 = vmatpush1.bf16.msra.mxu0 %v540
    %560 = vmatprep.subr.bf16.mxu0 0
    %561 = vmatpush1.bf16.msra.mxu0 %v541
    %562 = vmatprep.subr.bf16.mxu0 0
    %563 = vmatpush1.bf16.msra.mxu0 %v542
    %564 = vmatprep.subr.bf16.mxu0 0
    %565 = vmatpush1.bf16.msra.mxu0 %v543
    %566 = vmatprep.subr.bf16.mxu0 0
    %567 = vmatpush1.bf16.msra.mxu0 %v544
    %568 = vmatprep.subr.bf16.mxu0 0
    %569 = vmatpush1.bf16.msra.mxu0 %v545
    %570 = vmatprep.subr.bf16.mxu0 0
    %571 = vmatpush1.bf16.msra.mxu0 0
    %572 = vmatprep.subr.bf16.mxu0 0
    %573 = vmatpush1.bf16.msra.mxu0 0
    %574 = vmatprep.subr.bf16.mxu0 0
    %575 = vmatpush1.bf16.msra.mxu0 0
    %576 = vmatprep.subr.bf16.mxu0 0
    %577 = vmatpush1.bf16.msra.mxu0 0
    %578 = vmatprep.subr.bf16.mxu0 0
    %579 = vmatpush1.bf16.msra.mxu0 0
    %580 = vmatprep.subr.bf16.mxu0 0
    %581 = vmatpush1.bf16.msra.mxu0 0
    %582 = vmatprep.subr.bf16.mxu0 0
    %583 = vmatpush1.bf16.msra.mxu0 0
    %584 = vmatprep.subr.bf16.mxu0 0
    %585 = vmatpush1.bf16.msra.mxu0 0
    %586 = vmatprep.mubr.bf16.mxu0 0
    %587 = vmatmul.mubr.bf16.gmra.mrb[0].mxu0 %v285
    %v588 = vpop.f32.mrb[0].mxu0
    %v589 = vadd.f32 %v436, %v588
    %v590 = vpop.f32.mrb[0].mxu0
    %v591 = vpop.f32.mrb[0].mxu0
    %v592 = vadd.f32 %v439, %v591
    %v593 = vpop.f32.mrb[0].mxu0
    %594 = vmatprep.mubr.bf16.mxu0 0
    %595 = vmatmul.mubr.bf16.gmra.mrb[0].mxu0 %v286
    %v596 = vpop.f32.mrb[0].mxu0
    %v597 = vadd.f32 %v444, %v596
    %v598 = vpop.f32.mrb[0].mxu0
    %v599 = vpop.f32.mrb[0].mxu0
    %v600 = vadd.f32 %v447, %v599
    %v601 = vpop.f32.mrb[0].mxu0
    %602 = vmatprep.mubr.bf16.mxu0 0
    %603 = vmatmul.mubr.bf16.gmra.mrb[0].mxu0 %v287
    %v604 = vpop.f32.mrb[0].mxu0
    %v605 = vadd.f32 %v452, %v604
    %v606 = vpop.f32.mrb[0].mxu0
    %v607 = vpop.f32.mrb[0].mxu0
    %v608 = vadd.f32 %v455, %v607
    %v609 = vpop.f32.mrb[0].mxu0
    %610 = vmatprep.mubr.bf16.mxu0 0
    %611 = vmatmul.mubr.bf16.gmra.mrb[0].mxu0 %v288
    %v612 = vpop.f32.mrb[0].mxu0
    %v613 = vadd.f32 %v460, %v612
    %v614 = vpop.f32.mrb[0].mxu0
    %v615 = vpop.f32.mrb[0].mxu0
    %v616 = vadd.f32 %v463, %v615
    %v617 = vpop.f32.mrb[0].mxu0
    %618 = vmatprep.mubr.bf16.mxu0 0
    %619 = vmatmul.mubr.bf16.gmra.mrb[0].mxu0 %v289
    %v620 = vpop.f32.mrb[0].mxu0
    %v621 = vadd.f32 %v468, %v620
    %v622 = vpop.f32.mrb[0].mxu0
    %v623 = vpop.f32.mrb[0].mxu0
    %v624 = vadd.f32 %v471, %v623
    %v625 = vpop.f32.mrb[0].mxu0
    %626 = vmatprep.mubr.bf16.mxu0 0
    %627 = vmatmul.mubr.bf16.gmra.mrb[0].mxu0 %v290
    %v628 = vpop.f32.mrb[0].mxu0
    %v629 = vadd.f32 %v476, %v628
    %v630 = vpop.f32.mrb[0].mxu0
    %v631 = vpop.f32.mrb[0].mxu0
    %v632 = vadd.f32 %v479, %v631
    %v633 = vpop.f32.mrb[0].mxu0
    %634 = vmatprep.mubr.bf16.mxu0 0
    %635 = vmatmul.mubr.bf16.gmra.mrb[0].mxu0 %v291
    %v636 = vpop.f32.mrb[0].mxu0
    %v637 = vadd.f32 %v484, %v636
    %v638 = vpop.f32.mrb[0].mxu0
    %v639 = vpop.f32.mrb[0].mxu0
    %v640 = vadd.f32 %v487, %v639
    %v641 = vpop.f32.mrb[0].mxu0
    %642 = vmatprep.mubr.bf16.mxu0 0
    %643 = vmatmul.mubr.bf16.gmra.mrb[0].mxu0 %v292
    %v644 = vpop.f32.mrb[0].mxu0
    %v645 = vadd.f32 %v492, %v644
    %v646 = vpop.f32.mrb[0].mxu0
    %v647 = vpop.f32.mrb[0].mxu0
    %v648 = vadd.f32 %v495, %v647
    %v649 = vpop.f32.mrb[0].mxu0
    %650 = vmatprep.mubr.bf16.mxu0 0
    %651 = vmatmul.mubr.bf16.gmra.mrb[0].mxu0 %v293
    %v652 = vpop.f32.mrb[0].mxu0
    %v653 = vadd.f32 %v500, %v652
    %v654 = vpop.f32.mrb[0].mxu0
    %v655 = vpop.f32.mrb[0].mxu0
    %v656 = vadd.f32 %v503, %v655
    %v657 = vpop.f32.mrb[0].mxu0
    %658 = vdwg.mxu0
    %v659 = vld [vmem:[#allocation2 + $0x1c] sm:$0xff]
    %v660 = vld [vmem:[#allocation2 + $0x24] sm:$0xff]
    %v661 = vld [vmem:[#allocation2 + $0x2c] sm:$0xff]
    %v662 = vld [vmem:[#allocation2 + $0x34] sm:$0xff]
    %v663 = vld [vmem:[#allocation2 + $0x3c] sm:$0xff]
    %v664 = vld [vmem:[#allocation2 + $0x44] sm:$0xff]
    %v665 = vld [vmem:[#allocation2 + $0x4c] sm:$0xff]
    %v666 = vld [vmem:[#allocation2 + $0x54] sm:$0xff]
    %v667 = vld [vmem:[#allocation2 + $0x5c] sm:$0xff]
    %v668 = vld [vmem:[#allocation2 + $0x64] sm:$0xff]
    %v669 = vld [vmem:[#allocation2 + $0x6c] sm:$0xff]
    %v670 = vld [vmem:[#allocation2 + $0x74] sm:$0xff]
    %v671 = vld [vmem:[#allocation2 + $0x7c] sm:$0xff]
    %v672 = vld [vmem:[#allocation2 + $0x84] sm:$0xff]
    %v673 = vld [vmem:[#allocation2 + $0x8c] sm:$0xff]
    %v674 = vld [vmem:[#allocation2 + $0x94] sm:$0xff]
    %v675 = vld [vmem:[#allocation2 + $0x9c] sm:$0xff]
    %v676 = vld [vmem:[#allocation2 + $0xa4] sm:$0xff]
    %v677 = vpack.c.bf16 %v660, %v659
    %v678 = vpack.c.bf16 %v662, %v661
    %v679 = vpack.c.bf16 %v664, %v663
    %v680 = vpack.c.bf16 %v666, %v665
    %v681 = vpack.c.bf16 %v668, %v667
    %v682 = vpack.c.bf16 %v670, %v669
    %v683 = vpack.c.bf16 %v672, %v671
    %v684 = vpack.c.bf16 %v674, %v673
    %v685 = vpack.c.bf16 %v676, %v675
    %v686 = vld [vmem:[#allocation9 + $0x80] sm:$0xf]
    %v687 = vld [vmem:[#allocation9 + $0x84] sm:$0xf]
    %v688 = vld [vmem:[#allocation9 + $0x88] sm:$0xf]
    %v689 = vld [vmem:[#allocation9 + $0x8c] sm:$0xf]
    %v690 = vld [vmem:[#allocation9 + $0x90] sm:$0xf]
    %v691 = vld [vmem:[#allocation9 + $0x94] sm:$0xf]
    %v692 = vld [vmem:[#allocation9 + $0x98] sm:$0xf]
    %v693 = vld [vmem:[#allocation9 + $0x9c] sm:$0xf]
    %v694 = vld [vmem:[#allocation9 + $0xa0] sm:$0xf]
    %v695 = vld [vmem:[#allocation9 + $0xa4] sm:$0xf]
    %v696 = vld [vmem:[#allocation9 + $0xa8] sm:$0xf]
    %v697 = vld [vmem:[#allocation9 + $0xac] sm:$0xf]
    %v698 = vld [vmem:[#allocation9 + $0xb0] sm:$0xf]
    %v699 = vld [vmem:[#allocation9 + $0xb4] sm:$0xf]
    %v700 = vld [vmem:[#allocation9 + $0xb8] sm:$0xf]
    %v701 = vld [vmem:[#allocation9 + $0xbc] sm:$0xf]
    %v718 = vunpack.c.l.b16 %v686
    %v719 = vunpack.c.l.b16 %v687
    %v720 = vunpack.c.l.b16 %v688
    %v721 = vunpack.c.l.b16 %v689
    %v722 = vunpack.c.l.b16 %v690
    %v723 = vunpack.c.l.b16 %v691
    %v724 = vunpack.c.l.b16 %v692
    %v725 = vunpack.c.l.b16 %v693
    %v726 = vunpack.c.l.b16 %v694
    %v727 = vunpack.c.l.b16 %v695
    %v728 = vunpack.c.l.b16 %v696
    %v729 = vunpack.c.l.b16 %v697
    %v730 = vunpack.c.l.b16 %v698
    %v731 = vunpack.c.l.b16 %v699
    %v732 = vunpack.c.l.b16 %v700
    %v733 = vunpack.c.l.b16 %v701
    %v734 = vpack.c.b16 %v719, %v718
    %v735 = vpack.c.b16 %v721, %v720
    %v736 = vpack.c.b16 %v723, %v722
    %v737 = vpack.c.b16 %v725, %v724
    %v738 = vpack.c.b16 %v727, %v726
    %v739 = vpack.c.b16 %v729, %v728
    %v740 = vpack.c.b16 %v731, %v730
    %v741 = vpack.c.b16 %v733, %v732
    %750 = vmatprep.subr.bf16.mxu0 0
    %751 = vmatpush1.bf16.msra.mxu0 %v734
    %752 = vmatprep.subr.bf16.mxu0 0
    %753 = vmatpush1.bf16.msra.mxu0 %v735
    %754 = vmatprep.subr.bf16.mxu0 0
    %755 = vmatpush1.bf16.msra.mxu0 %v736
    %756 = vmatprep.subr.bf16.mxu0 0
    %757 = vmatpush1.bf16.msra.mxu0 %v737
    %758 = vmatprep.subr.bf16.mxu0 0
    %759 = vmatpush1.bf16.msra.mxu0 %v738
    %760 = vmatprep.subr.bf16.mxu0 0
    %761 = vmatpush1.bf16.msra.mxu0 %v739
    %762 = vmatprep.subr.bf16.mxu0 0
    %763 = vmatpush1.bf16.msra.mxu0 %v740
    %764 = vmatprep.subr.bf16.mxu0 0
    %765 = vmatpush1.bf16.msra.mxu0 %v741
    %766 = vmatprep.subr.bf16.mxu0 0
    %767 = vmatpush1.bf16.msra.mxu0 0
    %768 = vmatprep.subr.bf16.mxu0 0
    %769 = vmatpush1.bf16.msra.mxu0 0
    %770 = vmatprep.subr.bf16.mxu0 0
    %771 = vmatpush1.bf16.msra.mxu0 0
    %772 = vmatprep.subr.bf16.mxu0 0
    %773 = vmatpush1.bf16.msra.mxu0 0
    %774 = vmatprep.subr.bf16.mxu0 0
    %775 = vmatpush1.bf16.msra.mxu0 0
    %776 = vmatprep.subr.bf16.mxu0 0
    %777 = vmatpush1.bf16.msra.mxu0 0
    %778 = vmatprep.subr.bf16.mxu0 0
    %779 = vmatpush1.bf16.msra.mxu0 0
    %780 = vmatprep.subr.bf16.mxu0 0
    %781 = vmatpush1.bf16.msra.mxu0 0
    %782 = vmatprep.mubr.bf16.mxu0 0
    %783 = vmatmul.mubr.bf16.gmra.mrb[0].mxu0 %v677
    %v784 = vpop.f32.mrb[0].mxu0
    %v785 = vadd.f32 0.0, %v784
    %v786 = vpop.f32.mrb[0].mxu0
    %v787 = vpop.f32.mrb[0].mxu0
    %v788 = vadd.f32 0.0, %v787
    %v789 = vpop.f32.mrb[0].mxu0
    %790 = vmatprep.mubr.bf16.mxu0 0
    %791 = vmatmul.mubr.bf16.gmra.mrb[0].mxu0 %v678
    %v792 = vpop.f32.mrb[0].mxu0
    %v793 = vadd.f32 0.0, %v792
    %v794 = vpop.f32.mrb[0].mxu0
    %v795 = vpop.f32.mrb[0].mxu0
    %v796 = vadd.f32 0.0, %v795
    %v797 = vpop.f32.mrb[0].mxu0
    %798 = vmatprep.mubr.bf16.mxu0 0
    %799 = vmatmul.mubr.bf16.gmra.mrb[0].mxu0 %v679
    %v800 = vpop.f32.mrb[0].mxu0
    %v801 = vadd.f32 0.0, %v800
    %v802 = vpop.f32.mrb[0].mxu0
    %v803 = vpop.f32.mrb[0].mxu0
    %v804 = vadd.f32 0.0, %v803
    %v805 = vpop.f32.mrb[0].mxu0
    %806 = vmatprep.mubr.bf16.mxu0 0
    %807 = vmatmul.mubr.bf16.gmra.mrb[0].mxu0 %v680
    %v808 = vpop.f32.mrb[0].mxu0
    %v809 = vadd.f32 0.0, %v808
    %v810 = vpop.f32.mrb[0].mxu0
    %v811 = vpop.f32.mrb[0].mxu0
    %v812 = vadd.f32 0.0, %v811
    %v813 = vpop.f32.mrb[0].mxu0
    %814 = vmatprep.mubr.bf16.mxu0 0
    %815 = vmatmul.mubr.bf16.gmra.mrb[0].mxu0 %v681
    %v816 = vpop.f32.mrb[0].mxu0
    %v817 = vadd.f32 0.0, %v816
    %v818 = vpop.f32.mrb[0].mxu0
    %v819 = vpop.f32.mrb[0].mxu0
    %v820 = vadd.f32 0.0, %v819
    %v821 = vpop.f32.mrb[0].mxu0
    %822 = vmatprep.mubr.bf16.mxu0 0
    %823 = vmatmul.mubr.bf16.gmra.mrb[0].mxu0 %v682
    %v824 = vpop.f32.mrb[0].mxu0
    %v825 = vadd.f32 0.0, %v824
    %v826 = vpop.f32.mrb[0].mxu0
    %v827 = vpop.f32.mrb[0].mxu0
    %v828 = vadd.f32 0.0, %v827
    %v829 = vpop.f32.mrb[0].mxu0
    %830 = vmatprep.mubr.bf16.mxu0 0
    %831 = vmatmul.mubr.bf16.gmra.mrb[0].mxu0 %v683
    %v832 = vpop.f32.mrb[0].mxu0
    %v833 = vadd.f32 0.0, %v832
    %v834 = vpop.f32.mrb[0].mxu0
    %v835 = vpop.f32.mrb[0].mxu0
    %v836 = vadd.f32 0.0, %v835
    %v837 = vpop.f32.mrb[0].mxu0
    %838 = vmatprep.mubr.bf16.mxu0 0
    %839 = vmatmul.mubr.bf16.gmra.mrb[0].mxu0 %v684
    %v840 = vpop.f32.mrb[0].mxu0
    %v841 = vadd.f32 0.0, %v840
    %v842 = vpop.f32.mrb[0].mxu0
    %v843 = vpop.f32.mrb[0].mxu0
    %v844 = vadd.f32 0.0, %v843
    %v845 = vpop.f32.mrb[0].mxu0
    %846 = vmatprep.mubr.bf16.mxu0 0
    %847 = vmatmul.mubr.bf16.gmra.mrb[0].mxu0 %v685
    %v848 = vpop.f32.mrb[0].mxu0
    %v849 = vadd.f32 0.0, %v848
    %v850 = vpop.f32.mrb[0].mxu0
    %v851 = vpop.f32.mrb[0].mxu0
    %v852 = vadd.f32 0.0, %v851
    %v853 = vpop.f32.mrb[0].mxu0
    %854 = vdwg.mxu0
    %v855 = vadd.f32 %v589, %v785
    %v856 = vadd.f32 %v592, %v788
    %v857 = vadd.f32 %v597, %v793
    %v858 = vadd.f32 %v600, %v796
    %v859 = vadd.f32 %v605, %v801
    %v860 = vadd.f32 %v608, %v804
    %v861 = vadd.f32 %v613, %v809
    %v862 = vadd.f32 %v616, %v812
    %v863 = vadd.f32 %v621, %v817
    %v864 = vadd.f32 %v624, %v820
    %v865 = vadd.f32 %v629, %v825
    %v866 = vadd.f32 %v632, %v828
    %v867 = vadd.f32 %v637, %v833
    %v868 = vadd.f32 %v640, %v836
    %v869 = vadd.f32 %v645, %v841
    %v870 = vadd.f32 %v648, %v844
    %v871 = vadd.f32 %v653, %v849
    %v872 = vadd.f32 %v656, %v852
    %v873 = vld [vmem:[#allocation2 + $0x28] sm:$0xff]
    %v874 = vld [vmem:[#allocation2 + $0x30] sm:$0xff]
    %v875 = vld [vmem:[#allocation2 + $0x38] sm:$0xff]
    %v876 = vld [vmem:[#allocation2 + $0x40] sm:$0xff]
    %v877 = vld [vmem:[#allocation2 + $0x48] sm:$0xff]
    %v878 = vld [vmem:[#allocation2 + $0x50] sm:$0xff]
    %v879 = vld [vmem:[#allocation2 + $0x58] sm:$0xff]
    %v880 = vld [vmem:[#allocation2 + $0x60] sm:$0xff]
    %v881 = vld [vmem:[#allocation2 + $0x68] sm:$0xff]
    %v882 = vld [vmem:[#allocation2 + $0x70] sm:$0xff]
    %v883 = vld [vmem:[#allocation2 + $0x78] sm:$0xff]
    %v884 = vld [vmem:[#allocation2 + $0x80] sm:$0xff]
    %v885 = vld [vmem:[#allocation2 + $0x88] sm:$0xff]
    %v886 = vld [vmem:[#allocation2 + $0x90] sm:$0xff]
    %v887 = vld [vmem:[#allocation2 + $0x98] sm:$0xff]
    %v888 = vld [vmem:[#allocation2 + $0xa0] sm:$0xff]
    %v889 = vld [vmem:[#allocation2 + $0xa8] sm:$0xff]
    %v890 = vld [vmem:[#allocation2 + $0xb0] sm:$0xff]
    %v891 = vpack.c.bf16 %v874, %v873
    %v892 = vpack.c.bf16 %v876, %v875
    %v893 = vpack.c.bf16 %v878, %v877
    %v894 = vpack.c.bf16 %v880, %v879
    %v895 = vpack.c.bf16 %v882, %v881
    %v896 = vpack.c.bf16 %v884, %v883
    %v897 = vpack.c.bf16 %v886, %v885
    %v898 = vpack.c.bf16 %v888, %v887
    %v899 = vpack.c.bf16 %v890, %v889
    %v900 = vld [vmem:[#allocation9 + $0xc0] sm:$0xf]
    %v901 = vld [vmem:[#allocation9 + $0xc4] sm:$0xf]
    %v902 = vld [vmem:[#allocation9 + $0xc8] sm:$0xf]
    %v903 = vld [vmem:[#allocation9 + $0xcc] sm:$0xf]
    %v904 = vld [vmem:[#allocation9 + $0xd0] sm:$0xf]
    %v905 = vld [vmem:[#allocation9 + $0xd4] sm:$0xf]
    %v906 = vld [vmem:[#allocation9 + $0xd8] sm:$0xf]
    %v907 = vld [vmem:[#allocation9 + $0xdc] sm:$0xf]
    %v908 = vld [vmem:[#allocation9 + $0xe0] sm:$0xf]
    %v909 = vld [vmem:[#allocation9 + $0xe4] sm:$0xf]
    %v910 = vld [vmem:[#allocation9 + $0xe8] sm:$0xf]
    %v911 = vld [vmem:[#allocation9 + $0xec] sm:$0xf]
    %v912 = vld [vmem:[#allocation9 + $0xf0] sm:$0xf]
    %v913 = vld [vmem:[#allocation9 + $0xf4] sm:$0xf]
    %v914 = vld [vmem:[#allocation9 + $0xf8] sm:$0xf]
    %v915 = vld [vmem:[#allocation9 + $0xfc] sm:$0xf]
    %v932 = vunpack.c.l.b16 %v900
    %v933 = vunpack.c.l.b16 %v901
    %v934 = vunpack.c.l.b16 %v902
    %v935 = vunpack.c.l.b16 %v903
    %v936 = vunpack.c.l.b16 %v904
    %v937 = vunpack.c.l.b16 %v905
    %v938 = vunpack.c.l.b16 %v906
    %v939 = vunpack.c.l.b16 %v907
    %v940 = vunpack.c.l.b16 %v908
    %v941 = vunpack.c.l.b16 %v909
    %v942 = vunpack.c.l.b16 %v910
    %v943 = vunpack.c.l.b16 %v911
    %v944 = vunpack.c.l.b16 %v912
    %v945 = vunpack.c.l.b16 %v913
    %v946 = vunpack.c.l.b16 %v914
    %v947 = vunpack.c.l.b16 %v915
    %v948 = vpack.c.b16 %v933, %v932
    %v949 = vpack.c.b16 %v935, %v934
    %v950 = vpack.c.b16 %v937, %v936
    %v951 = vpack.c.b16 %v939, %v938
    %v952 = vpack.c.b16 %v941, %v940
    %v953 = vpack.c.b16 %v943, %v942
    %v954 = vpack.c.b16 %v945, %v944
    %v955 = vpack.c.b16 %v947, %v946
    %964 = vmatprep.subr.bf16.mxu0 0
    %965 = vmatpush1.bf16.msra.mxu0 %v948
    %966 = vmatprep.subr.bf16.mxu0 0
    %967 = vmatpush1.bf16.msra.mxu0 %v949
    %968 = vmatprep.subr.bf16.mxu0 0
    %969 = vmatpush1.bf16.msra.mxu0 %v950
    %970 = vmatprep.subr.bf16.mxu0 0
    %971 = vmatpush1.bf16.msra.mxu0 %v951
    %972 = vmatprep.subr.bf16.mxu0 0
    %973 = vmatpush1.bf16.msra.mxu0 %v952
    %974 = vmatprep.subr.bf16.mxu0 0
    %975 = vmatpush1.bf16.msra.mxu0 %v953
    %976 = vmatprep.subr.bf16.mxu0 0
    %977 = vmatpush1.bf16.msra.mxu0 %v954
    %978 = vmatprep.subr.bf16.mxu0 0
    %979 = vmatpush1.bf16.msra.mxu0 %v955
    %980 = vmatprep.subr.bf16.mxu0 0
    %981 = vmatpush1.bf16.msra.mxu0 0
    %982 = vmatprep.subr.bf16.mxu0 0
    %983 = vmatpush1.bf16.msra.mxu0 0
    %984 = vmatprep.subr.bf16.mxu0 0
    %985 = vmatpush1.bf16.msra.mxu0 0
    %986 = vmatprep.subr.bf16.mxu0 0
    %987 = vmatpush1.bf16.msra.mxu0 0
    %988 = vmatprep.subr.bf16.mxu0 0
    %989 = vmatpush1.bf16.msra.mxu0 0
    %990 = vmatprep.subr.bf16.mxu0 0
    %991 = vmatpush1.bf16.msra.mxu0 0
    %992 = vmatprep.subr.bf16.mxu0 0
    %993 = vmatpush1.bf16.msra.mxu0 0
    %994 = vmatprep.subr.bf16.mxu0 0
    %995 = vmatpush1.bf16.msra.mxu0 0
    %996 = vmatprep.mubr.bf16.mxu0 0
    %997 = vmatmul.mubr.bf16.gmra.mrb[0].mxu0 %v891
    %v998 = vpop.f32.mrb[0].mxu0
    %v999 = vadd.f32 0.0, %v998
    %v1000 = vpop.f32.mrb[0].mxu0
    %v1001 = vpop.f32.mrb[0].mxu0
    %v1002 = vadd.f32 0.0, %v1001
    %v1003 = vpop.f32.mrb[0].mxu0
    %1004 = vmatprep.mubr.bf16.mxu0 0
    %1005 = vmatmul.mubr.bf16.gmra.mrb[0].mxu0 %v892
    %v1006 = vpop.f32.mrb[0].mxu0
    %v1007 = vadd.f32 0.0, %v1006
    %v1008 = vpop.f32.mrb[0].mxu0
    %v1009 = vpop.f32.mrb[0].mxu0
    %v1010 = vadd.f32 0.0, %v1009
    %v1011 = vpop.f32.mrb[0].mxu0
    %1012 = vmatprep.mubr.bf16.mxu0 0
    %1013 = vmatmul.mubr.bf16.gmra.mrb[0].mxu0 %v893
    %v1014 = vpop.f32.mrb[0].mxu0
    %v1015 = vadd.f32 0.0, %v1014
    %v1016 = vpop.f32.mrb[0].mxu0
    %v1017 = vpop.f32.mrb[0].mxu0
    %v1018 = vadd.f32 0.0, %v1017
    %v1019 = vpop.f32.mrb[0].mxu0
    %1020 = vmatprep.mubr.bf16.mxu0 0
    %1021 = vmatmul.mubr.bf16.gmra.mrb[0].mxu0 %v894
    %v1022 = vpop.f32.mrb[0].mxu0
    %v1023 = vadd.f32 0.0, %v1022
    %v1024 = vpop.f32.mrb[0].mxu0
    %v1025 = vpop.f32.mrb[0].mxu0
    %v1026 = vadd.f32 0.0, %v1025
    %v1027 = vpop.f32.mrb[0].mxu0
    %1028 = vmatprep.mubr.bf16.mxu0 0
    %1029 = vmatmul.mubr.bf16.gmra.mrb[0].mxu0 %v895
    %v1030 = vpop.f32.mrb[0].mxu0
    %v1031 = vadd.f32 0.0, %v1030
    %v1032 = vpop.f32.mrb[0].mxu0
    %v1033 = vpop.f32.mrb[0].mxu0
    %v1034 = vadd.f32 0.0, %v1033
    %v1035 = vpop.f32.mrb[0].mxu0
    %1036 = vmatprep.mubr.bf16.mxu0 0
    %1037 = vmatmul.mubr.bf16.gmra.mrb[0].mxu0 %v896
    %v1038 = vpop.f32.mrb[0].mxu0
    %v1039 = vadd.f32 0.0, %v1038
    %v1040 = vpop.f32.mrb[0].mxu0
    %v1041 = vpop.f32.mrb[0].mxu0
    %v1042 = vadd.f32 0.0, %v1041
    %v1043 = vpop.f32.mrb[0].mxu0
    %1044 = vmatprep.mubr.bf16.mxu0 0
    %1045 = vmatmul.mubr.bf16.gmra.mrb[0].mxu0 %v897
    %v1046 = vpop.f32.mrb[0].mxu0
    %v1047 = vadd.f32 0.0, %v1046
    %v1048 = vpop.f32.mrb[0].mxu0
    %v1049 = vpop.f32.mrb[0].mxu0
    %v1050 = vadd.f32 0.0, %v1049
    %v1051 = vpop.f32.mrb[0].mxu0
    %1052 = vmatprep.mubr.bf16.mxu0 0
    %1053 = vmatmul.mubr.bf16.gmra.mrb[0].mxu0 %v898
    %v1054 = vpop.f32.mrb[0].mxu0
    %v1055 = vadd.f32 0.0, %v1054
    %v1056 = vpop.f32.mrb[0].mxu0
    %v1057 = vpop.f32.mrb[0].mxu0
    %v1058 = vadd.f32 0.0, %v1057
    %v1059 = vpop.f32.mrb[0].mxu0
    %1060 = vmatprep.mubr.bf16.mxu0 0
    %1061 = vmatmul.mubr.bf16.gmra.mrb[0].mxu0 %v899
    %v1062 = vpop.f32.mrb[0].mxu0
    %v1063 = vadd.f32 0.0, %v1062
    %v1064 = vpop.f32.mrb[0].mxu0
    %v1065 = vpop.f32.mrb[0].mxu0
    %v1066 = vadd.f32 0.0, %v1065
    %v1067 = vpop.f32.mrb[0].mxu0
    %1068 = vdwg.mxu0
    %v1069 = vadd.f32 %v855, %v999
    %v1070 = vadd.f32 %v856, %v1002
    %v1071 = vadd.f32 %v857, %v1007
    %v1072 = vadd.f32 %v858, %v1010
    %v1073 = vadd.f32 %v859, %v1015
    %v1074 = vadd.f32 %v860, %v1018
    %v1075 = vadd.f32 %v861, %v1023
    %v1076 = vadd.f32 %v862, %v1026
    %v1077 = vadd.f32 %v863, %v1031
    %v1078 = vadd.f32 %v864, %v1034
    %v1079 = vadd.f32 %v865, %v1039
    %v1080 = vadd.f32 %v866, %v1042
    %v1081 = vadd.f32 %v867, %v1047
    %v1082 = vadd.f32 %v868, %v1050
    %v1083 = vadd.f32 %v869, %v1055
    %v1084 = vadd.f32 %v870, %v1058
    %v1085 = vadd.f32 %v871, %v1063
    %v1086 = vadd.f32 %v872, %v1066
    %v1087 = vld [vmem:[#allocation2 + $0x34] sm:$0xff]
    %v1088 = vld [vmem:[#allocation2 + $0x3c] sm:$0xff]
    %v1089 = vld [vmem:[#allocation2 + $0x44] sm:$0xff]
    %v1090 = vld [vmem:[#allocation2 + $0x4c] sm:$0xff]
    %v1091 = vld [vmem:[#allocation2 + $0x54] sm:$0xff]
    %v1092 = vld [vmem:[#allocation2 + $0x5c] sm:$0xff]
    %v1093 = vld [vmem:[#allocation2 + $0x64] sm:$0xff]
    %v1094 = vld [vmem:[#allocation2 + $0x6c] sm:$0xff]
    %v1095 = vld [vmem:[#allocation2 + $0x74] sm:$0xff]
    %v1096 = vld [vmem:[#allocation2 + $0x7c] sm:$0xff]
    %v1097 = vld [vmem:[#allocation2 + $0x84] sm:$0xff]
    %v1098 = vld [vmem:[#allocation2 + $0x8c] sm:$0xff]
    %v1099 = vld [vmem:[#allocation2 + $0x94] sm:$0xff]
    %v1100 = vld [vmem:[#allocation2 + $0x9c] sm:$0xff]
    %v1101 = vld [vmem:[#allocation2 + $0xa4] sm:$0xff]
    %v1102 = vld [vmem:[#allocation2 + $0xac] sm:$0xff]
    %v1103 = vld [vmem:[#allocation2 + $0xb4] sm:$0xff]
    %v1104 = vld [vmem:[#allocation2 + $0xbc] sm:$0xff]
    %v1105 = vpack.c.bf16 %v1088, %v1087
    %v1106 = vpack.c.bf16 %v1090, %v1089
    %v1107 = vpack.c.bf16 %v1092, %v1091
    %v1108 = vpack.c.bf16 %v1094, %v1093
    %v1109 = vpack.c.bf16 %v1096, %v1095
    %v1110 = vpack.c.bf16 %v1098, %v1097
    %v1111 = vpack.c.bf16 %v1100, %v1099
    %v1112 = vpack.c.bf16 %v1102, %v1101
    %v1113 = vpack.c.bf16 %v1104, %v1103
    %v1114 = vld [vmem:[#allocation9 + $0x100] sm:$0xf]
    %v1115 = vld [vmem:[#allocation9 + $0x104] sm:$0xf]
    %v1116 = vld [vmem:[#allocation9 + $0x108] sm:$0xf]
    %v1117 = vld [vmem:[#allocation9 + $0x10c] sm:$0xf]
    %v1118 = vld [vmem:[#allocation9 + $0x110] sm:$0xf]
    %v1119 = vld [vmem:[#allocation9 + $0x114] sm:$0xf]
    %v1120 = vld [vmem:[#allocation9 + $0x118] sm:$0xf]
    %v1121 = vld [vmem:[#allocation9 + $0x11c] sm:$0xf]
    %v1122 = vld [vmem:[#allocation9 + $0x120] sm:$0xf]
    %v1123 = vld [vmem:[#allocation9 + $0x124] sm:$0xf]
    %v1124 = vld [vmem:[#allocation9 + $0x128] sm:$0xf]
    %v1125 = vld [vmem:[#allocation9 + $0x12c] sm:$0xf]
    %v1126 = vld [vmem:[#allocation9 + $0x130] sm:$0xf]
    %v1127 = vld [vmem:[#allocation9 + $0x134] sm:$0xf]
    %v1128 = vld [vmem:[#allocation9 + $0x138] sm:$0xf]
    %v1129 = vld [vmem:[#allocation9 + $0x13c] sm:$0xf]
    %v1146 = vunpack.c.l.b16 %v1114
    %v1147 = vunpack.c.l.b16 %v1115
    %v1148 = vunpack.c.l.b16 %v1116
    %v1149 = vunpack.c.l.b16 %v1117
    %v1150 = vunpack.c.l.b16 %v1118
    %v1151 = vunpack.c.l.b16 %v1119
    %v1152 = vunpack.c.l.b16 %v1120
    %v1153 = vunpack.c.l.b16 %v1121
    %v1154 = vunpack.c.l.b16 %v1122
    %v1155 = vunpack.c.l.b16 %v1123
    %v1156 = vunpack.c.l.b16 %v1124
    %v1157 = vunpack.c.l.b16 %v1125
    %v1158 = vunpack.c.l.b16 %v1126
    %v1159 = vunpack.c.l.b16 %v1127
    %v1160 = vunpack.c.l.b16 %v1128
    %v1161 = vunpack.c.l.b16 %v1129
    %v1162 = vpack.c.b16 %v1147, %v1146
    %v1163 = vpack.c.b16 %v1149, %v1148
    %v1164 = vpack.c.b16 %v1151, %v1150
    %v1165 = vpack.c.b16 %v1153, %v1152
    %v1166 = vpack.c.b16 %v1155, %v1154
    %v1167 = vpack.c.b16 %v1157, %v1156
    %v1168 = vpack.c.b16 %v1159, %v1158
    %v1169 = vpack.c.b16 %v1161, %v1160
    %1178 = vmatprep.subr.bf16.mxu0 0
    %1179 = vmatpush1.bf16.msra.mxu0 %v1162
    %1180 = vmatprep.subr.bf16.mxu0 0
    %1181 = vmatpush1.bf16.msra.mxu0 %v1163
    %1182 = vmatprep.subr.bf16.mxu0 0
    %1183 = vmatpush1.bf16.msra.mxu0 %v1164
    %1184 = vmatprep.subr.bf16.mxu0 0
    %1185 = vmatpush1.bf16.msra.mxu0 %v1165
    %1186 = vmatprep.subr.bf16.mxu0 0
    %1187 = vmatpush1.bf16.msra.mxu0 %v1166
    %1188 = vmatprep.subr.bf16.mxu0 0
    %1189 = vmatpush1.bf16.msra.mxu0 %v1167
    %1190 = vmatprep.subr.bf16.mxu0 0
    %1191 = vmatpush1.bf16.msra.mxu0 %v1168
    %1192 = vmatprep.subr.bf16.mxu0 0
    %1193 = vmatpush1.bf16.msra.mxu0 %v1169
    %1194 = vmatprep.subr.bf16.mxu0 0
    %1195 = vmatpush1.bf16.msra.mxu0 0
    %1196 = vmatprep.subr.bf16.mxu0 0
    %1197 = vmatpush1.bf16.msra.mxu0 0
    %1198 = vmatprep.subr.bf16.mxu0 0
    %1199 = vmatpush1.bf16.msra.mxu0 0
    %1200 = vmatprep.subr.bf16.mxu0 0
    %1201 = vmatpush1.bf16.msra.mxu0 0
    %1202 = vmatprep.subr.bf16.mxu0 0
    %1203 = vmatpush1.bf16.msra.mxu0 0
    %1204 = vmatprep.subr.bf16.mxu0 0
    %1205 = vmatpush1.bf16.msra.mxu0 0
    %1206 = vmatprep.subr.bf16.mxu0 0
    %1207 = vmatpush1.bf16.msra.mxu0 0
    %1208 = vmatprep.subr.bf16.mxu0 0
    %1209 = vmatpush1.bf16.msra.mxu0 0
    %1210 = vmatprep.mubr.bf16.mxu0 0
    %1211 = vmatmul.mubr.bf16.gmra.mrb[0].mxu0 %v1105
    %v1212 = vpop.f32.mrb[0].mxu0
    %v1213 = vadd.f32 0.0, %v1212
    %v1214 = vpop.f32.mrb[0].mxu0
    %v1215 = vpop.f32.mrb[0].mxu0
    %v1216 = vadd.f32 0.0, %v1215
    %v1217 = vpop.f32.mrb[0].mxu0
    %1218 = vmatprep.mubr.bf16.mxu0 0
    %1219 = vmatmul.mubr.bf16.gmra.mrb[0].mxu0 %v1106
    %v1220 = vpop.f32.mrb[0].mxu0
    %v1221 = vadd.f32 0.0, %v1220
    %v1222 = vpop.f32.mrb[0].mxu0
    %v1223 = vpop.f32.mrb[0].mxu0
    %v1224 = vadd.f32 0.0, %v1223
    %v1225 = vpop.f32.mrb[0].mxu0
    %1226 = vmatprep.mubr.bf16.mxu0 0
    %1227 = vmatmul.mubr.bf16.gmra.mrb[0].mxu0 %v1107
    %v1228 = vpop.f32.mrb[0].mxu0
    %v1229 = vadd.f32 0.0, %v1228
    %v1230 = vpop.f32.mrb[0].mxu0
    %v1231 = vpop.f32.mrb[0].mxu0
    %v1232 = vadd.f32 0.0, %v1231
    %v1233 = vpop.f32.mrb[0].mxu0
    %1234 = vmatprep.mubr.bf16.mxu0 0
    %1235 = vmatmul.mubr.bf16.gmra.mrb[0].mxu0 %v1108
    %v1236 = vpop.f32.mrb[0].mxu0
    %v1237 = vadd.f32 0.0, %v1236
    %v1238 = vpop.f32.mrb[0].mxu0
    %v1239 = vpop.f32.mrb[0].mxu0
    %v1240 = vadd.f32 0.0, %v1239
    %v1241 = vpop.f32.mrb[0].mxu0
    %1242 = vmatprep.mubr.bf16.mxu0 0
    %1243 = vmatmul.mubr.bf16.gmra.mrb[0].mxu0 %v1109
    %v1244 = vpop.f32.mrb[0].mxu0
    %v1245 = vadd.f32 0.0, %v1244
    %v1246 = vpop.f32.mrb[0].mxu0
    %v1247 = vpop.f32.mrb[0].mxu0
    %v1248 = vadd.f32 0.0, %v1247
    %v1249 = vpop.f32.mrb[0].mxu0
    %1250 = vmatprep.mubr.bf16.mxu0 0
    %1251 = vmatmul.mubr.bf16.gmra.mrb[0].mxu0 %v1110
    %v1252 = vpop.f32.mrb[0].mxu0
    %v1253 = vadd.f32 0.0, %v1252
    %v1254 = vpop.f32.mrb[0].mxu0
    %v1255 = vpop.f32.mrb[0].mxu0
    %v1256 = vadd.f32 0.0, %v1255
    %v1257 = vpop.f32.mrb[0].mxu0
    %1258 = vmatprep.mubr.bf16.mxu0 0
    %1259 = vmatmul.mubr.bf16.gmra.mrb[0].mxu0 %v1111
    %v1260 = vpop.f32.mrb[0].mxu0
    %v1261 = vadd.f32 0.0, %v1260
    %v1262 = vpop.f32.mrb[0].mxu0
    %v1263 = vpop.f32.mrb[0].mxu0
    %v1264 = vadd.f32 0.0, %v1263
    %v1265 = vpop.f32.mrb[0].mxu0
    %1266 = vmatprep.mubr.bf16.mxu0 0
    %1267 = vmatmul.mubr.bf16.gmra.mrb[0].mxu0 %v1112
    %v1268 = vpop.f32.mrb[0].mxu0
    %v1269 = vadd.f32 0.0, %v1268
    %v1270 = vpop.f32.mrb[0].mxu0
    %v1271 = vpop.f32.mrb[0].mxu0
    %v1272 = vadd.f32 0.0, %v1271
    %v1273 = vpop.f32.mrb[0].mxu0
    %1274 = vmatprep.mubr.bf16.mxu0 0
    %1275 = vmatmul.mubr.bf16.gmra.mrb[0].mxu0 %v1113
    %v1276 = vpop.f32.mrb[0].mxu0
    %v1277 = vadd.f32 0.0, %v1276
    %v1278 = vpop.f32.mrb[0].mxu0
    %v1279 = vpop.f32.mrb[0].mxu0
    %v1280 = vadd.f32 0.0, %v1279
    %v1281 = vpop.f32.mrb[0].mxu0
    %1282 = vdwg.mxu0
    %v1283 = vadd.f32 %v1069, %v1213
    %v1284 = vadd.f32 %v1070, %v1216
    %v1285 = vadd.f32 %v1071, %v1221
    %v1286 = vadd.f32 %v1072, %v1224
    %v1287 = vadd.f32 %v1073, %v1229
    %v1288 = vadd.f32 %v1074, %v1232
    %v1289 = vadd.f32 %v1075, %v1237
    %v1290 = vadd.f32 %v1076, %v1240
    %v1291 = vadd.f32 %v1077, %v1245
    %v1292 = vadd.f32 %v1078, %v1248
    %v1293 = vadd.f32 %v1079, %v1253
    %v1294 = vadd.f32 %v1080, %v1256
    %v1295 = vadd.f32 %v1081, %v1261
    %v1296 = vadd.f32 %v1082, %v1264
    %v1297 = vadd.f32 %v1083, %v1269
    %v1298 = vadd.f32 %v1084, %v1272
    %v1299 = vadd.f32 %v1085, %v1277
    %v1300 = vadd.f32 %v1086, %v1280
    %v1301 = vld [vmem:[#allocation2 + $0x40] sm:$0xff]
    %v1302 = vld [vmem:[#allocation2 + $0x48] sm:$0xff]
    %v1303 = vld [vmem:[#allocation2 + $0x50] sm:$0xff]
    %v1304 = vld [vmem:[#allocation2 + $0x58] sm:$0xff]
    %v1305 = vld [vmem:[#allocation2 + $0x60] sm:$0xff]
    %v1306 = vld [vmem:[#allocation2 + $0x68] sm:$0xff]
    %v1307 = vld [vmem:[#allocation2 + $0x70] sm:$0xff]
    %v1308 = vld [vmem:[#allocation2 + $0x78] sm:$0xff]
    %v1309 = vld [vmem:[#allocation2 + $0x80] sm:$0xff]
    %v1310 = vld [vmem:[#allocation2 + $0x88] sm:$0xff]
    %v1311 = vld [vmem:[#allocation2 + $0x90] sm:$0xff]
    %v1312 = vld [vmem:[#allocation2 + $0x98] sm:$0xff]
    %v1313 = vld [vmem:[#allocation2 + $0xa0] sm:$0xff]
    %v1314 = vld [vmem:[#allocation2 + $0xa8] sm:$0xff]
    %v1315 = vld [vmem:[#allocation2 + $0xb0] sm:$0xff]
    %v1316 = vld [vmem:[#allocation2 + $0xb8] sm:$0xff]
    %v1317 = vld [vmem:[#allocation2 + $0xc0] sm:$0xff]
    %v1318 = vld [vmem:[#allocation2 + $0xc8] sm:$0xff]
    %v1319 = vpack.c.bf16 %v1302, %v1301
    %v1320 = vpack.c.bf16 %v1304, %v1303
    %v1321 = vpack.c.bf16 %v1306, %v1305
    %v1322 = vpack.c.bf16 %v1308, %v1307
    %v1323 = vpack.c.bf16 %v1310, %v1309
    %v1324 = vpack.c.bf16 %v1312, %v1311
    %v1325 = vpack.c.bf16 %v1314, %v1313
    %v1326 = vpack.c.bf16 %v1316, %v1315
    %v1327 = vpack.c.bf16 %v1318, %v1317
    %v1328 = vld [vmem:[#allocation9 + $0x140] sm:$0xf]
    %v1329 = vld [vmem:[#allocation9 + $0x144] sm:$0xf]
    %v1330 = vld [vmem:[#allocation9 + $0x148] sm:$0xf]
    %v1331 = vld [vmem:[#allocation9 + $0x14c] sm:$0xf]
    %v1332 = vld [vmem:[#allocation9 + $0x150] sm:$0xf]
    %v1333 = vld [vmem:[#allocation9 + $0x154] sm:$0xf]
    %v1334 = vld [vmem:[#allocation9 + $0x158] sm:$0xf]
    %v1335 = vld [vmem:[#allocation9 + $0x15c] sm:$0xf]
    %v1336 = vld [vmem:[#allocation9 + $0x160] sm:$0xf]
    %v1337 = vld [vmem:[#allocation9 + $0x164] sm:$0xf]
    %v1338 = vld [vmem:[#allocation9 + $0x168] sm:$0xf]
    %v1339 = vld [vmem:[#allocation9 + $0x16c] sm:$0xf]
    %v1340 = vld [vmem:[#allocation9 + $0x170] sm:$0xf]
    %v1341 = vld [vmem:[#allocation9 + $0x174] sm:$0xf]
    %v1342 = vld [vmem:[#allocation9 + $0x178] sm:$0xf]
    %v1343 = vld [vmem:[#allocation9 + $0x17c] sm:$0xf]
    %v1360 = vunpack.c.l.b16 %v1328
    %v1361 = vunpack.c.l.b16 %v1329
    %v1362 = vunpack.c.l.b16 %v1330
    %v1363 = vunpack.c.l.b16 %v1331
    %v1364 = vunpack.c.l.b16 %v1332
    %v1365 = vunpack.c.l.b16 %v1333
    %v1366 = vunpack.c.l.b16 %v1334
    %v1367 = vunpack.c.l.b16 %v1335
    %v1368 = vunpack.c.l.b16 %v1336
    %v1369 = vunpack.c.l.b16 %v1337
    %v1370 = vunpack.c.l.b16 %v1338
    %v1371 = vunpack.c.l.b16 %v1339
    %v1372 = vunpack.c.l.b16 %v1340
    %v1373 = vunpack.c.l.b16 %v1341
    %v1374 = vunpack.c.l.b16 %v1342
    %v1375 = vunpack.c.l.b16 %v1343
    %v1376 = vpack.c.b16 %v1361, %v1360
    %v1377 = vpack.c.b16 %v1363, %v1362
    %v1378 = vpack.c.b16 %v1365, %v1364
    %v1379 = vpack.c.b16 %v1367, %v1366
    %v1380 = vpack.c.b16 %v1369, %v1368
    %v1381 = vpack.c.b16 %v1371, %v1370
    %v1382 = vpack.c.b16 %v1373, %v1372
    %v1383 = vpack.c.b16 %v1375, %v1374
    %1392 = vmatprep.subr.bf16.mxu0 0
    %1393 = vmatpush1.bf16.msra.mxu0 %v1376
    %1394 = vmatprep.subr.bf16.mxu0 0
    %1395 = vmatpush1.bf16.msra.mxu0 %v1377
    %1396 = vmatprep.subr.bf16.mxu0 0
    %1397 = vmatpush1.bf16.msra.mxu0 %v1378
    %1398 = vmatprep.subr.bf16.mxu0 0
    %1399 = vmatpush1.bf16.msra.mxu0 %v1379
    %1400 = vmatprep.subr.bf16.mxu0 0
    %1401 = vmatpush1.bf16.msra.mxu0 %v1380
    %1402 = vmatprep.subr.bf16.mxu0 0
    %1403 = vmatpush1.bf16.msra.mxu0 %v1381
    %1404 = vmatprep.subr.bf16.mxu0 0
    %1405 = vmatpush1.bf16.msra.mxu0 %v1382
    %1406 = vmatprep.subr.bf16.mxu0 0
    %1407 = vmatpush1.bf16.msra.mxu0 %v1383
    %1408 = vmatprep.subr.bf16.mxu0 0
    %1409 = vmatpush1.bf16.msra.mxu0 0
    %1410 = vmatprep.subr.bf16.mxu0 0
    %1411 = vmatpush1.bf16.msra.mxu0 0
    %1412 = vmatprep.subr.bf16.mxu0 0
    %1413 = vmatpush1.bf16.msra.mxu0 0
    %1414 = vmatprep.subr.bf16.mxu0 0
    %1415 = vmatpush1.bf16.msra.mxu0 0
    %1416 = vmatprep.subr.bf16.mxu0 0
    %1417 = vmatpush1.bf16.msra.mxu0 0
    %1418 = vmatprep.subr.bf16.mxu0 0
    %1419 = vmatpush1.bf16.msra.mxu0 0
    %1420 = vmatprep.subr.bf16.mxu0 0
    %1421 = vmatpush1.bf16.msra.mxu0 0
    %1422 = vmatprep.subr.bf16.mxu0 0
    %1423 = vmatpush1.bf16.msra.mxu0 0
    %1424 = vmatprep.mubr.bf16.mxu0 0
    %1425 = vmatmul.mubr.bf16.gmra.mrb[0].mxu0 %v1319
    %v1426 = vpop.f32.mrb[0].mxu0
    %v1427 = vadd.f32 0.0, %v1426
    %v1428 = vpop.f32.mrb[0].mxu0
    %v1429 = vpop.f32.mrb[0].mxu0
    %v1430 = vadd.f32 0.0, %v1429
    %v1431 = vpop.f32.mrb[0].mxu0
    %1432 = vmatprep.mubr.bf16.mxu0 0
    %1433 = vmatmul.mubr.bf16.gmra.mrb[0].mxu0 %v1320
    %v1434 = vpop.f32.mrb[0].mxu0
    %v1435 = vadd.f32 0.0, %v1434
    %v1436 = vpop.f32.mrb[0].mxu0
    %v1437 = vpop.f32.mrb[0].mxu0
    %v1438 = vadd.f32 0.0, %v1437
    %v1439 = vpop.f32.mrb[0].mxu0
    %1440 = vmatprep.mubr.bf16.mxu0 0
    %1441 = vmatmul.mubr.bf16.gmra.mrb[0].mxu0 %v1321
    %v1442 = vpop.f32.mrb[0].mxu0
    %v1443 = vadd.f32 0.0, %v1442
    %v1444 = vpop.f32.mrb[0].mxu0
    %v1445 = vpop.f32.mrb[0].mxu0
    %v1446 = vadd.f32 0.0, %v1445
    %v1447 = vpop.f32.mrb[0].mxu0
    %1448 = vmatprep.mubr.bf16.mxu0 0
    %1449 = vmatmul.mubr.bf16.gmra.mrb[0].mxu0 %v1322
    %v1450 = vpop.f32.mrb[0].mxu0
    %v1451 = vadd.f32 0.0, %v1450
    %v1452 = vpop.f32.mrb[0].mxu0
    %v1453 = vpop.f32.mrb[0].mxu0
    %v1454 = vadd.f32 0.0, %v1453
    %v1455 = vpop.f32.mrb[0].mxu0
    %1456 = vmatprep.mubr.bf16.mxu0 0
    %1457 = vmatmul.mubr.bf16.gmra.mrb[0].mxu0 %v1323
    %v1458 = vpop.f32.mrb[0].mxu0
    %v1459 = vadd.f32 0.0, %v1458
    %v1460 = vpop.f32.mrb[0].mxu0
    %v1461 = vpop.f32.mrb[0].mxu0
    %v1462 = vadd.f32 0.0, %v1461
    %v1463 = vpop.f32.mrb[0].mxu0
    %1464 = vmatprep.mubr.bf16.mxu0 0
    %1465 = vmatmul.mubr.bf16.gmra.mrb[0].mxu0 %v1324
    %v1466 = vpop.f32.mrb[0].mxu0
    %v1467 = vadd.f32 0.0, %v1466
    %v1468 = vpop.f32.mrb[0].mxu0
    %v1469 = vpop.f32.mrb[0].mxu0
    %v1470 = vadd.f32 0.0, %v1469
    %v1471 = vpop.f32.mrb[0].mxu0
    %1472 = vmatprep.mubr.bf16.mxu0 0
    %1473 = vmatmul.mubr.bf16.gmra.mrb[0].mxu0 %v1325
    %v1474 = vpop.f32.mrb[0].mxu0
    %v1475 = vadd.f32 0.0, %v1474
    %v1476 = vpop.f32.mrb[0].mxu0
    %v1477 = vpop.f32.mrb[0].mxu0
    %v1478 = vadd.f32 0.0, %v1477
    %v1479 = vpop.f32.mrb[0].mxu0
    %1480 = vmatprep.mubr.bf16.mxu0 0
    %1481 = vmatmul.mubr.bf16.gmra.mrb[0].mxu0 %v1326
    %v1482 = vpop.f32.mrb[0].mxu0
    %v1483 = vadd.f32 0.0, %v1482
    %v1484 = vpop.f32.mrb[0].mxu0
    %v1485 = vpop.f32.mrb[0].mxu0
    %v1486 = vadd.f32 0.0, %v1485
    %v1487 = vpop.f32.mrb[0].mxu0
    %1488 = vmatprep.mubr.bf16.mxu0 0
    %1489 = vmatmul.mubr.bf16.gmra.mrb[0].mxu0 %v1327
    %v1490 = vpop.f32.mrb[0].mxu0
    %v1491 = vadd.f32 0.0, %v1490
    %v1492 = vpop.f32.mrb[0].mxu0
    %v1493 = vpop.f32.mrb[0].mxu0
    %v1494 = vadd.f32 0.0, %v1493
    %v1495 = vpop.f32.mrb[0].mxu0
    %1496 = vdwg.mxu0
    %v1497 = vadd.f32 %v1283, %v1427
    %v1498 = vadd.f32 %v1284, %v1430
    %v1499 = vadd.f32 %v1285, %v1435
    %v1500 = vadd.f32 %v1286, %v1438
    %v1501 = vadd.f32 %v1287, %v1443
    %v1502 = vadd.f32 %v1288, %v1446
    %v1503 = vadd.f32 %v1289, %v1451
    %v1504 = vadd.f32 %v1290, %v1454
    %v1505 = vadd.f32 %v1291, %v1459
    %v1506 = vadd.f32 %v1292, %v1462
    %v1507 = vadd.f32 %v1293, %v1467
    %v1508 = vadd.f32 %v1294, %v1470
    %v1509 = vadd.f32 %v1295, %v1475
    %v1510 = vadd.f32 %v1296, %v1478
    %v1511 = vadd.f32 %v1297, %v1483
    %v1512 = vadd.f32 %v1298, %v1486
    %v1513 = vadd.f32 %v1299, %v1491
    %v1514 = vadd.f32 %v1300, %v1494
    %v1515 = vld [vmem:[#allocation2 + $0x4c] sm:$0xff]
    %v1516 = vld [vmem:[#allocation2 + $0x54] sm:$0xff]
    %v1517 = vld [vmem:[#allocation2 + $0x5c] sm:$0xff]
    %v1518 = vld [vmem:[#allocation2 + $0x64] sm:$0xff]
    %v1519 = vld [vmem:[#allocation2 + $0x6c] sm:$0xff]
    %v1520 = vld [vmem:[#allocation2 + $0x74] sm:$0xff]
    %v1521 = vld [vmem:[#allocation2 + $0x7c] sm:$0xff]
    %v1522 = vld [vmem:[#allocation2 + $0x84] sm:$0xff]
    %v1523 = vld [vmem:[#allocation2 + $0x8c] sm:$0xff]
    %v1524 = vld [vmem:[#allocation2 + $0x94] sm:$0xff]
    %v1525 = vld [vmem:[#allocation2 + $0x9c] sm:$0xff]
    %v1526 = vld [vmem:[#allocation2 + $0xa4] sm:$0xff]
    %v1527 = vld [vmem:[#allocation2 + $0xac] sm:$0xff]
    %v1528 = vld [vmem:[#allocation2 + $0xb4] sm:$0xff]
    %v1529 = vld [vmem:[#allocation2 + $0xbc] sm:$0xff]
    %v1530 = vld [vmem:[#allocation2 + $0xc4] sm:$0xff]
    %v1531 = vld [vmem:[#allocation2 + $0xcc] sm:$0xff]
    %v1532 = vld [vmem:[#allocation2 + $0xd4] sm:$0xff]
    %v1533 = vpack.c.bf16 %v1516, %v1515
    %v1534 = vpack.c.bf16 %v1518, %v1517
    %v1535 = vpack.c.bf16 %v1520, %v1519
    %v1536 = vpack.c.bf16 %v1522, %v1521
    %v1537 = vpack.c.bf16 %v1524, %v1523
    %v1538 = vpack.c.bf16 %v1526, %v1525
    %v1539 = vpack.c.bf16 %v1528, %v1527
    %v1540 = vpack.c.bf16 %v1530, %v1529
    %v1541 = vpack.c.bf16 %v1532, %v1531
    %v1542 = vld [vmem:[#allocation9 + $0x180] sm:$0xf]
    %v1543 = vld [vmem:[#allocation9 + $0x184] sm:$0xf]
    %v1544 = vld [vmem:[#allocation9 + $0x188] sm:$0xf]
    %v1545 = vld [vmem:[#allocation9 + $0x18c] sm:$0xf]
    %v1546 = vld [vmem:[#allocation9 + $0x190] sm:$0xf]
    %v1547 = vld [vmem:[#allocation9 + $0x194] sm:$0xf]
    %v1548 = vld [vmem:[#allocation9 + $0x198] sm:$0xf]
    %v1549 = vld [vmem:[#allocation9 + $0x19c] sm:$0xf]
    %v1550 = vld [vmem:[#allocation9 + $0x1a0] sm:$0xf]
    %v1551 = vld [vmem:[#allocation9 + $0x1a4] sm:$0xf]
    %v1552 = vld [vmem:[#allocation9 + $0x1a8] sm:$0xf]
    %v1553 = vld [vmem:[#allocation9 + $0x1ac] sm:$0xf]
    %v1554 = vld [vmem:[#allocation9 + $0x1b0] sm:$0xf]
    %v1555 = vld [vmem:[#allocation9 + $0x1b4] sm:$0xf]
    %v1556 = vld [vmem:[#allocation9 + $0x1b8] sm:$0xf]
    %v1557 = vld [vmem:[#allocation9 + $0x1bc] sm:$0xf]
    %v1574 = vunpack.c.l.b16 %v1542
    %v1575 = vunpack.c.l.b16 %v1543
    %v1576 = vunpack.c.l.b16 %v1544
    %v1577 = vunpack.c.l.b16 %v1545
    %v1578 = vunpack.c.l.b16 %v1546
    %v1579 = vunpack.c.l.b16 %v1547
    %v1580 = vunpack.c.l.b16 %v1548
    %v1581 = vunpack.c.l.b16 %v1549
    %v1582 = vunpack.c.l.b16 %v1550
    %v1583 = vunpack.c.l.b16 %v1551
    %v1584 = vunpack.c.l.b16 %v1552
    %v1585 = vunpack.c.l.b16 %v1553
    %v1586 = vunpack.c.l.b16 %v1554
    %v1587 = vunpack.c.l.b16 %v1555
    %v1588 = vunpack.c.l.b16 %v1556
    %v1589 = vunpack.c.l.b16 %v1557
    %v1590 = vpack.c.b16 %v1575, %v1574
    %v1591 = vpack.c.b16 %v1577, %v1576
    %v1592 = vpack.c.b16 %v1579, %v1578
    %v1593 = vpack.c.b16 %v1581, %v1580
    %v1594 = vpack.c.b16 %v1583, %v1582
    %v1595 = vpack.c.b16 %v1585, %v1584
    %v1596 = vpack.c.b16 %v1587, %v1586
    %v1597 = vpack.c.b16 %v1589, %v1588
    %1606 = vmatprep.subr.bf16.mxu0 0
    %1607 = vmatpush1.bf16.msra.mxu0 %v1590
    %1608 = vmatprep.subr.bf16.mxu0 0
    %1609 = vmatpush1.bf16.msra.mxu0 %v1591
    %1610 = vmatprep.subr.bf16.mxu0 0
    %1611 = vmatpush1.bf16.msra.mxu0 %v1592
    %1612 = vmatprep.subr.bf16.mxu0 0
    %1613 = vmatpush1.bf16.msra.mxu0 %v1593
    %1614 = vmatprep.subr.bf16.mxu0 0
    %1615 = vmatpush1.bf16.msra.mxu0 %v1594
    %1616 = vmatprep.subr.bf16.mxu0 0
    %1617 = vmatpush1.bf16.msra.mxu0 %v1595
    %1618 = vmatprep.subr.bf16.mxu0 0
    %1619 = vmatpush1.bf16.msra.mxu0 %v1596
    %1620 = vmatprep.subr.bf16.mxu0 0
    %1621 = vmatpush1.bf16.msra.mxu0 %v1597
    %1622 = vmatprep.subr.bf16.mxu0 0
    %1623 = vmatpush1.bf16.msra.mxu0 0
    %1624 = vmatprep.subr.bf16.mxu0 0
    %1625 = vmatpush1.bf16.msra.mxu0 0
    %1626 = vmatprep.subr.bf16.mxu0 0
    %1627 = vmatpush1.bf16.msra.mxu0 0
    %1628 = vmatprep.subr.bf16.mxu0 0
    %1629 = vmatpush1.bf16.msra.mxu0 0
    %1630 = vmatprep.subr.bf16.mxu0 0
    %1631 = vmatpush1.bf16.msra.mxu0 0
    %1632 = vmatprep.subr.bf16.mxu0 0
    %1633 = vmatpush1.bf16.msra.mxu0 0
    %1634 = vmatprep.subr.bf16.mxu0 0
    %1635 = vmatpush1.bf16.msra.mxu0 0
    %1636 = vmatprep.subr.bf16.mxu0 0
    %1637 = vmatpush1.bf16.msra.mxu0 0
    %1638 = vmatprep.mubr.bf16.mxu0 0
    %1639 = vmatmul.mubr.bf16.gmra.mrb[0].mxu0 %v1533
    %v1640 = vpop.f32.mrb[0].mxu0
    %v1641 = vadd.f32 0.0, %v1640
    %v1642 = vpop.f32.mrb[0].mxu0
    %v1643 = vpop.f32.mrb[0].mxu0
    %v1644 = vadd.f32 0.0, %v1643
    %v1645 = vpop.f32.mrb[0].mxu0
    %1646 = vmatprep.mubr.bf16.mxu0 0
    %1647 = vmatmul.mubr.bf16.gmra.mrb[0].mxu0 %v1534
    %v1648 = vpop.f32.mrb[0].mxu0
    %v1649 = vadd.f32 0.0, %v1648
    %v1650 = vpop.f32.mrb[0].mxu0
    %v1651 = vpop.f32.mrb[0].mxu0
    %v1652 = vadd.f32 0.0, %v1651
    %v1653 = vpop.f32.mrb[0].mxu0
    %1654 = vmatprep.mubr.bf16.mxu0 0
    %1655 = vmatmul.mubr.bf16.gmra.mrb[0].mxu0 %v1535
    %v1656 = vpop.f32.mrb[0].mxu0
    %v1657 = vadd.f32 0.0, %v1656
    %v1658 = vpop.f32.mrb[0].mxu0
    %v1659 = vpop.f32.mrb[0].mxu0
    %v1660 = vadd.f32 0.0, %v1659
    %v1661 = vpop.f32.mrb[0].mxu0
    %1662 = vmatprep.mubr.bf16.mxu0 0
    %1663 = vmatmul.mubr.bf16.gmra.mrb[0].mxu0 %v1536
    %v1664 = vpop.f32.mrb[0].mxu0
    %v1665 = vadd.f32 0.0, %v1664
    %v1666 = vpop.f32.mrb[0].mxu0
    %v1667 = vpop.f32.mrb[0].mxu0
    %v1668 = vadd.f32 0.0, %v1667
    %v1669 = vpop.f32.mrb[0].mxu0
    %1670 = vmatprep.mubr.bf16.mxu0 0
    %1671 = vmatmul.mubr.bf16.gmra.mrb[0].mxu0 %v1537
    %v1672 = vpop.f32.mrb[0].mxu0
    %v1673 = vadd.f32 0.0, %v1672
    %v1674 = vpop.f32.mrb[0].mxu0
    %v1675 = vpop.f32.mrb[0].mxu0
    %v1676 = vadd.f32 0.0, %v1675
    %v1677 = vpop.f32.mrb[0].mxu0
    %1678 = vmatprep.mubr.bf16.mxu0 0
    %1679 = vmatmul.mubr.bf16.gmra.mrb[0].mxu0 %v1538
    %v1680 = vpop.f32.mrb[0].mxu0
    %v1681 = vadd.f32 0.0, %v1680
    %v1682 = vpop.f32.mrb[0].mxu0
    %v1683 = vpop.f32.mrb[0].mxu0
    %v1684 = vadd.f32 0.0, %v1683
    %v1685 = vpop.f32.mrb[0].mxu0
    %1686 = vmatprep.mubr.bf16.mxu0 0
    %1687 = vmatmul.mubr.bf16.gmra.mrb[0].mxu0 %v1539
    %v1688 = vpop.f32.mrb[0].mxu0
    %v1689 = vadd.f32 0.0, %v1688
    %v1690 = vpop.f32.mrb[0].mxu0
    %v1691 = vpop.f32.mrb[0].mxu0
    %v1692 = vadd.f32 0.0, %v1691
    %v1693 = vpop.f32.mrb[0].mxu0
    %1694 = vmatprep.mubr.bf16.mxu0 0
    %1695 = vmatmul.mubr.bf16.gmra.mrb[0].mxu0 %v1540
    %v1696 = vpop.f32.mrb[0].mxu0
    %v1697 = vadd.f32 0.0, %v1696
    %v1698 = vpop.f32.mrb[0].mxu0
    %v1699 = vpop.f32.mrb[0].mxu0
    %v1700 = vadd.f32 0.0, %v1699
    %v1701 = vpop.f32.mrb[0].mxu0
    %1702 = vmatprep.mubr.bf16.mxu0 0
    %1703 = vmatmul.mubr.bf16.gmra.mrb[0].mxu0 %v1541
    %v1704 = vpop.f32.mrb[0].mxu0
    %v1705 = vadd.f32 0.0, %v1704
    %v1706 = vpop.f32.mrb[0].mxu0
    %v1707 = vpop.f32.mrb[0].mxu0
    %v1708 = vadd.f32 0.0, %v1707
    %v1709 = vpop.f32.mrb[0].mxu0
    %1710 = vdwg.mxu0
    %v1711 = vadd.f32 %v1497, %v1641
    %v1712 = vadd.f32 %v1498, %v1644
    %v1713 = vadd.f32 %v1499, %v1649
    %v1714 = vadd.f32 %v1500, %v1652
    %v1715 = vadd.f32 %v1501, %v1657
    %v1716 = vadd.f32 %v1502, %v1660
    %v1717 = vadd.f32 %v1503, %v1665
    %v1718 = vadd.f32 %v1504, %v1668
    %v1719 = vadd.f32 %v1505, %v1673
    %v1720 = vadd.f32 %v1506, %v1676
    %v1721 = vadd.f32 %v1507, %v1681
    %v1722 = vadd.f32 %v1508, %v1684
    %v1723 = vadd.f32 %v1509, %v1689
    %v1724 = vadd.f32 %v1510, %v1692
    %v1725 = vadd.f32 %v1511, %v1697
    %v1726 = vadd.f32 %v1512, %v1700
    %v1727 = vadd.f32 %v1513, %v1705
    %v1728 = vadd.f32 %v1514, %v1708
    %v1729 = vld [vmem:[%s4] sm:$0x1]
    %v1730 = vld [vmem:[%s5] sm:$0x1]
    %v1731 = vadd.f32 %v1711, %v1712
    %v1732 = vadd.f32 %v1731, %v1713
    %v1733 = vadd.f32 %v1732, %v1714
    %v1734 = vadd.f32 %v1733, %v1715
    %v1735 = vadd.f32 %v1734, %v1716
    %v1736 = vadd.f32 %v1735, %v1717
    %v1737 = vadd.f32 %v1736, %v1718
    %v1738 = vadd.f32 %v1737, %v1719
    %v1739 = vadd.f32 %v1738, %v1720
    %v1740 = vadd.f32 %v1739, %v1721
    %v1741 = vadd.f32 %v1740, %v1722
    %v1742 = vadd.f32 %v1741, %v1723
    %v1743 = vadd.f32 %v1742, %v1724
    %v1744 = vadd.f32 %v1743, %v1725
    %v1745 = vadd.f32 %v1744, %v1726
    %v1746 = vadd.f32 %v1745, %v1727
    %v1747 = vadd.f32 %v1746, %v1728
    %v1748 = vrot.slane %v1747, 4
    %v1749 = vadd.f32 %v1747, %v1748
    %v1750 = vrot.slane %v1749, 2
    %v1751 = vadd.f32 %v1749, %v1750
    %v1752 = vrot.slane %v1751, 1
    %v1753 = vadd.f32 %v1751, %v1752
    %v1754 = vmul.f32 %v1753, %v108
    %v1755 = vsub.f32 %v1711, %v1754
    %v1756 = vsub.f32 %v1712, %v1754
    %v1757 = vsub.f32 %v1713, %v1754
    %v1758 = vsub.f32 %v1714, %v1754
    %v1759 = vsub.f32 %v1715, %v1754
    %v1760 = vsub.f32 %v1716, %v1754
    %v1761 = vsub.f32 %v1717, %v1754
    %v1762 = vsub.f32 %v1718, %v1754
    %v1763 = vsub.f32 %v1719, %v1754
    %v1764 = vsub.f32 %v1720, %v1754
    %v1765 = vsub.f32 %v1721, %v1754
    %v1766 = vsub.f32 %v1722, %v1754
    %v1767 = vsub.f32 %v1723, %v1754
    %v1768 = vsub.f32 %v1724, %v1754
    %v1769 = vsub.f32 %v1725, %v1754
    %v1770 = vsub.f32 %v1726, %v1754
    %v1771 = vsub.f32 %v1727, %v1754
    %v1772 = vsub.f32 %v1728, %v1754
    %v1773 = vmul.f32 %v1755, %v1755
    %v1774 = vmul.f32 %v1756, %v1756
    %v1775 = vmul.f32 %v1757, %v1757
    %v1776 = vmul.f32 %v1758, %v1758
    %v1777 = vmul.f32 %v1759, %v1759
    %v1778 = vmul.f32 %v1760, %v1760
    %v1779 = vmul.f32 %v1761, %v1761
    %v1780 = vmul.f32 %v1762, %v1762
    %v1781 = vmul.f32 %v1763, %v1763
    %v1782 = vmul.f32 %v1764, %v1764
    %v1783 = vmul.f32 %v1765, %v1765
    %v1784 = vmul.f32 %v1766, %v1766
    %v1785 = vmul.f32 %v1767, %v1767
    %v1786 = vmul.f32 %v1768, %v1768
    %v1787 = vmul.f32 %v1769, %v1769
    %v1788 = vmul.f32 %v1770, %v1770
    %v1789 = vmul.f32 %v1771, %v1771
    %v1790 = vmul.f32 %v1772, %v1772
    %v1791 = vadd.f32 %v1773, %v1774
    %v1792 = vadd.f32 %v1791, %v1775
    %v1793 = vadd.f32 %v1792, %v1776
    %v1794 = vadd.f32 %v1793, %v1777
    %v1795 = vadd.f32 %v1794, %v1778
    %v1796 = vadd.f32 %v1795, %v1779
    %v1797 = vadd.f32 %v1796, %v1780
    %v1798 = vadd.f32 %v1797, %v1781
    %v1799 = vadd.f32 %v1798, %v1782
    %v1800 = vadd.f32 %v1799, %v1783
    %v1801 = vadd.f32 %v1800, %v1784
    %v1802 = vadd.f32 %v1801, %v1785
    %v1803 = vadd.f32 %v1802, %v1786
    %v1804 = vadd.f32 %v1803, %v1787
    %v1805 = vadd.f32 %v1804, %v1788
    %v1806 = vadd.f32 %v1805, %v1789
    %v1807 = vadd.f32 %v1806, %v1790
    %v1808 = vrot.slane %v1807, 4
    %v1809 = vadd.f32 %v1807, %v1808
    %v1810 = vrot.slane %v1809, 2
    %v1811 = vadd.f32 %v1809, %v1810
    %v1812 = vrot.slane %v1811, 1
    %v1813 = vadd.f32 %v1811, %v1812
    %v1814 = vmul.f32 %v1813, %v108
    %v1815 = vadd.f32 %v1814, 0.001
    %v1816 = vrsqrt.pop %v1815
    %v1817 = vmul.f32 %v1729, %v1816
    %v1819 = vlaneseq
    %v1820 = vshrl.u32 %v1819, 7
    %v1821 = vsub.s32 0, %v1820
    %v1822 = vrot.slane %v1817, %v1821
    %v1824 = vmul.f32 %v1755, %v1822
    %v1825 = vmul.f32 %v1756, %v1822
    %v1826 = vmul.f32 %v1757, %v1822
    %v1827 = vmul.f32 %v1758, %v1822
    %v1828 = vmul.f32 %v1759, %v1822
    %v1829 = vmul.f32 %v1760, %v1822
    %v1830 = vmul.f32 %v1761, %v1822
    %v1831 = vmul.f32 %v1762, %v1822
    %v1832 = vmul.f32 %v1763, %v1822
    %v1833 = vmul.f32 %v1764, %v1822
    %v1834 = vmul.f32 %v1765, %v1822
    %v1835 = vmul.f32 %v1766, %v1822
    %v1836 = vmul.f32 %v1767, %v1822
    %v1837 = vmul.f32 %v1768, %v1822
    %v1838 = vmul.f32 %v1769, %v1822
    %v1839 = vmul.f32 %v1770, %v1822
    %v1840 = vmul.f32 %v1771, %v1822
    %v1841 = vmul.f32 %v1772, %v1822
    %v1843 = vlaneseq
    %v1844 = vshrl.u32 %v1843, 7
    %v1845 = vsub.s32 0, %v1844
    %v1846 = vrot.slane %v1730, %v1845
    %v1848 = vadd.f32 %v1824, %v1846
    %v1849 = vadd.f32 %v1825, %v1846
    %v1850 = vadd.f32 %v1826, %v1846
    %v1851 = vadd.f32 %v1827, %v1846
    %v1852 = vadd.f32 %v1828, %v1846
    %v1853 = vadd.f32 %v1829, %v1846
    %v1854 = vadd.f32 %v1830, %v1846
    %v1855 = vadd.f32 %v1831, %v1846
    %v1856 = vadd.f32 %v1832, %v1846
    %v1857 = vadd.f32 %v1833, %v1846
    %v1858 = vadd.f32 %v1834, %v1846
    %v1859 = vadd.f32 %v1835, %v1846
    %v1860 = vadd.f32 %v1836, %v1846
    %v1861 = vadd.f32 %v1837, %v1846
    %v1862 = vadd.f32 %v1838, %v1846
    %v1863 = vadd.f32 %v1839, %v1846
    %v1864 = vadd.f32 %v1840, %v1846
    %v1865 = vadd.f32 %v1841, %v1846
    %v1866 = vmax.f32 %v1848, 0.0
    %v1867 = vmax.f32 %v1849, 0.0
    %v1868 = vmax.f32 %v1850, 0.0
    %v1869 = vmax.f32 %v1851, 0.0
    %v1870 = vmax.f32 %v1852, 0.0
    %v1871 = vmax.f32 %v1853, 0.0
    %v1872 = vmax.f32 %v1854, 0.0
    %v1873 = vmax.f32 %v1855, 0.0
    %v1874 = vmax.f32 %v1856, 0.0
    %v1875 = vmax.f32 %v1857, 0.0
    %v1876 = vmax.f32 %v1858, 0.0
    %v1877 = vmax.f32 %v1859, 0.0
    %v1878 = vmax.f32 %v1860, 0.0
    %v1879 = vmax.f32 %v1861, 0.0
    %v1880 = vmax.f32 %v1862, 0.0
    %v1881 = vmax.f32 %v1863, 0.0
    %v1882 = vmax.f32 %v1864, 0.0
    %v1883 = vmax.f32 %v1865, 0.0
    %1884 = vst [vmem:[#allocation3] sm:$0xff] 0.0
    %1885 = vst [vmem:[#allocation3 + $0x98] sm:$0xff] 0.0
    %1886 = vst [vmem:[#allocation3 + $0x8] sm:$0xff] %v1866
    %1887 = vst [vmem:[#allocation3 + $0x10] sm:$0xff] %v1867
    %1888 = vst [vmem:[#allocation3 + $0x18] sm:$0xff] %v1868
    %1889 = vst [vmem:[#allocation3 + $0x20] sm:$0xff] %v1869
    %1890 = vst [vmem:[#allocation3 + $0x28] sm:$0xff] %v1870
    %1891 = vst [vmem:[#allocation3 + $0x30] sm:$0xff] %v1871
    %1892 = vst [vmem:[#allocation3 + $0x38] sm:$0xff] %v1872
    %1893 = vst [vmem:[#allocation3 + $0x40] sm:$0xff] %v1873
    %1894 = vst [vmem:[#allocation3 + $0x48] sm:$0xff] %v1874
    %1895 = vst [vmem:[#allocation3 + $0x50] sm:$0xff] %v1875
    %1896 = vst [vmem:[#allocation3 + $0x58] sm:$0xff] %v1876
    %1897 = vst [vmem:[#allocation3 + $0x60] sm:$0xff] %v1877
    %1898 = vst [vmem:[#allocation3 + $0x68] sm:$0xff] %v1878
    %1899 = vst [vmem:[#allocation3 + $0x70] sm:$0xff] %v1879
    %1900 = vst [vmem:[#allocation3 + $0x78] sm:$0xff] %v1880
    %1901 = vst [vmem:[#allocation3 + $0x80] sm:$0xff] %v1881
    %1902 = vst [vmem:[#allocation3 + $0x88] sm:$0xff] %v1882
    %1903 = vst [vmem:[#allocation3 + $0x90] sm:$0xff] %v1883
    %v1904 = vlaneseq
    %v1905 = vshrl.u32 %v1904, 7
    %v1906 = vadd.s32 %v1905, 8
    %v1907 = vadd.s32 %v1905, 16
    %v1908 = vadd.s32 %v1905, 24
    %v1909 = vadd.s32 %v1905, 32
    %v1910 = vadd.s32 %v1905, 40
    %v1911 = vadd.s32 %v1905, 48
    %v1912 = vadd.s32 %v1905, 56
    %v1913 = vadd.s32 %v1905, 64
    %v1914 = vadd.s32 %v1905, 72
    %v1915 = vadd.s32 %v1905, 80
    %v1916 = vadd.s32 %v1905, 88
    %v1917 = vadd.s32 %v1905, 96
    %v1918 = vadd.s32 %v1905, 104
    %v1919 = vadd.s32 %v1905, 112
    %v1920 = vadd.s32 %v1905, 120
    %v1921 = vadd.s32 %v1905, 128
    %v1922 = vadd.s32 %v1905, 136
    %v1923 = vcvt.s32.f32 %v1905
    %v1924 = vcvt.s32.f32 %v1906
    %v1925 = vcvt.s32.f32 %v1907
    %v1926 = vcvt.s32.f32 %v1908
    %v1927 = vcvt.s32.f32 %v1909
    %v1928 = vcvt.s32.f32 %v1910
    %v1929 = vcvt.s32.f32 %v1911
    %v1930 = vcvt.s32.f32 %v1912
    %v1931 = vcvt.s32.f32 %v1913
    %v1932 = vcvt.s32.f32 %v1914
    %v1933 = vcvt.s32.f32 %v1915
    %v1934 = vcvt.s32.f32 %v1916
    %v1935 = vcvt.s32.f32 %v1917
    %v1936 = vcvt.s32.f32 %v1918
    %v1937 = vcvt.s32.f32 %v1919
    %v1938 = vcvt.s32.f32 %v1920
    %v1939 = vcvt.s32.f32 %v1921
    %v1940 = vcvt.s32.f32 %v1922
    %v1941 = vadd.f32 %v1923, 0.5
    %v1942 = vadd.f32 %v1924, 0.5
    %v1943 = vadd.f32 %v1925, 0.5
    %v1944 = vadd.f32 %v1926, 0.5
    %v1945 = vadd.f32 %v1927, 0.5
    %v1946 = vadd.f32 %v1928, 0.5
    %v1947 = vadd.f32 %v1929, 0.5
    %v1948 = vadd.f32 %v1930, 0.5
    %v1949 = vadd.f32 %v1931, 0.5
    %v1950 = vadd.f32 %v1932, 0.5
    %v1951 = vadd.f32 %v1933, 0.5
    %v1952 = vadd.f32 %v1934, 0.5
    %v1953 = vadd.f32 %v1935, 0.5
    %v1954 = vadd.f32 %v1936, 0.5
    %v1955 = vadd.f32 %v1937, 0.5
    %v1956 = vadd.f32 %v1938, 0.5
    %v1957 = vadd.f32 %v1939, 0.5
    %v1958 = vadd.f32 %v1940, 0.5
    %v1959 = vmul.f32 %v1941, 0.083333336
    %v1960 = vmul.f32 %v1942, 0.083333336
    %v1961 = vmul.f32 %v1943, 0.083333336
    %v1962 = vmul.f32 %v1944, 0.083333336
    %v1963 = vmul.f32 %v1945, 0.083333336
    %v1964 = vmul.f32 %v1946, 0.083333336
    %v1965 = vmul.f32 %v1947, 0.083333336
    %v1966 = vmul.f32 %v1948, 0.083333336
    %v1967 = vmul.f32 %v1949, 0.083333336
    %v1968 = vmul.f32 %v1950, 0.083333336
    %v1969 = vmul.f32 %v1951, 0.083333336
    %v1970 = vmul.f32 %v1952, 0.083333336
    %v1971 = vmul.f32 %v1953, 0.083333336
    %v1972 = vmul.f32 %v1954, 0.083333336
    %v1973 = vmul.f32 %v1955, 0.083333336
    %v1974 = vmul.f32 %v1956, 0.083333336
    %v1975 = vmul.f32 %v1957, 0.083333336
    %v1976 = vmul.f32 %v1958, 0.083333336
    %v1977 = vfloor.f32 %v1959
    %v1978 = vfloor.f32 %v1960
    %v1979 = vfloor.f32 %v1961
    %v1980 = vfloor.f32 %v1962
    %v1981 = vfloor.f32 %v1963
    %v1982 = vfloor.f32 %v1964
    %v1983 = vfloor.f32 %v1965
    %v1984 = vfloor.f32 %v1966
    %v1985 = vfloor.f32 %v1967
    %v1986 = vfloor.f32 %v1968
    %v1987 = vfloor.f32 %v1969
    %v1988 = vfloor.f32 %v1970
    %v1989 = vfloor.f32 %v1971
    %v1990 = vfloor.f32 %v1972
    %v1991 = vfloor.f32 %v1973
    %v1992 = vfloor.f32 %v1974
    %v1993 = vfloor.f32 %v1975
    %v1994 = vfloor.f32 %v1976
    %v1995 = vmul.f32 %v1977, 12.0
    %v1996 = vmul.f32 %v1978, 12.0
    %v1997 = vmul.f32 %v1979, 12.0
    %v1998 = vmul.f32 %v1980, 12.0
    %v1999 = vmul.f32 %v1981, 12.0
    %v2000 = vmul.f32 %v1982, 12.0
    %v2001 = vmul.f32 %v1983, 12.0
    %v2002 = vmul.f32 %v1984, 12.0
    %v2003 = vmul.f32 %v1985, 12.0
    %v2004 = vmul.f32 %v1986, 12.0
    %v2005 = vmul.f32 %v1987, 12.0
    %v2006 = vmul.f32 %v1988, 12.0
    %v2007 = vmul.f32 %v1989, 12.0
    %v2008 = vmul.f32 %v1990, 12.0
    %v2009 = vmul.f32 %v1991, 12.0
    %v2010 = vmul.f32 %v1992, 12.0
    %v2011 = vmul.f32 %v1993, 12.0
    %v2012 = vmul.f32 %v1994, 12.0
    %v2013 = vsub.f32 %v1923, %v1995
    %v2014 = vsub.f32 %v1924, %v1996
    %v2015 = vsub.f32 %v1925, %v1997
    %v2016 = vsub.f32 %v1926, %v1998
    %v2017 = vsub.f32 %v1927, %v1999
    %v2018 = vsub.f32 %v1928, %v2000
    %v2019 = vsub.f32 %v1929, %v2001
    %v2020 = vsub.f32 %v1930, %v2002
    %v2021 = vsub.f32 %v1931, %v2003
    %v2022 = vsub.f32 %v1932, %v2004
    %v2023 = vsub.f32 %v1933, %v2005
    %v2024 = vsub.f32 %v1934, %v2006
    %v2025 = vsub.f32 %v1935, %v2007
    %v2026 = vsub.f32 %v1936, %v2008
    %v2027 = vsub.f32 %v1937, %v2009
    %v2028 = vsub.f32 %v1938, %v2010
    %v2029 = vsub.f32 %v1939, %v2011
    %v2030 = vsub.f32 %v1940, %v2012
    %s2031 = smul.u32 4, 112
    %s2032 = smul.u32 %s2031, 1
    %s2033 = sshll.u32 %s2032, 4
    %2034 = dma.done [#allocation5], %s2033
    %v2035 = vld [vmem:[#allocation3 + $0x5] sm:$0xff]
    %v2036 = vld [vmem:[#allocation3 + $0xd] sm:$0xff]
    %v2037 = vld [vmem:[#allocation3 + $0x15] sm:$0xff]
    %v2038 = vld [vmem:[#allocation3 + $0x1d] sm:$0xff]
    %v2039 = vld [vmem:[#allocation3 + $0x25] sm:$0xff]
    %v2040 = vld [vmem:[#allocation3 + $0x2d] sm:$0xff]
    %v2041 = vld [vmem:[#allocation3 + $0x35] sm:$0xff]
    %v2042 = vld [vmem:[#allocation3 + $0x3d] sm:$0xff]
    %v2043 = vld [vmem:[#allocation3 + $0x45] sm:$0xff]
    %v2044 = vld [vmem:[#allocation3 + $0x4d] sm:$0xff]
    %v2045 = vld [vmem:[#allocation3 + $0x55] sm:$0xff]
    %v2046 = vld [vmem:[#allocation3 + $0x5d] sm:$0xff]
    %v2047 = vld [vmem:[#allocation3 + $0x65] sm:$0xff]
    %v2048 = vld [vmem:[#allocation3 + $0x6d] sm:$0xff]
    %v2049 = vld [vmem:[#allocation3 + $0x75] sm:$0xff]
    %v2050 = vld [vmem:[#allocation3 + $0x7d] sm:$0xff]
    %v2051 = vld [vmem:[#allocation3 + $0x85] sm:$0xff]
    %v2052 = vld [vmem:[#allocation3 + $0x8d] sm:$0xff]
    %vm2053 = vcmp.ge.f32.partialorder %v2013, 3.0
    %vm2054 = vcmp.ge.f32.partialorder %v2014, 3.0
    %vm2055 = vcmp.ge.f32.partialorder %v2015, 3.0
    %vm2056 = vcmp.ge.f32.partialorder %v2016, 3.0
    %vm2057 = vcmp.ge.f32.partialorder %v2017, 3.0
    %vm2058 = vcmp.ge.f32.partialorder %v2018, 3.0
    %vm2059 = vcmp.ge.f32.partialorder %v2019, 3.0
    %vm2060 = vcmp.ge.f32.partialorder %v2020, 3.0
    %vm2061 = vcmp.ge.f32.partialorder %v2021, 3.0
    %vm2062 = vcmp.ge.f32.partialorder %v2022, 3.0
    %vm2063 = vcmp.ge.f32.partialorder %v2023, 3.0
    %vm2064 = vcmp.ge.f32.partialorder %v2024, 3.0
    %vm2065 = vcmp.ge.f32.partialorder %v2025, 3.0
    %vm2066 = vcmp.ge.f32.partialorder %v2026, 3.0
    %vm2067 = vcmp.ge.f32.partialorder %v2027, 3.0
    %vm2068 = vcmp.ge.f32.partialorder %v2028, 3.0
    %vm2069 = vcmp.ge.f32.partialorder %v2029, 3.0
    %vm2070 = vcmp.ge.f32.partialorder %v2030, 3.0
    %v2071 = vsel %vm2053, %v2035, 0.0
    %v2072 = vsel %vm2054, %v2036, 0.0
    %v2073 = vsel %vm2055, %v2037, 0.0
    %v2074 = vsel %vm2056, %v2038, 0.0
    %v2075 = vsel %vm2057, %v2039, 0.0
    %v2076 = vsel %vm2058, %v2040, 0.0
    %v2077 = vsel %vm2059, %v2041, 0.0
    %v2078 = vsel %vm2060, %v2042, 0.0
    %v2079 = vsel %vm2061, %v2043, 0.0
    %v2080 = vsel %vm2062, %v2044, 0.0
    %v2081 = vsel %vm2063, %v2045, 0.0
    %v2082 = vsel %vm2064, %v2046, 0.0
    %v2083 = vsel %vm2065, %v2047, 0.0
    %v2084 = vsel %vm2066, %v2048, 0.0
    %v2085 = vsel %vm2067, %v2049, 0.0
    %v2086 = vsel %vm2068, %v2050, 0.0
    %v2087 = vsel %vm2069, %v2051, 0.0
    %v2088 = vsel %vm2070, %v2052, 0.0
    %v2089 = vpack.c.bf16 %v2072, %v2071
    %v2090 = vpack.c.bf16 %v2074, %v2073
    %v2091 = vpack.c.bf16 %v2076, %v2075
    %v2092 = vpack.c.bf16 %v2078, %v2077
    %v2093 = vpack.c.bf16 %v2080, %v2079
    %v2094 = vpack.c.bf16 %v2082, %v2081
    %v2095 = vpack.c.bf16 %v2084, %v2083
    %v2096 = vpack.c.bf16 %v2086, %v2085
    %v2097 = vpack.c.bf16 %v2088, %v2087
    %v2098 = vld [vmem:[#allocation4] sm:$0xff]
    %v2099 = vld [vmem:[#allocation4 + $0x8] sm:$0xff]
    %v2100 = vld [vmem:[#allocation4 + $0x10] sm:$0xff]
    %v2101 = vld [vmem:[#allocation4 + $0x18] sm:$0xff]
    %v2102 = vld [vmem:[#allocation4 + $0x20] sm:$0xff]
    %v2103 = vld [vmem:[#allocation4 + $0x28] sm:$0xff]
    %v2104 = vld [vmem:[#allocation4 + $0x30] sm:$0xff]
    %v2105 = vld [vmem:[#allocation4 + $0x38] sm:$0xff]
    %v2106 = vld [vmem:[#allocation3 + $0x6] sm:$0xff]
    %v2107 = vld [vmem:[#allocation3 + $0xe] sm:$0xff]
    %v2108 = vld [vmem:[#allocation3 + $0x16] sm:$0xff]
    %v2109 = vld [vmem:[#allocation3 + $0x1e] sm:$0xff]
    %v2110 = vld [vmem:[#allocation3 + $0x26] sm:$0xff]
    %v2111 = vld [vmem:[#allocation3 + $0x2e] sm:$0xff]
    %v2112 = vld [vmem:[#allocation3 + $0x36] sm:$0xff]
    %v2113 = vld [vmem:[#allocation3 + $0x3e] sm:$0xff]
    %v2114 = vld [vmem:[#allocation3 + $0x46] sm:$0xff]
    %v2115 = vld [vmem:[#allocation3 + $0x4e] sm:$0xff]
    %v2116 = vld [vmem:[#allocation3 + $0x56] sm:$0xff]
    %v2117 = vld [vmem:[#allocation3 + $0x5e] sm:$0xff]
    %v2118 = vld [vmem:[#allocation3 + $0x66] sm:$0xff]
    %v2119 = vld [vmem:[#allocation3 + $0x6e] sm:$0xff]
    %v2120 = vld [vmem:[#allocation3 + $0x76] sm:$0xff]
    %v2121 = vld [vmem:[#allocation3 + $0x7e] sm:$0xff]
    %v2122 = vld [vmem:[#allocation3 + $0x86] sm:$0xff]
    %v2123 = vld [vmem:[#allocation3 + $0x8e] sm:$0xff]
    %vm2124 = vcmp.ge.f32.partialorder %v2013, 2.0
    %vm2125 = vcmp.ge.f32.partialorder %v2014, 2.0
    %vm2126 = vcmp.ge.f32.partialorder %v2015, 2.0
    %vm2127 = vcmp.ge.f32.partialorder %v2016, 2.0
    %vm2128 = vcmp.ge.f32.partialorder %v2017, 2.0
    %vm2129 = vcmp.ge.f32.partialorder %v2018, 2.0
    %vm2130 = vcmp.ge.f32.partialorder %v2019, 2.0
    %vm2131 = vcmp.ge.f32.partialorder %v2020, 2.0
    %vm2132 = vcmp.ge.f32.partialorder %v2021, 2.0
    %vm2133 = vcmp.ge.f32.partialorder %v2022, 2.0
    %vm2134 = vcmp.ge.f32.partialorder %v2023, 2.0
    %vm2135 = vcmp.ge.f32.partialorder %v2024, 2.0
    %vm2136 = vcmp.ge.f32.partialorder %v2025, 2.0
    %vm2137 = vcmp.ge.f32.partialorder %v2026, 2.0
    %vm2138 = vcmp.ge.f32.partialorder %v2027, 2.0
    %vm2139 = vcmp.ge.f32.partialorder %v2028, 2.0
    %vm2140 = vcmp.ge.f32.partialorder %v2029, 2.0
    %vm2141 = vcmp.ge.f32.partialorder %v2030, 2.0
    %v2142 = vsel %vm2124, %v2106, 0.0
    %v2143 = vsel %vm2125, %v2107, 0.0
    %v2144 = vsel %vm2126, %v2108, 0.0
    %v2145 = vsel %vm2127, %v2109, 0.0
    %v2146 = vsel %vm2128, %v2110, 0.0
    %v2147 = vsel %vm2129, %v2111, 0.0
    %v2148 = vsel %vm2130, %v2112, 0.0
    %v2149 = vsel %vm2131, %v2113, 0.0
    %v2150 = vsel %vm2132, %v2114, 0.0
    %v2151 = vsel %vm2133, %v2115, 0.0
    %v2152 = vsel %vm2134, %v2116, 0.0
    %v2153 = vsel %vm2135, %v2117, 0.0
    %v2154 = vsel %vm2136, %v2118, 0.0
    %v2155 = vsel %vm2137, %v2119, 0.0
    %v2156 = vsel %vm2138, %v2120, 0.0
    %v2157 = vsel %vm2139, %v2121, 0.0
    %v2158 = vsel %vm2140, %v2122, 0.0
    %v2159 = vsel %vm2141, %v2123, 0.0
    %v2160 = vpack.c.bf16 %v2143, %v2142
    %v2161 = vpack.c.bf16 %v2145, %v2144
    %v2162 = vpack.c.bf16 %v2147, %v2146
    %v2163 = vpack.c.bf16 %v2149, %v2148
    %v2164 = vpack.c.bf16 %v2151, %v2150
    %v2165 = vpack.c.bf16 %v2153, %v2152
    %v2166 = vpack.c.bf16 %v2155, %v2154
    %v2167 = vpack.c.bf16 %v2157, %v2156
    %v2168 = vpack.c.bf16 %v2159, %v2158
    %v2169 = vld [vmem:[#allocation4 + $0x40] sm:$0xff]
    %v2170 = vld [vmem:[#allocation4 + $0x48] sm:$0xff]
    %v2171 = vld [vmem:[#allocation4 + $0x50] sm:$0xff]
    %v2172 = vld [vmem:[#allocation4 + $0x58] sm:$0xff]
    %v2173 = vld [vmem:[#allocation4 + $0x60] sm:$0xff]
    %v2174 = vld [vmem:[#allocation4 + $0x68] sm:$0xff]
    %v2175 = vld [vmem:[#allocation4 + $0x70] sm:$0xff]
    %v2176 = vld [vmem:[#allocation4 + $0x78] sm:$0xff]
    %2177 = vmatprep.subr.bf16.mxu0 0
    %2178 = vmatpush1.bf16.msra.mxu0 %v2169
    %2179 = vmatprep.subr.bf16.mxu0 0
    %2180 = vmatpush1.bf16.msra.mxu0 %v2170
    %2181 = vmatprep.subr.bf16.mxu0 0
    %2182 = vmatpush1.bf16.msra.mxu0 %v2171
    %2183 = vmatprep.subr.bf16.mxu0 0
    %2184 = vmatpush1.bf16.msra.mxu0 %v2172
    %2185 = vmatprep.subr.bf16.mxu0 0
    %2186 = vmatpush1.bf16.msra.mxu0 %v2173
    %2187 = vmatprep.subr.bf16.mxu0 0
    %2188 = vmatpush1.bf16.msra.mxu0 %v2174
    %2189 = vmatprep.subr.bf16.mxu0 0
    %2190 = vmatpush1.bf16.msra.mxu0 %v2175
    %2191 = vmatprep.subr.bf16.mxu0 0
    %2192 = vmatpush1.bf16.msra.mxu0 %v2176
    %2193 = vmatprep.subr.bf16.mxu0 0
    %2194 = vmatpush1.bf16.msra.mxu0 0
    %2195 = vmatprep.subr.bf16.mxu0 0
    %2196 = vmatpush1.bf16.msra.mxu0 0
    %2197 = vmatprep.subr.bf16.mxu0 0
    %2198 = vmatpush1.bf16.msra.mxu0 0
    %2199 = vmatprep.subr.bf16.mxu0 0
    %2200 = vmatpush1.bf16.msra.mxu0 0
    %2201 = vmatprep.subr.bf16.mxu0 0
    %2202 = vmatpush1.bf16.msra.mxu0 0
    %2203 = vmatprep.subr.bf16.mxu0 0
    %2204 = vmatpush1.bf16.msra.mxu0 0
    %2205 = vmatprep.subr.bf16.mxu0 0
    %2206 = vmatpush1.bf16.msra.mxu0 0
    %2207 = vmatprep.subr.bf16.mxu0 0
    %2208 = vmatpush1.bf16.msra.mxu0 0
    %2209 = vmatprep.mubr.bf16.mxu0 0
    %2210 = vmatmul.mubr.bf16.gmra.mrb[0].mxu0 %v2160
    %v2211 = vpop.f32.mrb[0].mxu0
    %v2212 = vadd.f32 0.0, %v2211
    %v2213 = vpop.f32.mrb[0].mxu0
    %v2214 = vpop.f32.mrb[0].mxu0
    %v2215 = vadd.f32 0.0, %v2214
    %v2216 = vpop.f32.mrb[0].mxu0
    %2217 = vmatprep.mubr.bf16.mxu0 0
    %2218 = vmatmul.mubr.bf16.gmra.mrb[0].mxu0 %v2161
    %v2219 = vpop.f32.mrb[0].mxu0
    %v2220 = vadd.f32 0.0, %v2219
    %v2221 = vpop.f32.mrb[0].mxu0
    %v2222 = vpop.f32.mrb[0].mxu0
    %v2223 = vadd.f32 0.0, %v2222
    %v2224 = vpop.f32.mrb[0].mxu0
    %2225 = vmatprep.mubr.bf16.mxu0 0
    %2226 = vmatmul.mubr.bf16.gmra.mrb[0].mxu0 %v2162
    %v2227 = vpop.f32.mrb[0].mxu0
    %v2228 = vadd.f32 0.0, %v2227
    %v2229 = vpop.f32.mrb[0].mxu0
    %v2230 = vpop.f32.mrb[0].mxu0
    %v2231 = vadd.f32 0.0, %v2230
    %v2232 = vpop.f32.mrb[0].mxu0
    %2233 = vmatprep.mubr.bf16.mxu0 0
    %2234 = vmatmul.mubr.bf16.gmra.mrb[0].mxu0 %v2163
    %v2235 = vpop.f32.mrb[0].mxu0
    %v2236 = vadd.f32 0.0, %v2235
    %v2237 = vpop.f32.mrb[0].mxu0
    %v2238 = vpop.f32.mrb[0].mxu0
    %v2239 = vadd.f32 0.0, %v2238
    %v2240 = vpop.f32.mrb[0].mxu0
    %2241 = vmatprep.mubr.bf16.mxu0 0
    %2242 = vmatmul.mubr.bf16.gmra.mrb[0].mxu0 %v2164
    %v2243 = vpop.f32.mrb[0].mxu0
    %v2244 = vadd.f32 0.0, %v2243
    %v2245 = vpop.f32.mrb[0].mxu0
    %v2246 = vpop.f32.mrb[0].mxu0
    %v2247 = vadd.f32 0.0, %v2246
    %v2248 = vpop.f32.mrb[0].mxu0
    %2249 = vmatprep.mubr.bf16.mxu0 0
    %2250 = vmatmul.mubr.bf16.gmra.mrb[0].mxu0 %v2165
    %v2251 = vpop.f32.mrb[0].mxu0
    %v2252 = vadd.f32 0.0, %v2251
    %v2253 = vpop.f32.mrb[0].mxu0
    %v2254 = vpop.f32.mrb[0].mxu0
    %v2255 = vadd.f32 0.0, %v2254
    %v2256 = vpop.f32.mrb[0].mxu0
    %2257 = vmatprep.mubr.bf16.mxu0 0
    %2258 = vmatmul.mubr.bf16.gmra.mrb[0].mxu0 %v2166
    %v2259 = vpop.f32.mrb[0].mxu0
    %v2260 = vadd.f32 0.0, %v2259
    %v2261 = vpop.f32.mrb[0].mxu0
    %v2262 = vpop.f32.mrb[0].mxu0
    %v2263 = vadd.f32 0.0, %v2262
    %v2264 = vpop.f32.mrb[0].mxu0
    %2265 = vmatprep.mubr.bf16.mxu0 0
    %2266 = vmatmul.mubr.bf16.gmra.mrb[0].mxu0 %v2167
    %v2267 = vpop.f32.mrb[0].mxu0
    %v2268 = vadd.f32 0.0, %v2267
    %v2269 = vpop.f32.mrb[0].mxu0
    %v2270 = vpop.f32.mrb[0].mxu0
    %v2271 = vadd.f32 0.0, %v2270
    %v2272 = vpop.f32.mrb[0].mxu0
    %2273 = vmatprep.mubr.bf16.mxu0 0
    %2274 = vmatmul.mubr.bf16.gmra.mrb[0].mxu0 %v2168
    %v2275 = vpop.f32.mrb[0].mxu0
    %v2276 = vadd.f32 0.0, %v2275
    %v2277 = vpop.f32.mrb[0].mxu0
    %v2278 = vpop.f32.mrb[0].mxu0
    %v2279 = vadd.f32 0.0, %v2278
    %v2280 = vpop.f32.mrb[0].mxu0
    %2281 = vdwg.mxu0
    %2282 = vmatprep.subr.bf16.mxu0 0
    %2283 = vmatpush1.bf16.msra.mxu0 %v2098
    %2284 = vmatprep.subr.bf16.mxu0 0
    %2285 = vmatpush1.bf16.msra.mxu0 %v2099
    %2286 = vmatprep.subr.bf16.mxu0 0
    %2287 = vmatpush1.bf16.msra.mxu0 %v2100
    %2288 = vmatprep.subr.bf16.mxu0 0
    %2289 = vmatpush1.bf16.msra.mxu0 %v2101
    %2290 = vmatprep.subr.bf16.mxu0 0
    %2291 = vmatpush1.bf16.msra.mxu0 %v2102
    %2292 = vmatprep.subr.bf16.mxu0 0
    %2293 = vmatpush1.bf16.msra.mxu0 %v2103
    %2294 = vmatprep.subr.bf16.mxu0 0
    %2295 = vmatpush1.bf16.msra.mxu0 %v2104
    %2296 = vmatprep.subr.bf16.mxu0 0
    %2297 = vmatpush1.bf16.msra.mxu0 %v2105
    %2298 = vmatprep.subr.bf16.mxu0 0
    %2299 = vmatpush1.bf16.msra.mxu0 0
    %2300 = vmatprep.subr.bf16.mxu0 0
    %2301 = vmatpush1.bf16.msra.mxu0 0
    %2302 = vmatprep.subr.bf16.mxu0 0
    %2303 = vmatpush1.bf16.msra.mxu0 0
    %2304 = vmatprep.subr.bf16.mxu0 0
    %2305 = vmatpush1.bf16.msra.mxu0 0
    %2306 = vmatprep.subr.bf16.mxu0 0
    %2307 = vmatpush1.bf16.msra.mxu0 0
    %2308 = vmatprep.subr.bf16.mxu0 0
    %2309 = vmatpush1.bf16.msra.mxu0 0
    %2310 = vmatprep.subr.bf16.mxu0 0
    %2311 = vmatpush1.bf16.msra.mxu0 0
    %2312 = vmatprep.subr.bf16.mxu0 0
    %2313 = vmatpush1.bf16.msra.mxu0 0
    %2314 = vmatprep.mubr.bf16.mxu0 0
    %2315 = vmatmul.mubr.bf16.gmra.mrb[0].mxu0 %v2089
    %v2316 = vpop.f32.mrb[0].mxu0
    %v2317 = vadd.f32 %v2212, %v2316
    %v2318 = vpop.f32.mrb[0].mxu0
    %v2319 = vpop.f32.mrb[0].mxu0
    %v2320 = vadd.f32 %v2215, %v2319
    %v2321 = vpop.f32.mrb[0].mxu0
    %2322 = vmatprep.mubr.bf16.mxu0 0
    %2323 = vmatmul.mubr.bf16.gmra.mrb[0].mxu0 %v2090
    %v2324 = vpop.f32.mrb[0].mxu0
    %v2325 = vadd.f32 %v2220, %v2324
    %v2326 = vpop.f32.mrb[0].mxu0
    %v2327 = vpop.f32.mrb[0].mxu0
    %v2328 = vadd.f32 %v2223, %v2327
    %v2329 = vpop.f32.mrb[0].mxu0
    %2330 = vmatprep.mubr.bf16.mxu0 0
    %2331 = vmatmul.mubr.bf16.gmra.mrb[0].mxu0 %v2091
    %v2332 = vpop.f32.mrb[0].mxu0
    %v2333 = vadd.f32 %v2228, %v2332
    %v2334 = vpop.f32.mrb[0].mxu0
    %v2335 = vpop.f32.mrb[0].mxu0
    %v2336 = vadd.f32 %v2231, %v2335
    %v2337 = vpop.f32.mrb[0].mxu0
    %2338 = vmatprep.mubr.bf16.mxu0 0
    %2339 = vmatmul.mubr.bf16.gmra.mrb[0].mxu0 %v2092
    %v2340 = vpop.f32.mrb[0].mxu0
    %v2341 = vadd.f32 %v2236, %v2340
    %v2342 = vpop.f32.mrb[0].mxu0
    %v2343 = vpop.f32.mrb[0].mxu0
    %v2344 = vadd.f32 %v2239, %v2343
    %v2345 = vpop.f32.mrb[0].mxu0
    %2346 = vmatprep.mubr.bf16.mxu0 0
    %2347 = vmatmul.mubr.bf16.gmra.mrb[0].mxu0 %v2093
    %v2348 = vpop.f32.mrb[0].mxu0
    %v2349 = vadd.f32 %v2244, %v2348
    %v2350 = vpop.f32.mrb[0].mxu0
    %v2351 = vpop.f32.mrb[0].mxu0
    %v2352 = vadd.f32 %v2247, %v2351
    %v2353 = vpop.f32.mrb[0].mxu0
    %2354 = vmatprep.mubr.bf16.mxu0 0
    %2355 = vmatmul.mubr.bf16.gmra.mrb[0].mxu0 %v2094
    %v2356 = vpop.f32.mrb[0].mxu0
    %v2357 = vadd.f32 %v2252, %v2356
    %v2358 = vpop.f32.mrb[0].mxu0
    %v2359 = vpop.f32.mrb[0].mxu0
    %v2360 = vadd.f32 %v2255, %v2359
    %v2361 = vpop.f32.mrb[0].mxu0
    %2362 = vmatprep.mubr.bf16.mxu0 0
    %2363 = vmatmul.mubr.bf16.gmra.mrb[0].mxu0 %v2095
    %v2364 = vpop.f32.mrb[0].mxu0
    %v2365 = vadd.f32 %v2260, %v2364
    %v2366 = vpop.f32.mrb[0].mxu0
    %v2367 = vpop.f32.mrb[0].mxu0
    %v2368 = vadd.f32 %v2263, %v2367
    %v2369 = vpop.f32.mrb[0].mxu0
    %2370 = vmatprep.mubr.bf16.mxu0 0
    %2371 = vmatmul.mubr.bf16.gmra.mrb[0].mxu0 %v2096
    %v2372 = vpop.f32.mrb[0].mxu0
    %v2373 = vadd.f32 %v2268, %v2372
    %v2374 = vpop.f32.mrb[0].mxu0
    %v2375 = vpop.f32.mrb[0].mxu0
    %v2376 = vadd.f32 %v2271, %v2375
    %v2377 = vpop.f32.mrb[0].mxu0
    %2378 = vmatprep.mubr.bf16.mxu0 0
    %2379 = vmatmul.mubr.bf16.gmra.mrb[0].mxu0 %v2097
    %v2380 = vpop.f32.mrb[0].mxu0
    %v2381 = vadd.f32 %v2276, %v2380
    %v2382 = vpop.f32.mrb[0].mxu0
    %v2383 = vpop.f32.mrb[0].mxu0
    %v2384 = vadd.f32 %v2279, %v2383
    %v2385 = vpop.f32.mrb[0].mxu0
    %2386 = vdwg.mxu0
    %v2387 = vld [vmem:[#allocation3 + $0x7] sm:$0xff]
    %v2388 = vld [vmem:[#allocation3 + $0xf] sm:$0xff]
    %v2389 = vld [vmem:[#allocation3 + $0x17] sm:$0xff]
    %v2390 = vld [vmem:[#allocation3 + $0x1f] sm:$0xff]
    %v2391 = vld [vmem:[#allocation3 + $0x27] sm:$0xff]
    %v2392 = vld [vmem:[#allocation3 + $0x2f] sm:$0xff]
    %v2393 = vld [vmem:[#allocation3 + $0x37] sm:$0xff]
    %v2394 = vld [vmem:[#allocation3 + $0x3f] sm:$0xff]
    %v2395 = vld [vmem:[#allocation3 + $0x47] sm:$0xff]
    %v2396 = vld [vmem:[#allocation3 + $0x4f] sm:$0xff]
    %v2397 = vld [vmem:[#allocation3 + $0x57] sm:$0xff]
    %v2398 = vld [vmem:[#allocation3 + $0x5f] sm:$0xff]
    %v2399 = vld [vmem:[#allocation3 + $0x67] sm:$0xff]
    %v2400 = vld [vmem:[#allocation3 + $0x6f] sm:$0xff]
    %v2401 = vld [vmem:[#allocation3 + $0x77] sm:$0xff]
    %v2402 = vld [vmem:[#allocation3 + $0x7f] sm:$0xff]
    %v2403 = vld [vmem:[#allocation3 + $0x87] sm:$0xff]
    %v2404 = vld [vmem:[#allocation3 + $0x8f] sm:$0xff]
    %vm2405 = vcmp.ge.f32.partialorder %v2013, 1.0
    %vm2406 = vcmp.ge.f32.partialorder %v2014, 1.0
    %vm2407 = vcmp.ge.f32.partialorder %v2015, 1.0
    %vm2408 = vcmp.ge.f32.partialorder %v2016, 1.0
    %vm2409 = vcmp.ge.f32.partialorder %v2017, 1.0
    %vm2410 = vcmp.ge.f32.partialorder %v2018, 1.0
    %vm2411 = vcmp.ge.f32.partialorder %v2019, 1.0
    %vm2412 = vcmp.ge.f32.partialorder %v2020, 1.0
    %vm2413 = vcmp.ge.f32.partialorder %v2021, 1.0
    %vm2414 = vcmp.ge.f32.partialorder %v2022, 1.0
    %vm2415 = vcmp.ge.f32.partialorder %v2023, 1.0
    %vm2416 = vcmp.ge.f32.partialorder %v2024, 1.0
    %vm2417 = vcmp.ge.f32.partialorder %v2025, 1.0
    %vm2418 = vcmp.ge.f32.partialorder %v2026, 1.0
    %vm2419 = vcmp.ge.f32.partialorder %v2027, 1.0
    %vm2420 = vcmp.ge.f32.partialorder %v2028, 1.0
    %vm2421 = vcmp.ge.f32.partialorder %v2029, 1.0
    %vm2422 = vcmp.ge.f32.partialorder %v2030, 1.0
    %v2423 = vsel %vm2405, %v2387, 0.0
    %v2424 = vsel %vm2406, %v2388, 0.0
    %v2425 = vsel %vm2407, %v2389, 0.0
    %v2426 = vsel %vm2408, %v2390, 0.0
    %v2427 = vsel %vm2409, %v2391, 0.0
    %v2428 = vsel %vm2410, %v2392, 0.0
    %v2429 = vsel %vm2411, %v2393, 0.0
    %v2430 = vsel %vm2412, %v2394, 0.0
    %v2431 = vsel %vm2413, %v2395, 0.0
    %v2432 = vsel %vm2414, %v2396, 0.0
    %v2433 = vsel %vm2415, %v2397, 0.0
    %v2434 = vsel %vm2416, %v2398, 0.0
    %v2435 = vsel %vm2417, %v2399, 0.0
    %v2436 = vsel %vm2418, %v2400, 0.0
    %v2437 = vsel %vm2419, %v2401, 0.0
    %v2438 = vsel %vm2420, %v2402, 0.0
    %v2439 = vsel %vm2421, %v2403, 0.0
    %v2440 = vsel %vm2422, %v2404, 0.0
    %v2441 = vpack.c.bf16 %v2424, %v2423
    %v2442 = vpack.c.bf16 %v2426, %v2425
    %v2443 = vpack.c.bf16 %v2428, %v2427
    %v2444 = vpack.c.bf16 %v2430, %v2429
    %v2445 = vpack.c.bf16 %v2432, %v2431
    %v2446 = vpack.c.bf16 %v2434, %v2433
    %v2447 = vpack.c.bf16 %v2436, %v2435
    %v2448 = vpack.c.bf16 %v2438, %v2437
    %v2449 = vpack.c.bf16 %v2440, %v2439
    %v2450 = vld [vmem:[#allocation4 + $0x80] sm:$0xff]
    %v2451 = vld [vmem:[#allocation4 + $0x88] sm:$0xff]
    %v2452 = vld [vmem:[#allocation4 + $0x90] sm:$0xff]
    %v2453 = vld [vmem:[#allocation4 + $0x98] sm:$0xff]
    %v2454 = vld [vmem:[#allocation4 + $0xa0] sm:$0xff]
    %v2455 = vld [vmem:[#allocation4 + $0xa8] sm:$0xff]
    %v2456 = vld [vmem:[#allocation4 + $0xb0] sm:$0xff]
    %v2457 = vld [vmem:[#allocation4 + $0xb8] sm:$0xff]
    %2458 = vmatprep.subr.bf16.mxu0 0
    %2459 = vmatpush1.bf16.msra.mxu0 %v2450
    %2460 = vmatprep.subr.bf16.mxu0 0
    %2461 = vmatpush1.bf16.msra.mxu0 %v2451
    %2462 = vmatprep.subr.bf16.mxu0 0
    %2463 = vmatpush1.bf16.msra.mxu0 %v2452
    %2464 = vmatprep.subr.bf16.mxu0 0
    %2465 = vmatpush1.bf16.msra.mxu0 %v2453
    %2466 = vmatprep.subr.bf16.mxu0 0
    %2467 = vmatpush1.bf16.msra.mxu0 %v2454
    %2468 = vmatprep.subr.bf16.mxu0 0
    %2469 = vmatpush1.bf16.msra.mxu0 %v2455
    %2470 = vmatprep.subr.bf16.mxu0 0
    %2471 = vmatpush1.bf16.msra.mxu0 %v2456
    %2472 = vmatprep.subr.bf16.mxu0 0
    %2473 = vmatpush1.bf16.msra.mxu0 %v2457
    %2474 = vmatprep.subr.bf16.mxu0 0
    %2475 = vmatpush1.bf16.msra.mxu0 0
    %2476 = vmatprep.subr.bf16.mxu0 0
    %2477 = vmatpush1.bf16.msra.mxu0 0
    %2478 = vmatprep.subr.bf16.mxu0 0
    %2479 = vmatpush1.bf16.msra.mxu0 0
    %2480 = vmatprep.subr.bf16.mxu0 0
    %2481 = vmatpush1.bf16.msra.mxu0 0
    %2482 = vmatprep.subr.bf16.mxu0 0
    %2483 = vmatpush1.bf16.msra.mxu0 0
    %2484 = vmatprep.subr.bf16.mxu0 0
    %2485 = vmatpush1.bf16.msra.mxu0 0
    %2486 = vmatprep.subr.bf16.mxu0 0
    %2487 = vmatpush1.bf16.msra.mxu0 0
    %2488 = vmatprep.subr.bf16.mxu0 0
    %2489 = vmatpush1.bf16.msra.mxu0 0
    %2490 = vmatprep.mubr.bf16.mxu0 0
    %2491 = vmatmul.mubr.bf16.gmra.mrb[0].mxu0 %v2441
    %v2492 = vpop.f32.mrb[0].mxu0
    %v2493 = vadd.f32 0.0, %v2492
    %v2494 = vpop.f32.mrb[0].mxu0
    %v2495 = vpop.f32.mrb[0].mxu0
    %v2496 = vadd.f32 0.0, %v2495
    %v2497 = vpop.f32.mrb[0].mxu0
    %2498 = vmatprep.mubr.bf16.mxu0 0
    %2499 = vmatmul.mubr.bf16.gmra.mrb[0].mxu0 %v2442
    %v2500 = vpop.f32.mrb[0].mxu0
    %v2501 = vadd.f32 0.0, %v2500
    %v2502 = vpop.f32.mrb[0].mxu0
    %v2503 = vpop.f32.mrb[0].mxu0
    %v2504 = vadd.f32 0.0, %v2503
    %v2505 = vpop.f32.mrb[0].mxu0
    %2506 = vmatprep.mubr.bf16.mxu0 0
    %2507 = vmatmul.mubr.bf16.gmra.mrb[0].mxu0 %v2443
    %v2508 = vpop.f32.mrb[0].mxu0
    %v2509 = vadd.f32 0.0, %v2508
    %v2510 = vpop.f32.mrb[0].mxu0
    %v2511 = vpop.f32.mrb[0].mxu0
    %v2512 = vadd.f32 0.0, %v2511
    %v2513 = vpop.f32.mrb[0].mxu0
    %2514 = vmatprep.mubr.bf16.mxu0 0
    %2515 = vmatmul.mubr.bf16.gmra.mrb[0].mxu0 %v2444
    %v2516 = vpop.f32.mrb[0].mxu0
    %v2517 = vadd.f32 0.0, %v2516
    %v2518 = vpop.f32.mrb[0].mxu0
    %v2519 = vpop.f32.mrb[0].mxu0
    %v2520 = vadd.f32 0.0, %v2519
    %v2521 = vpop.f32.mrb[0].mxu0
    %2522 = vmatprep.mubr.bf16.mxu0 0
    %2523 = vmatmul.mubr.bf16.gmra.mrb[0].mxu0 %v2445
    %v2524 = vpop.f32.mrb[0].mxu0
    %v2525 = vadd.f32 0.0, %v2524
    %v2526 = vpop.f32.mrb[0].mxu0
    %v2527 = vpop.f32.mrb[0].mxu0
    %v2528 = vadd.f32 0.0, %v2527
    %v2529 = vpop.f32.mrb[0].mxu0
    %2530 = vmatprep.mubr.bf16.mxu0 0
    %2531 = vmatmul.mubr.bf16.gmra.mrb[0].mxu0 %v2446
    %v2532 = vpop.f32.mrb[0].mxu0
    %v2533 = vadd.f32 0.0, %v2532
    %v2534 = vpop.f32.mrb[0].mxu0
    %v2535 = vpop.f32.mrb[0].mxu0
    %v2536 = vadd.f32 0.0, %v2535
    %v2537 = vpop.f32.mrb[0].mxu0
    %2538 = vmatprep.mubr.bf16.mxu0 0
    %2539 = vmatmul.mubr.bf16.gmra.mrb[0].mxu0 %v2447
    %v2540 = vpop.f32.mrb[0].mxu0
    %v2541 = vadd.f32 0.0, %v2540
    %v2542 = vpop.f32.mrb[0].mxu0
    %v2543 = vpop.f32.mrb[0].mxu0
    %v2544 = vadd.f32 0.0, %v2543
    %v2545 = vpop.f32.mrb[0].mxu0
    %2546 = vmatprep.mubr.bf16.mxu0 0
    %2547 = vmatmul.mubr.bf16.gmra.mrb[0].mxu0 %v2448
    %v2548 = vpop.f32.mrb[0].mxu0
    %v2549 = vadd.f32 0.0, %v2548
    %v2550 = vpop.f32.mrb[0].mxu0
    %v2551 = vpop.f32.mrb[0].mxu0
    %v2552 = vadd.f32 0.0, %v2551
    %v2553 = vpop.f32.mrb[0].mxu0
    %2554 = vmatprep.mubr.bf16.mxu0 0
    %2555 = vmatmul.mubr.bf16.gmra.mrb[0].mxu0 %v2449
    %v2556 = vpop.f32.mrb[0].mxu0
    %v2557 = vadd.f32 0.0, %v2556
    %v2558 = vpop.f32.mrb[0].mxu0
    %v2559 = vpop.f32.mrb[0].mxu0
    %v2560 = vadd.f32 0.0, %v2559
    %v2561 = vpop.f32.mrb[0].mxu0
    %2562 = vdwg.mxu0
    %v2563 = vadd.f32 %v2317, %v2493
    %v2564 = vadd.f32 %v2320, %v2496
    %v2565 = vadd.f32 %v2325, %v2501
    %v2566 = vadd.f32 %v2328, %v2504
    %v2567 = vadd.f32 %v2333, %v2509
    %v2568 = vadd.f32 %v2336, %v2512
    %v2569 = vadd.f32 %v2341, %v2517
    %v2570 = vadd.f32 %v2344, %v2520
    %v2571 = vadd.f32 %v2349, %v2525
    %v2572 = vadd.f32 %v2352, %v2528
    %v2573 = vadd.f32 %v2357, %v2533
    %v2574 = vadd.f32 %v2360, %v2536
    %v2575 = vadd.f32 %v2365, %v2541
    %v2576 = vadd.f32 %v2368, %v2544
    %v2577 = vadd.f32 %v2373, %v2549
    %v2578 = vadd.f32 %v2376, %v2552
    %v2579 = vadd.f32 %v2381, %v2557
    %v2580 = vadd.f32 %v2384, %v2560
    %v2581 = vld [vmem:[#allocation3 + $0x8] sm:$0xff]
    %v2582 = vld [vmem:[#allocation3 + $0x10] sm:$0xff]
    %v2583 = vld [vmem:[#allocation3 + $0x18] sm:$0xff]
    %v2584 = vld [vmem:[#allocation3 + $0x20] sm:$0xff]
    %v2585 = vld [vmem:[#allocation3 + $0x28] sm:$0xff]
    %v2586 = vld [vmem:[#allocation3 + $0x30] sm:$0xff]
    %v2587 = vld [vmem:[#allocation3 + $0x38] sm:$0xff]
    %v2588 = vld [vmem:[#allocation3 + $0x40] sm:$0xff]
    %v2589 = vld [vmem:[#allocation3 + $0x48] sm:$0xff]
    %v2590 = vld [vmem:[#allocation3 + $0x50] sm:$0xff]
    %v2591 = vld [vmem:[#allocation3 + $0x58] sm:$0xff]
    %v2592 = vld [vmem:[#allocation3 + $0x60] sm:$0xff]
    %v2593 = vld [vmem:[#allocation3 + $0x68] sm:$0xff]
    %v2594 = vld [vmem:[#allocation3 + $0x70] sm:$0xff]
    %v2595 = vld [vmem:[#allocation3 + $0x78] sm:$0xff]
    %v2596 = vld [vmem:[#allocation3 + $0x80] sm:$0xff]
    %v2597 = vld [vmem:[#allocation3 + $0x88] sm:$0xff]
    %v2598 = vld [vmem:[#allocation3 + $0x90] sm:$0xff]
    %v2599 = vpack.c.bf16 %v2582, %v2581
    %v2600 = vpack.c.bf16 %v2584, %v2583
    %v2601 = vpack.c.bf16 %v2586, %v2585
    %v2602 = vpack.c.bf16 %v2588, %v2587
    %v2603 = vpack.c.bf16 %v2590, %v2589
    %v2604 = vpack.c.bf16 %v2592, %v2591
    %v2605 = vpack.c.bf16 %v2594, %v2593
    %v2606 = vpack.c.bf16 %v2596, %v2595
    %v2607 = vpack.c.bf16 %v2598, %v2597
    %v2608 = vld [vmem:[#allocation4 + $0xc0] sm:$0xff]
    %v2609 = vld [vmem:[#allocation4 + $0xc8] sm:$0xff]
    %v2610 = vld [vmem:[#allocation4 + $0xd0] sm:$0xff]
    %v2611 = vld [vmem:[#allocation4 + $0xd8] sm:$0xff]
    %v2612 = vld [vmem:[#allocation4 + $0xe0] sm:$0xff]
    %v2613 = vld [vmem:[#allocation4 + $0xe8] sm:$0xff]
    %v2614 = vld [vmem:[#allocation4 + $0xf0] sm:$0xff]
    %v2615 = vld [vmem:[#allocation4 + $0xf8] sm:$0xff]
    %2616 = vmatprep.subr.bf16.mxu0 0
    %2617 = vmatpush1.bf16.msra.mxu0 %v2608
    %2618 = vmatprep.subr.bf16.mxu0 0
    %2619 = vmatpush1.bf16.msra.mxu0 %v2609
    %2620 = vmatprep.subr.bf16.mxu0 0
    %2621 = vmatpush1.bf16.msra.mxu0 %v2610
    %2622 = vmatprep.subr.bf16.mxu0 0
    %2623 = vmatpush1.bf16.msra.mxu0 %v2611
    %2624 = vmatprep.subr.bf16.mxu0 0
    %2625 = vmatpush1.bf16.msra.mxu0 %v2612
    %2626 = vmatprep.subr.bf16.mxu0 0
    %2627 = vmatpush1.bf16.msra.mxu0 %v2613
    %2628 = vmatprep.subr.bf16.mxu0 0
    %2629 = vmatpush1.bf16.msra.mxu0 %v2614
    %2630 = vmatprep.subr.bf16.mxu0 0
    %2631 = vmatpush1.bf16.msra.mxu0 %v2615
    %2632 = vmatprep.subr.bf16.mxu0 0
    %2633 = vmatpush1.bf16.msra.mxu0 0
    %2634 = vmatprep.subr.bf16.mxu0 0
    %2635 = vmatpush1.bf16.msra.mxu0 0
    %2636 = vmatprep.subr.bf16.mxu0 0
    %2637 = vmatpush1.bf16.msra.mxu0 0
    %2638 = vmatprep.subr.bf16.mxu0 0
    %2639 = vmatpush1.bf16.msra.mxu0 0
    %2640 = vmatprep.subr.bf16.mxu0 0
    %2641 = vmatpush1.bf16.msra.mxu0 0
    %2642 = vmatprep.subr.bf16.mxu0 0
    %2643 = vmatpush1.bf16.msra.mxu0 0
    %2644 = vmatprep.subr.bf16.mxu0 0
    %2645 = vmatpush1.bf16.msra.mxu0 0
    %2646 = vmatprep.subr.bf16.mxu0 0
    %2647 = vmatpush1.bf16.msra.mxu0 0
    %2648 = vmatprep.mubr.bf16.mxu0 0
    %2649 = vmatmul.mubr.bf16.gmra.mrb[0].mxu0 %v2599
    %v2650 = vpop.f32.mrb[0].mxu0
    %v2651 = vadd.f32 0.0, %v2650
    %v2652 = vpop.f32.mrb[0].mxu0
    %v2653 = vpop.f32.mrb[0].mxu0
    %v2654 = vadd.f32 0.0, %v2653
    %v2655 = vpop.f32.mrb[0].mxu0
    %2656 = vmatprep.mubr.bf16.mxu0 0
    %2657 = vmatmul.mubr.bf16.gmra.mrb[0].mxu0 %v2600
    %v2658 = vpop.f32.mrb[0].mxu0
    %v2659 = vadd.f32 0.0, %v2658
    %v2660 = vpop.f32.mrb[0].mxu0
    %v2661 = vpop.f32.mrb[0].mxu0
    %v2662 = vadd.f32 0.0, %v2661
    %v2663 = vpop.f32.mrb[0].mxu0
    %2664 = vmatprep.mubr.bf16.mxu0 0
    %2665 = vmatmul.mubr.bf16.gmra.mrb[0].mxu0 %v2601
    %v2666 = vpop.f32.mrb[0].mxu0
    %v2667 = vadd.f32 0.0, %v2666
    %v2668 = vpop.f32.mrb[0].mxu0
    %v2669 = vpop.f32.mrb[0].mxu0
    %v2670 = vadd.f32 0.0, %v2669
    %v2671 = vpop.f32.mrb[0].mxu0
    %2672 = vmatprep.mubr.bf16.mxu0 0
    %2673 = vmatmul.mubr.bf16.gmra.mrb[0].mxu0 %v2602
    %v2674 = vpop.f32.mrb[0].mxu0
    %v2675 = vadd.f32 0.0, %v2674
    %v2676 = vpop.f32.mrb[0].mxu0
    %v2677 = vpop.f32.mrb[0].mxu0
    %v2678 = vadd.f32 0.0, %v2677
    %v2679 = vpop.f32.mrb[0].mxu0
    %2680 = vmatprep.mubr.bf16.mxu0 0
    %2681 = vmatmul.mubr.bf16.gmra.mrb[0].mxu0 %v2603
    %v2682 = vpop.f32.mrb[0].mxu0
    %v2683 = vadd.f32 0.0, %v2682
    %v2684 = vpop.f32.mrb[0].mxu0
    %v2685 = vpop.f32.mrb[0].mxu0
    %v2686 = vadd.f32 0.0, %v2685
    %v2687 = vpop.f32.mrb[0].mxu0
    %2688 = vmatprep.mubr.bf16.mxu0 0
    %2689 = vmatmul.mubr.bf16.gmra.mrb[0].mxu0 %v2604
    %v2690 = vpop.f32.mrb[0].mxu0
    %v2691 = vadd.f32 0.0, %v2690
    %v2692 = vpop.f32.mrb[0].mxu0
    %v2693 = vpop.f32.mrb[0].mxu0
    %v2694 = vadd.f32 0.0, %v2693
    %v2695 = vpop.f32.mrb[0].mxu0
    %2696 = vmatprep.mubr.bf16.mxu0 0
    %2697 = vmatmul.mubr.bf16.gmra.mrb[0].mxu0 %v2605
    %v2698 = vpop.f32.mrb[0].mxu0
    %v2699 = vadd.f32 0.0, %v2698
    %v2700 = vpop.f32.mrb[0].mxu0
    %v2701 = vpop.f32.mrb[0].mxu0
    %v2702 = vadd.f32 0.0, %v2701
    %v2703 = vpop.f32.mrb[0].mxu0
    %2704 = vmatprep.mubr.bf16.mxu0 0
    %2705 = vmatmul.mubr.bf16.gmra.mrb[0].mxu0 %v2606
    %v2706 = vpop.f32.mrb[0].mxu0
    %v2707 = vadd.f32 0.0, %v2706
    %v2708 = vpop.f32.mrb[0].mxu0
    %v2709 = vpop.f32.mrb[0].mxu0
    %v2710 = vadd.f32 0.0, %v2709
    %v2711 = vpop.f32.mrb[0].mxu0
    %2712 = vmatprep.mubr.bf16.mxu0 0
    %2713 = vmatmul.mubr.bf16.gmra.mrb[0].mxu0 %v2607
    %v2714 = vpop.f32.mrb[0].mxu0
    %v2715 = vadd.f32 0.0, %v2714
    %v2716 = vpop.f32.mrb[0].mxu0
    %v2717 = vpop.f32.mrb[0].mxu0
    %v2718 = vadd.f32 0.0, %v2717
    %v2719 = vpop.f32.mrb[0].mxu0
    %2720 = vdwg.mxu0
    %v2721 = vadd.f32 %v2563, %v2651
    %v2722 = vadd.f32 %v2564, %v2654
    %v2723 = vadd.f32 %v2565, %v2659
    %v2724 = vadd.f32 %v2566, %v2662
    %v2725 = vadd.f32 %v2567, %v2667
    %v2726 = vadd.f32 %v2568, %v2670
    %v2727 = vadd.f32 %v2569, %v2675
    %v2728 = vadd.f32 %v2570, %v2678
    %v2729 = vadd.f32 %v2571, %v2683
    %v2730 = vadd.f32 %v2572, %v2686
    %v2731 = vadd.f32 %v2573, %v2691
    %v2732 = vadd.f32 %v2574, %v2694
    %v2733 = vadd.f32 %v2575, %v2699
    %v2734 = vadd.f32 %v2576, %v2702
    %v2735 = vadd.f32 %v2577, %v2707
    %v2736 = vadd.f32 %v2578, %v2710
    %v2737 = vadd.f32 %v2579, %v2715
    %v2738 = vadd.f32 %v2580, %v2718
    %v2739 = vld [vmem:[#allocation3 + $0x9] sm:$0xff]
    %v2740 = vld [vmem:[#allocation3 + $0x11] sm:$0xff]
    %v2741 = vld [vmem:[#allocation3 + $0x19] sm:$0xff]
    %v2742 = vld [vmem:[#allocation3 + $0x21] sm:$0xff]
    %v2743 = vld [vmem:[#allocation3 + $0x29] sm:$0xff]
    %v2744 = vld [vmem:[#allocation3 + $0x31] sm:$0xff]
    %v2745 = vld [vmem:[#allocation3 + $0x39] sm:$0xff]
    %v2746 = vld [vmem:[#allocation3 + $0x41] sm:$0xff]
    %v2747 = vld [vmem:[#allocation3 + $0x49] sm:$0xff]
    %v2748 = vld [vmem:[#allocation3 + $0x51] sm:$0xff]
    %v2749 = vld [vmem:[#allocation3 + $0x59] sm:$0xff]
    %v2750 = vld [vmem:[#allocation3 + $0x61] sm:$0xff]
    %v2751 = vld [vmem:[#allocation3 + $0x69] sm:$0xff]
    %v2752 = vld [vmem:[#allocation3 + $0x71] sm:$0xff]
    %v2753 = vld [vmem:[#allocation3 + $0x79] sm:$0xff]
    %v2754 = vld [vmem:[#allocation3 + $0x81] sm:$0xff]
    %v2755 = vld [vmem:[#allocation3 + $0x89] sm:$0xff]
    %v2756 = vld [vmem:[#allocation3 + $0x91] sm:$0xff]
    %vm2757 = vcmp.le.f32.partialorder %v2013, 10.0
    %vm2758 = vcmp.le.f32.partialorder %v2014, 10.0
    %vm2759 = vcmp.le.f32.partialorder %v2015, 10.0
    %vm2760 = vcmp.le.f32.partialorder %v2016, 10.0
    %vm2761 = vcmp.le.f32.partialorder %v2017, 10.0
    %vm2762 = vcmp.le.f32.partialorder %v2018, 10.0
    %vm2763 = vcmp.le.f32.partialorder %v2019, 10.0
    %vm2764 = vcmp.le.f32.partialorder %v2020, 10.0
    %vm2765 = vcmp.le.f32.partialorder %v2021, 10.0
    %vm2766 = vcmp.le.f32.partialorder %v2022, 10.0
    %vm2767 = vcmp.le.f32.partialorder %v2023, 10.0
    %vm2768 = vcmp.le.f32.partialorder %v2024, 10.0
    %vm2769 = vcmp.le.f32.partialorder %v2025, 10.0
    %vm2770 = vcmp.le.f32.partialorder %v2026, 10.0
    %vm2771 = vcmp.le.f32.partialorder %v2027, 10.0
    %vm2772 = vcmp.le.f32.partialorder %v2028, 10.0
    %vm2773 = vcmp.le.f32.partialorder %v2029, 10.0
    %vm2774 = vcmp.le.f32.partialorder %v2030, 10.0
    %v2775 = vsel %vm2757, %v2739, 0.0
    %v2776 = vsel %vm2758, %v2740, 0.0
    %v2777 = vsel %vm2759, %v2741, 0.0
    %v2778 = vsel %vm2760, %v2742, 0.0
    %v2779 = vsel %vm2761, %v2743, 0.0
    %v2780 = vsel %vm2762, %v2744, 0.0
    %v2781 = vsel %vm2763, %v2745, 0.0
    %v2782 = vsel %vm2764, %v2746, 0.0
    %v2783 = vsel %vm2765, %v2747, 0.0
    %v2784 = vsel %vm2766, %v2748, 0.0
    %v2785 = vsel %vm2767, %v2749, 0.0
    %v2786 = vsel %vm2768, %v2750, 0.0
    %v2787 = vsel %vm2769, %v2751, 0.0
    %v2788 = vsel %vm2770, %v2752, 0.0
    %v2789 = vsel %vm2771, %v2753, 0.0
    %v2790 = vsel %vm2772, %v2754, 0.0
    %v2791 = vsel %vm2773, %v2755, 0.0
    %v2792 = vsel %vm2774, %v2756, 0.0
    %v2793 = vpack.c.bf16 %v2776, %v2775
    %v2794 = vpack.c.bf16 %v2778, %v2777
    %v2795 = vpack.c.bf16 %v2780, %v2779
    %v2796 = vpack.c.bf16 %v2782, %v2781
    %v2797 = vpack.c.bf16 %v2784, %v2783
    %v2798 = vpack.c.bf16 %v2786, %v2785
    %v2799 = vpack.c.bf16 %v2788, %v2787
    %v2800 = vpack.c.bf16 %v2790, %v2789
    %v2801 = vpack.c.bf16 %v2792, %v2791
    %v2802 = vld [vmem:[#allocation4 + $0x100] sm:$0xff]
    %v2803 = vld [vmem:[#allocation4 + $0x108] sm:$0xff]
    %v2804 = vld [vmem:[#allocation4 + $0x110] sm:$0xff]
    %v2805 = vld [vmem:[#allocation4 + $0x118] sm:$0xff]
    %v2806 = vld [vmem:[#allocation4 + $0x120] sm:$0xff]
    %v2807 = vld [vmem:[#allocation4 + $0x128] sm:$0xff]
    %v2808 = vld [vmem:[#allocation4 + $0x130] sm:$0xff]
    %v2809 = vld [vmem:[#allocation4 + $0x138] sm:$0xff]
    %2810 = vmatprep.subr.bf16.mxu0 0
    %2811 = vmatpush1.bf16.msra.mxu0 %v2802
    %2812 = vmatprep.subr.bf16.mxu0 0
    %2813 = vmatpush1.bf16.msra.mxu0 %v2803
    %2814 = vmatprep.subr.bf16.mxu0 0
    %2815 = vmatpush1.bf16.msra.mxu0 %v2804
    %2816 = vmatprep.subr.bf16.mxu0 0
    %2817 = vmatpush1.bf16.msra.mxu0 %v2805
    %2818 = vmatprep.subr.bf16.mxu0 0
    %2819 = vmatpush1.bf16.msra.mxu0 %v2806
    %2820 = vmatprep.subr.bf16.mxu0 0
    %2821 = vmatpush1.bf16.msra.mxu0 %v2807
    %2822 = vmatprep.subr.bf16.mxu0 0
    %2823 = vmatpush1.bf16.msra.mxu0 %v2808
    %2824 = vmatprep.subr.bf16.mxu0 0
    %2825 = vmatpush1.bf16.msra.mxu0 %v2809
    %2826 = vmatprep.subr.bf16.mxu0 0
    %2827 = vmatpush1.bf16.msra.mxu0 0
    %2828 = vmatprep.subr.bf16.mxu0 0
    %2829 = vmatpush1.bf16.msra.mxu0 0
    %2830 = vmatprep.subr.bf16.mxu0 0
    %2831 = vmatpush1.bf16.msra.mxu0 0
    %2832 = vmatprep.subr.bf16.mxu0 0
    %2833 = vmatpush1.bf16.msra.mxu0 0
    %2834 = vmatprep.subr.bf16.mxu0 0
    %2835 = vmatpush1.bf16.msra.mxu0 0
    %2836 = vmatprep.subr.bf16.mxu0 0
    %2837 = vmatpush1.bf16.msra.mxu0 0
    %2838 = vmatprep.subr.bf16.mxu0 0
    %2839 = vmatpush1.bf16.msra.mxu0 0
    %2840 = vmatprep.subr.bf16.mxu0 0
    %2841 = vmatpush1.bf16.msra.mxu0 0
    %2842 = vmatprep.mubr.bf16.mxu0 0
    %2843 = vmatmul.mubr.bf16.gmra.mrb[0].mxu0 %v2793
    %v2844 = vpop.f32.mrb[0].mxu0
    %v2845 = vadd.f32 0.0, %v2844
    %v2846 = vpop.f32.mrb[0].mxu0
    %v2847 = vpop.f32.mrb[0].mxu0
    %v2848 = vadd.f32 0.0, %v2847
    %v2849 = vpop.f32.mrb[0].mxu0
    %2850 = vmatprep.mubr.bf16.mxu0 0
    %2851 = vmatmul.mubr.bf16.gmra.mrb[0].mxu0 %v2794
    %v2852 = vpop.f32.mrb[0].mxu0
    %v2853 = vadd.f32 0.0, %v2852
    %v2854 = vpop.f32.mrb[0].mxu0
    %v2855 = vpop.f32.mrb[0].mxu0
    %v2856 = vadd.f32 0.0, %v2855
    %v2857 = vpop.f32.mrb[0].mxu0
    %2858 = vmatprep.mubr.bf16.mxu0 0
    %2859 = vmatmul.mubr.bf16.gmra.mrb[0].mxu0 %v2795
    %v2860 = vpop.f32.mrb[0].mxu0
    %v2861 = vadd.f32 0.0, %v2860
    %v2862 = vpop.f32.mrb[0].mxu0
    %v2863 = vpop.f32.mrb[0].mxu0
    %v2864 = vadd.f32 0.0, %v2863
    %v2865 = vpop.f32.mrb[0].mxu0
    %2866 = vmatprep.mubr.bf16.mxu0 0
    %2867 = vmatmul.mubr.bf16.gmra.mrb[0].mxu0 %v2796
    %v2868 = vpop.f32.mrb[0].mxu0
    %v2869 = vadd.f32 0.0, %v2868
    %v2870 = vpop.f32.mrb[0].mxu0
    %v2871 = vpop.f32.mrb[0].mxu0
    %v2872 = vadd.f32 0.0, %v2871
    %v2873 = vpop.f32.mrb[0].mxu0
    %2874 = vmatprep.mubr.bf16.mxu0 0
    %2875 = vmatmul.mubr.bf16.gmra.mrb[0].mxu0 %v2797
    %v2876 = vpop.f32.mrb[0].mxu0
    %v2877 = vadd.f32 0.0, %v2876
    %v2878 = vpop.f32.mrb[0].mxu0
    %v2879 = vpop.f32.mrb[0].mxu0
    %v2880 = vadd.f32 0.0, %v2879
    %v2881 = vpop.f32.mrb[0].mxu0
    %2882 = vmatprep.mubr.bf16.mxu0 0
    %2883 = vmatmul.mubr.bf16.gmra.mrb[0].mxu0 %v2798
    %v2884 = vpop.f32.mrb[0].mxu0
    %v2885 = vadd.f32 0.0, %v2884
    %v2886 = vpop.f32.mrb[0].mxu0
    %v2887 = vpop.f32.mrb[0].mxu0
    %v2888 = vadd.f32 0.0, %v2887
    %v2889 = vpop.f32.mrb[0].mxu0
    %2890 = vmatprep.mubr.bf16.mxu0 0
    %2891 = vmatmul.mubr.bf16.gmra.mrb[0].mxu0 %v2799
    %v2892 = vpop.f32.mrb[0].mxu0
    %v2893 = vadd.f32 0.0, %v2892
    %v2894 = vpop.f32.mrb[0].mxu0
    %v2895 = vpop.f32.mrb[0].mxu0
    %v2896 = vadd.f32 0.0, %v2895
    %v2897 = vpop.f32.mrb[0].mxu0
    %2898 = vmatprep.mubr.bf16.mxu0 0
    %2899 = vmatmul.mubr.bf16.gmra.mrb[0].mxu0 %v2800
    %v2900 = vpop.f32.mrb[0].mxu0
    %v2901 = vadd.f32 0.0, %v2900
    %v2902 = vpop.f32.mrb[0].mxu0
    %v2903 = vpop.f32.mrb[0].mxu0
    %v2904 = vadd.f32 0.0, %v2903
    %v2905 = vpop.f32.mrb[0].mxu0
    %2906 = vmatprep.mubr.bf16.mxu0 0
    %2907 = vmatmul.mubr.bf16.gmra.mrb[0].mxu0 %v2801
    %v2908 = vpop.f32.mrb[0].mxu0
    %v2909 = vadd.f32 0.0, %v2908
    %v2910 = vpop.f32.mrb[0].mxu0
    %v2911 = vpop.f32.mrb[0].mxu0
    %v2912 = vadd.f32 0.0, %v2911
    %v2913 = vpop.f32.mrb[0].mxu0
    %2914 = vdwg.mxu0
    %v2915 = vadd.f32 %v2721, %v2845
    %v2916 = vadd.f32 %v2722, %v2848
    %v2917 = vadd.f32 %v2723, %v2853
    %v2918 = vadd.f32 %v2724, %v2856
    %v2919 = vadd.f32 %v2725, %v2861
    %v2920 = vadd.f32 %v2726, %v2864
    %v2921 = vadd.f32 %v2727, %v2869
    %v2922 = vadd.f32 %v2728, %v2872
    %v2923 = vadd.f32 %v2729, %v2877
    %v2924 = vadd.f32 %v2730, %v2880
    %v2925 = vadd.f32 %v2731, %v2885
    %v2926 = vadd.f32 %v2732, %v2888
    %v2927 = vadd.f32 %v2733, %v2893
    %v2928 = vadd.f32 %v2734, %v2896
    %v2929 = vadd.f32 %v2735, %v2901
    %v2930 = vadd.f32 %v2736, %v2904
    %v2931 = vadd.f32 %v2737, %v2909
    %v2932 = vadd.f32 %v2738, %v2912
    %v2933 = vld [vmem:[#allocation3 + $0xa] sm:$0xff]
    %v2934 = vld [vmem:[#allocation3 + $0x12] sm:$0xff]
    %v2935 = vld [vmem:[#allocation3 + $0x1a] sm:$0xff]
    %v2936 = vld [vmem:[#allocation3 + $0x22] sm:$0xff]
    %v2937 = vld [vmem:[#allocation3 + $0x2a] sm:$0xff]
    %v2938 = vld [vmem:[#allocation3 + $0x32] sm:$0xff]
    %v2939 = vld [vmem:[#allocation3 + $0x3a] sm:$0xff]
    %v2940 = vld [vmem:[#allocation3 + $0x42] sm:$0xff]
    %v2941 = vld [vmem:[#allocation3 + $0x4a] sm:$0xff]
    %v2942 = vld [vmem:[#allocation3 + $0x52] sm:$0xff]
    %v2943 = vld [vmem:[#allocation3 + $0x5a] sm:$0xff]
    %v2944 = vld [vmem:[#allocation3 + $0x62] sm:$0xff]
    %v2945 = vld [vmem:[#allocation3 + $0x6a] sm:$0xff]
    %v2946 = vld [vmem:[#allocation3 + $0x72] sm:$0xff]
    %v2947 = vld [vmem:[#allocation3 + $0x7a] sm:$0xff]
    %v2948 = vld [vmem:[#allocation3 + $0x82] sm:$0xff]
    %v2949 = vld [vmem:[#allocation3 + $0x8a] sm:$0xff]
    %v2950 = vld [vmem:[#allocation3 + $0x92] sm:$0xff]
    %vm2951 = vcmp.le.f32.partialorder %v2013, 9.0
    %vm2952 = vcmp.le.f32.partialorder %v2014, 9.0
    %vm2953 = vcmp.le.f32.partialorder %v2015, 9.0
    %vm2954 = vcmp.le.f32.partialorder %v2016, 9.0
    %vm2955 = vcmp.le.f32.partialorder %v2017, 9.0
    %vm2956 = vcmp.le.f32.partialorder %v2018, 9.0
    %vm2957 = vcmp.le.f32.partialorder %v2019, 9.0
    %vm2958 = vcmp.le.f32.partialorder %v2020, 9.0
    %vm2959 = vcmp.le.f32.partialorder %v2021, 9.0
    %vm2960 = vcmp.le.f32.partialorder %v2022, 9.0
    %vm2961 = vcmp.le.f32.partialorder %v2023, 9.0
    %vm2962 = vcmp.le.f32.partialorder %v2024, 9.0
    %vm2963 = vcmp.le.f32.partialorder %v2025, 9.0
    %vm2964 = vcmp.le.f32.partialorder %v2026, 9.0
    %vm2965 = vcmp.le.f32.partialorder %v2027, 9.0
    %vm2966 = vcmp.le.f32.partialorder %v2028, 9.0
    %vm2967 = vcmp.le.f32.partialorder %v2029, 9.0
    %vm2968 = vcmp.le.f32.partialorder %v2030, 9.0
    %v2969 = vsel %vm2951, %v2933, 0.0
    %v2970 = vsel %vm2952, %v2934, 0.0
    %v2971 = vsel %vm2953, %v2935, 0.0
    %v2972 = vsel %vm2954, %v2936, 0.0
    %v2973 = vsel %vm2955, %v2937, 0.0
    %v2974 = vsel %vm2956, %v2938, 0.0
    %v2975 = vsel %vm2957, %v2939, 0.0
    %v2976 = vsel %vm2958, %v2940, 0.0
    %v2977 = vsel %vm2959, %v2941, 0.0
    %v2978 = vsel %vm2960, %v2942, 0.0
    %v2979 = vsel %vm2961, %v2943, 0.0
    %v2980 = vsel %vm2962, %v2944, 0.0
    %v2981 = vsel %vm2963, %v2945, 0.0
    %v2982 = vsel %vm2964, %v2946, 0.0
    %v2983 = vsel %vm2965, %v2947, 0.0
    %v2984 = vsel %vm2966, %v2948, 0.0
    %v2985 = vsel %vm2967, %v2949, 0.0
    %v2986 = vsel %vm2968, %v2950, 0.0
    %v2987 = vpack.c.bf16 %v2970, %v2969
    %v2988 = vpack.c.bf16 %v2972, %v2971
    %v2989 = vpack.c.bf16 %v2974, %v2973
    %v2990 = vpack.c.bf16 %v2976, %v2975
    %v2991 = vpack.c.bf16 %v2978, %v2977
    %v2992 = vpack.c.bf16 %v2980, %v2979
    %v2993 = vpack.c.bf16 %v2982, %v2981
    %v2994 = vpack.c.bf16 %v2984, %v2983
    %v2995 = vpack.c.bf16 %v2986, %v2985
    %v2996 = vld [vmem:[#allocation4 + $0x140] sm:$0xff]
    %v2997 = vld [vmem:[#allocation4 + $0x148] sm:$0xff]
    %v2998 = vld [vmem:[#allocation4 + $0x150] sm:$0xff]
    %v2999 = vld [vmem:[#allocation4 + $0x158] sm:$0xff]
    %v3000 = vld [vmem:[#allocation4 + $0x160] sm:$0xff]
    %v3001 = vld [vmem:[#allocation4 + $0x168] sm:$0xff]
    %v3002 = vld [vmem:[#allocation4 + $0x170] sm:$0xff]
    %v3003 = vld [vmem:[#allocation4 + $0x178] sm:$0xff]
    %3004 = vmatprep.subr.bf16.mxu0 0
    %3005 = vmatpush1.bf16.msra.mxu0 %v2996
    %3006 = vmatprep.subr.bf16.mxu0 0
    %3007 = vmatpush1.bf16.msra.mxu0 %v2997
    %3008 = vmatprep.subr.bf16.mxu0 0
    %3009 = vmatpush1.bf16.msra.mxu0 %v2998
    %3010 = vmatprep.subr.bf16.mxu0 0
    %3011 = vmatpush1.bf16.msra.mxu0 %v2999
    %3012 = vmatprep.subr.bf16.mxu0 0
    %3013 = vmatpush1.bf16.msra.mxu0 %v3000
    %3014 = vmatprep.subr.bf16.mxu0 0
    %3015 = vmatpush1.bf16.msra.mxu0 %v3001
    %3016 = vmatprep.subr.bf16.mxu0 0
    %3017 = vmatpush1.bf16.msra.mxu0 %v3002
    %3018 = vmatprep.subr.bf16.mxu0 0
    %3019 = vmatpush1.bf16.msra.mxu0 %v3003
    %3020 = vmatprep.subr.bf16.mxu0 0
    %3021 = vmatpush1.bf16.msra.mxu0 0
    %3022 = vmatprep.subr.bf16.mxu0 0
    %3023 = vmatpush1.bf16.msra.mxu0 0
    %3024 = vmatprep.subr.bf16.mxu0 0
    %3025 = vmatpush1.bf16.msra.mxu0 0
    %3026 = vmatprep.subr.bf16.mxu0 0
    %3027 = vmatpush1.bf16.msra.mxu0 0
    %3028 = vmatprep.subr.bf16.mxu0 0
    %3029 = vmatpush1.bf16.msra.mxu0 0
    %3030 = vmatprep.subr.bf16.mxu0 0
    %3031 = vmatpush1.bf16.msra.mxu0 0
    %3032 = vmatprep.subr.bf16.mxu0 0
    %3033 = vmatpush1.bf16.msra.mxu0 0
    %3034 = vmatprep.subr.bf16.mxu0 0
    %3035 = vmatpush1.bf16.msra.mxu0 0
    %3036 = vmatprep.mubr.bf16.mxu0 0
    %3037 = vmatmul.mubr.bf16.gmra.mrb[0].mxu0 %v2987
    %v3038 = vpop.f32.mrb[0].mxu0
    %v3039 = vadd.f32 0.0, %v3038
    %v3040 = vpop.f32.mrb[0].mxu0
    %v3041 = vpop.f32.mrb[0].mxu0
    %v3042 = vadd.f32 0.0, %v3041
    %v3043 = vpop.f32.mrb[0].mxu0
    %3044 = vmatprep.mubr.bf16.mxu0 0
    %3045 = vmatmul.mubr.bf16.gmra.mrb[0].mxu0 %v2988
    %v3046 = vpop.f32.mrb[0].mxu0
    %v3047 = vadd.f32 0.0, %v3046
    %v3048 = vpop.f32.mrb[0].mxu0
    %v3049 = vpop.f32.mrb[0].mxu0
    %v3050 = vadd.f32 0.0, %v3049
    %v3051 = vpop.f32.mrb[0].mxu0
    %3052 = vmatprep.mubr.bf16.mxu0 0
    %3053 = vmatmul.mubr.bf16.gmra.mrb[0].mxu0 %v2989
    %v3054 = vpop.f32.mrb[0].mxu0
    %v3055 = vadd.f32 0.0, %v3054
    %v3056 = vpop.f32.mrb[0].mxu0
    %v3057 = vpop.f32.mrb[0].mxu0
    %v3058 = vadd.f32 0.0, %v3057
    %v3059 = vpop.f32.mrb[0].mxu0
    %3060 = vmatprep.mubr.bf16.mxu0 0
    %3061 = vmatmul.mubr.bf16.gmra.mrb[0].mxu0 %v2990
    %v3062 = vpop.f32.mrb[0].mxu0
    %v3063 = vadd.f32 0.0, %v3062
    %v3064 = vpop.f32.mrb[0].mxu0
    %v3065 = vpop.f32.mrb[0].mxu0
    %v3066 = vadd.f32 0.0, %v3065
    %v3067 = vpop.f32.mrb[0].mxu0
    %3068 = vmatprep.mubr.bf16.mxu0 0
    %3069 = vmatmul.mubr.bf16.gmra.mrb[0].mxu0 %v2991
    %v3070 = vpop.f32.mrb[0].mxu0
    %v3071 = vadd.f32 0.0, %v3070
    %v3072 = vpop.f32.mrb[0].mxu0
    %v3073 = vpop.f32.mrb[0].mxu0
    %v3074 = vadd.f32 0.0, %v3073
    %v3075 = vpop.f32.mrb[0].mxu0
    %3076 = vmatprep.mubr.bf16.mxu0 0
    %3077 = vmatmul.mubr.bf16.gmra.mrb[0].mxu0 %v2992
    %v3078 = vpop.f32.mrb[0].mxu0
    %v3079 = vadd.f32 0.0, %v3078
    %v3080 = vpop.f32.mrb[0].mxu0
    %v3081 = vpop.f32.mrb[0].mxu0
    %v3082 = vadd.f32 0.0, %v3081
    %v3083 = vpop.f32.mrb[0].mxu0
    %3084 = vmatprep.mubr.bf16.mxu0 0
    %3085 = vmatmul.mubr.bf16.gmra.mrb[0].mxu0 %v2993
    %v3086 = vpop.f32.mrb[0].mxu0
    %v3087 = vadd.f32 0.0, %v3086
    %v3088 = vpop.f32.mrb[0].mxu0
    %v3089 = vpop.f32.mrb[0].mxu0
    %v3090 = vadd.f32 0.0, %v3089
    %v3091 = vpop.f32.mrb[0].mxu0
    %3092 = vmatprep.mubr.bf16.mxu0 0
    %3093 = vmatmul.mubr.bf16.gmra.mrb[0].mxu0 %v2994
    %v3094 = vpop.f32.mrb[0].mxu0
    %v3095 = vadd.f32 0.0, %v3094
    %v3096 = vpop.f32.mrb[0].mxu0
    %v3097 = vpop.f32.mrb[0].mxu0
    %v3098 = vadd.f32 0.0, %v3097
    %v3099 = vpop.f32.mrb[0].mxu0
    %3100 = vmatprep.mubr.bf16.mxu0 0
    %3101 = vmatmul.mubr.bf16.gmra.mrb[0].mxu0 %v2995
    %v3102 = vpop.f32.mrb[0].mxu0
    %v3103 = vadd.f32 0.0, %v3102
    %v3104 = vpop.f32.mrb[0].mxu0
    %v3105 = vpop.f32.mrb[0].mxu0
    %v3106 = vadd.f32 0.0, %v3105
    %v3107 = vpop.f32.mrb[0].mxu0
    %3108 = vdwg.mxu0
    %v3109 = vadd.f32 %v2915, %v3039
    %v3110 = vadd.f32 %v2916, %v3042
    %v3111 = vadd.f32 %v2917, %v3047
    %v3112 = vadd.f32 %v2918, %v3050
    %v3113 = vadd.f32 %v2919, %v3055
    %v3114 = vadd.f32 %v2920, %v3058
    %v3115 = vadd.f32 %v2921, %v3063
    %v3116 = vadd.f32 %v2922, %v3066
    %v3117 = vadd.f32 %v2923, %v3071
    %v3118 = vadd.f32 %v2924, %v3074
    %v3119 = vadd.f32 %v2925, %v3079
    %v3120 = vadd.f32 %v2926, %v3082
    %v3121 = vadd.f32 %v2927, %v3087
    %v3122 = vadd.f32 %v2928, %v3090
    %v3123 = vadd.f32 %v2929, %v3095
    %v3124 = vadd.f32 %v2930, %v3098
    %v3125 = vadd.f32 %v2931, %v3103
    %v3126 = vadd.f32 %v2932, %v3106
    %v3127 = vld [vmem:[#allocation3 + $0xb] sm:$0xff]
    %v3128 = vld [vmem:[#allocation3 + $0x13] sm:$0xff]
    %v3129 = vld [vmem:[#allocation3 + $0x1b] sm:$0xff]
    %v3130 = vld [vmem:[#allocation3 + $0x23] sm:$0xff]
    %v3131 = vld [vmem:[#allocation3 + $0x2b] sm:$0xff]
    %v3132 = vld [vmem:[#allocation3 + $0x33] sm:$0xff]
    %v3133 = vld [vmem:[#allocation3 + $0x3b] sm:$0xff]
    %v3134 = vld [vmem:[#allocation3 + $0x43] sm:$0xff]
    %v3135 = vld [vmem:[#allocation3 + $0x4b] sm:$0xff]
    %v3136 = vld [vmem:[#allocation3 + $0x53] sm:$0xff]
    %v3137 = vld [vmem:[#allocation3 + $0x5b] sm:$0xff]
    %v3138 = vld [vmem:[#allocation3 + $0x63] sm:$0xff]
    %v3139 = vld [vmem:[#allocation3 + $0x6b] sm:$0xff]
    %v3140 = vld [vmem:[#allocation3 + $0x73] sm:$0xff]
    %v3141 = vld [vmem:[#allocation3 + $0x7b] sm:$0xff]
    %v3142 = vld [vmem:[#allocation3 + $0x83] sm:$0xff]
    %v3143 = vld [vmem:[#allocation3 + $0x8b] sm:$0xff]
    %v3144 = vld [vmem:[#allocation3 + $0x93] sm:$0xff]
    %vm3145 = vcmp.le.f32.partialorder %v2013, 8.0
    %vm3146 = vcmp.le.f32.partialorder %v2014, 8.0
    %vm3147 = vcmp.le.f32.partialorder %v2015, 8.0
    %vm3148 = vcmp.le.f32.partialorder %v2016, 8.0
    %vm3149 = vcmp.le.f32.partialorder %v2017, 8.0
    %vm3150 = vcmp.le.f32.partialorder %v2018, 8.0
    %vm3151 = vcmp.le.f32.partialorder %v2019, 8.0
    %vm3152 = vcmp.le.f32.partialorder %v2020, 8.0
    %vm3153 = vcmp.le.f32.partialorder %v2021, 8.0
    %vm3154 = vcmp.le.f32.partialorder %v2022, 8.0
    %vm3155 = vcmp.le.f32.partialorder %v2023, 8.0
    %vm3156 = vcmp.le.f32.partialorder %v2024, 8.0
    %vm3157 = vcmp.le.f32.partialorder %v2025, 8.0
    %vm3158 = vcmp.le.f32.partialorder %v2026, 8.0
    %vm3159 = vcmp.le.f32.partialorder %v2027, 8.0
    %vm3160 = vcmp.le.f32.partialorder %v2028, 8.0
    %vm3161 = vcmp.le.f32.partialorder %v2029, 8.0
    %vm3162 = vcmp.le.f32.partialorder %v2030, 8.0
    %v3163 = vsel %vm3145, %v3127, 0.0
    %v3164 = vsel %vm3146, %v3128, 0.0
    %v3165 = vsel %vm3147, %v3129, 0.0
    %v3166 = vsel %vm3148, %v3130, 0.0
    %v3167 = vsel %vm3149, %v3131, 0.0
    %v3168 = vsel %vm3150, %v3132, 0.0
    %v3169 = vsel %vm3151, %v3133, 0.0
    %v3170 = vsel %vm3152, %v3134, 0.0
    %v3171 = vsel %vm3153, %v3135, 0.0
    %v3172 = vsel %vm3154, %v3136, 0.0
    %v3173 = vsel %vm3155, %v3137, 0.0
    %v3174 = vsel %vm3156, %v3138, 0.0
    %v3175 = vsel %vm3157, %v3139, 0.0
    %v3176 = vsel %vm3158, %v3140, 0.0
    %v3177 = vsel %vm3159, %v3141, 0.0
    %v3178 = vsel %vm3160, %v3142, 0.0
    %v3179 = vsel %vm3161, %v3143, 0.0
    %v3180 = vsel %vm3162, %v3144, 0.0
    %v3181 = vpack.c.bf16 %v3164, %v3163
    %v3182 = vpack.c.bf16 %v3166, %v3165
    %v3183 = vpack.c.bf16 %v3168, %v3167
    %v3184 = vpack.c.bf16 %v3170, %v3169
    %v3185 = vpack.c.bf16 %v3172, %v3171
    %v3186 = vpack.c.bf16 %v3174, %v3173
    %v3187 = vpack.c.bf16 %v3176, %v3175
    %v3188 = vpack.c.bf16 %v3178, %v3177
    %v3189 = vpack.c.bf16 %v3180, %v3179
    %v3190 = vld [vmem:[#allocation4 + $0x180] sm:$0xff]
    %v3191 = vld [vmem:[#allocation4 + $0x188] sm:$0xff]
    %v3192 = vld [vmem:[#allocation4 + $0x190] sm:$0xff]
    %v3193 = vld [vmem:[#allocation4 + $0x198] sm:$0xff]
    %v3194 = vld [vmem:[#allocation4 + $0x1a0] sm:$0xff]
    %v3195 = vld [vmem:[#allocation4 + $0x1a8] sm:$0xff]
    %v3196 = vld [vmem:[#allocation4 + $0x1b0] sm:$0xff]
    %v3197 = vld [vmem:[#allocation4 + $0x1b8] sm:$0xff]
    %3198 = vmatprep.subr.bf16.mxu0 0
    %3199 = vmatpush1.bf16.msra.mxu0 %v3190
    %3200 = vmatprep.subr.bf16.mxu0 0
    %3201 = vmatpush1.bf16.msra.mxu0 %v3191
    %3202 = vmatprep.subr.bf16.mxu0 0
    %3203 = vmatpush1.bf16.msra.mxu0 %v3192
    %3204 = vmatprep.subr.bf16.mxu0 0
    %3205 = vmatpush1.bf16.msra.mxu0 %v3193
    %3206 = vmatprep.subr.bf16.mxu0 0
    %3207 = vmatpush1.bf16.msra.mxu0 %v3194
    %3208 = vmatprep.subr.bf16.mxu0 0
    %3209 = vmatpush1.bf16.msra.mxu0 %v3195
    %3210 = vmatprep.subr.bf16.mxu0 0
    %3211 = vmatpush1.bf16.msra.mxu0 %v3196
    %3212 = vmatprep.subr.bf16.mxu0 0
    %3213 = vmatpush1.bf16.msra.mxu0 %v3197
    %3214 = vmatprep.subr.bf16.mxu0 0
    %3215 = vmatpush1.bf16.msra.mxu0 0
    %3216 = vmatprep.subr.bf16.mxu0 0
    %3217 = vmatpush1.bf16.msra.mxu0 0
    %3218 = vmatprep.subr.bf16.mxu0 0
    %3219 = vmatpush1.bf16.msra.mxu0 0
    %3220 = vmatprep.subr.bf16.mxu0 0
    %3221 = vmatpush1.bf16.msra.mxu0 0
    %3222 = vmatprep.subr.bf16.mxu0 0
    %3223 = vmatpush1.bf16.msra.mxu0 0
    %3224 = vmatprep.subr.bf16.mxu0 0
    %3225 = vmatpush1.bf16.msra.mxu0 0
    %3226 = vmatprep.subr.bf16.mxu0 0
    %3227 = vmatpush1.bf16.msra.mxu0 0
    %3228 = vmatprep.subr.bf16.mxu0 0
    %3229 = vmatpush1.bf16.msra.mxu0 0
    %3230 = vmatprep.mubr.bf16.mxu0 0
    %3231 = vmatmul.mubr.bf16.gmra.mrb[0].mxu0 %v3181
    %v3232 = vpop.f32.mrb[0].mxu0
    %v3233 = vadd.f32 0.0, %v3232
    %v3234 = vpop.f32.mrb[0].mxu0
    %v3235 = vpop.f32.mrb[0].mxu0
    %v3236 = vadd.f32 0.0, %v3235
    %v3237 = vpop.f32.mrb[0].mxu0
    %3238 = vmatprep.mubr.bf16.mxu0 0
    %3239 = vmatmul.mubr.bf16.gmra.mrb[0].mxu0 %v3182
    %v3240 = vpop.f32.mrb[0].mxu0
    %v3241 = vadd.f32 0.0, %v3240
    %v3242 = vpop.f32.mrb[0].mxu0
    %v3243 = vpop.f32.mrb[0].mxu0
    %v3244 = vadd.f32 0.0, %v3243
    %v3245 = vpop.f32.mrb[0].mxu0
    %3246 = vmatprep.mubr.bf16.mxu0 0
    %3247 = vmatmul.mubr.bf16.gmra.mrb[0].mxu0 %v3183
    %v3248 = vpop.f32.mrb[0].mxu0
    %v3249 = vadd.f32 0.0, %v3248
    %v3250 = vpop.f32.mrb[0].mxu0
    %v3251 = vpop.f32.mrb[0].mxu0
    %v3252 = vadd.f32 0.0, %v3251
    %v3253 = vpop.f32.mrb[0].mxu0
    %3254 = vmatprep.mubr.bf16.mxu0 0
    %3255 = vmatmul.mubr.bf16.gmra.mrb[0].mxu0 %v3184
    %v3256 = vpop.f32.mrb[0].mxu0
    %v3257 = vadd.f32 0.0, %v3256
    %v3258 = vpop.f32.mrb[0].mxu0
    %v3259 = vpop.f32.mrb[0].mxu0
    %v3260 = vadd.f32 0.0, %v3259
    %v3261 = vpop.f32.mrb[0].mxu0
    %3262 = vmatprep.mubr.bf16.mxu0 0
    %3263 = vmatmul.mubr.bf16.gmra.mrb[0].mxu0 %v3185
    %v3264 = vpop.f32.mrb[0].mxu0
    %v3265 = vadd.f32 0.0, %v3264
    %v3266 = vpop.f32.mrb[0].mxu0
    %v3267 = vpop.f32.mrb[0].mxu0
    %v3268 = vadd.f32 0.0, %v3267
    %v3269 = vpop.f32.mrb[0].mxu0
    %3270 = vmatprep.mubr.bf16.mxu0 0
    %3271 = vmatmul.mubr.bf16.gmra.mrb[0].mxu0 %v3186
    %v3272 = vpop.f32.mrb[0].mxu0
    %v3273 = vadd.f32 0.0, %v3272
    %v3274 = vpop.f32.mrb[0].mxu0
    %v3275 = vpop.f32.mrb[0].mxu0
    %v3276 = vadd.f32 0.0, %v3275
    %v3277 = vpop.f32.mrb[0].mxu0
    %3278 = vmatprep.mubr.bf16.mxu0 0
    %3279 = vmatmul.mubr.bf16.gmra.mrb[0].mxu0 %v3187
    %v3280 = vpop.f32.mrb[0].mxu0
    %v3281 = vadd.f32 0.0, %v3280
    %v3282 = vpop.f32.mrb[0].mxu0
    %v3283 = vpop.f32.mrb[0].mxu0
    %v3284 = vadd.f32 0.0, %v3283
    %v3285 = vpop.f32.mrb[0].mxu0
    %3286 = vmatprep.mubr.bf16.mxu0 0
    %3287 = vmatmul.mubr.bf16.gmra.mrb[0].mxu0 %v3188
    %v3288 = vpop.f32.mrb[0].mxu0
    %v3289 = vadd.f32 0.0, %v3288
    %v3290 = vpop.f32.mrb[0].mxu0
    %v3291 = vpop.f32.mrb[0].mxu0
    %v3292 = vadd.f32 0.0, %v3291
    %v3293 = vpop.f32.mrb[0].mxu0
    %3294 = vmatprep.mubr.bf16.mxu0 0
    %3295 = vmatmul.mubr.bf16.gmra.mrb[0].mxu0 %v3189
    %v3296 = vpop.f32.mrb[0].mxu0
    %v3297 = vadd.f32 0.0, %v3296
    %v3298 = vpop.f32.mrb[0].mxu0
    %v3299 = vpop.f32.mrb[0].mxu0
    %v3300 = vadd.f32 0.0, %v3299
    %v3301 = vpop.f32.mrb[0].mxu0
    %3302 = vdwg.mxu0
    %v3303 = vadd.f32 %v3109, %v3233
    %v3304 = vadd.f32 %v3110, %v3236
    %v3305 = vadd.f32 %v3111, %v3241
    %v3306 = vadd.f32 %v3112, %v3244
    %v3307 = vadd.f32 %v3113, %v3249
    %v3308 = vadd.f32 %v3114, %v3252
    %v3309 = vadd.f32 %v3115, %v3257
    %v3310 = vadd.f32 %v3116, %v3260
    %v3311 = vadd.f32 %v3117, %v3265
    %v3312 = vadd.f32 %v3118, %v3268
    %v3313 = vadd.f32 %v3119, %v3273
    %v3314 = vadd.f32 %v3120, %v3276
    %v3315 = vadd.f32 %v3121, %v3281
    %v3316 = vadd.f32 %v3122, %v3284
    %v3317 = vadd.f32 %v3123, %v3289
    %v3318 = vadd.f32 %v3124, %v3292
    %v3319 = vadd.f32 %v3125, %v3297
    %v3320 = vadd.f32 %v3126, %v3300
    %3321 = vst [vmem:[#allocation11] sm:$0xff] %v3303
    %3322 = vst [vmem:[#allocation11 + $0x8] sm:$0xff] %v3304
    %3323 = vst [vmem:[#allocation11 + $0x10] sm:$0xff] %v3305
    %3324 = vst [vmem:[#allocation11 + $0x18] sm:$0xff] %v3306
    %3325 = vst [vmem:[#allocation11 + $0x20] sm:$0xff] %v3307
    %3326 = vst [vmem:[#allocation11 + $0x28] sm:$0xff] %v3308
    %3327 = vst [vmem:[#allocation11 + $0x30] sm:$0xff] %v3309
    %3328 = vst [vmem:[#allocation11 + $0x38] sm:$0xff] %v3310
    %3329 = vst [vmem:[#allocation11 + $0x40] sm:$0xff] %v3311
    %3330 = vst [vmem:[#allocation11 + $0x48] sm:$0xff] %v3312
    %3331 = vst [vmem:[#allocation11 + $0x50] sm:$0xff] %v3313
    %3332 = vst [vmem:[#allocation11 + $0x58] sm:$0xff] %v3314
    %3333 = vst [vmem:[#allocation11 + $0x60] sm:$0xff] %v3315
    %3334 = vst [vmem:[#allocation11 + $0x68] sm:$0xff] %v3316
    %3335 = vst [vmem:[#allocation11 + $0x70] sm:$0xff] %v3317
    %3336 = vst [vmem:[#allocation11 + $0x78] sm:$0xff] %v3318
    %3337 = vst [vmem:[#allocation11 + $0x80] sm:$0xff] %v3319
    %3338 = vst [vmem:[#allocation11 + $0x88] sm:$0xff] %v3320
    // Predicated region
    $region38: #{tpu_custom_call.1} parent=1 // pred_check
      _
    $region39: #{tpu_custom_call.1} parent=1 // pred_check_branch
      %3340 = sbr.rel (0) target = $region41
    $region40: #{tpu_custom_call.1} parent=1 // pred_region
      %s3342 = ssub.s32 2304, 2304
      %3343 = vsyncadd [#allocation8], %s3342
      %s3344 = sshll.u32 [#allocation11], 4
      %s3345 = int_to_ptr.vmem [resolvable:$true] %s3344
      %3350 = dma.vmem_to_hbm [thread:$0]  %s3345, 2304, %s7, [#allocation8], 128, 128, 8
    $region41: #{tpu_custom_call.1} parent=1 // pred_fallthru
      _
    // Predicated region
    $region42: #{tpu_custom_call.1} parent=1 // pred_check
      _
    $region43: #{tpu_custom_call.1} parent=1 // pred_check_branch
      %3352 = sbr.rel (0) target = $region45
    $region44: #{tpu_custom_call.1} parent=1 // pred_region
      %3353 = dma.done [#allocation8], 2304
    $region45: #{tpu_custom_call.1} parent=1 // pred_fallthru
      _
    %3354 = vsyncpa [#allocation7], 1
    %3355 = vsyncpa [#allocation10], 1
    %3356 = vsyncpa [#allocation8], 1
  %3357 = vsyncmov [#allocation5]
  %s3358 = vpop.sfrf %3357
  %p3359 = scmp.eq.s32.totalorder %s3358, 0
  %p3360 = pneg %p3359
  %3362 = shalt.err (%p3360)

</llo_original>
